<compile_context>
chip_gen: v7x
topology: tpu7x:2x2x1
jax: 0.10.0
libtpu: 0.0.40
codegen_flags: <defaults>
</compile_context>

<pallas_src>
import jax
import jax.numpy as jnp
from jax.experimental import pallas as pl
from jax.experimental.pallas import tpu as pltpu

# --- sizes (small, lane-aligned analogues of image_size=784, h_dim=400, z_dim=20)
BATCH = 256
IMAGE_SIZE = 256   # image_size
H_DIM = 128        # h_dim
Z_DIM = 16         # z_dim (encoder has separate mu / logvar heads)
BETA = 1e-3


def _make_kernel(beta: float):
    def deepvib_kernel(x_ref, eps_ref,
                       w1_ref, b1_ref, wmu_ref, bmu_ref, wlv_ref, blv_ref,
                       w3_ref, b3_ref, w4_ref, b4_ref,
                       recon_ref, loss_ref):
        xb = x_ref[...]                        # bf16 [tb, D] (MXU operand as-is)
        x = xb.astype(jnp.float32)             # f32 for the BCE terms

        # ---- encoder: Linear -> LeakyReLU(0.2) -> (mu, logvar) heads --------
        h1 = jnp.dot(xb, w1_ref[...],
                     preferred_element_type=jnp.float32) + b1_ref[...]
        h1 = jnp.where(h1 > 0, h1, 0.2 * h1)                     # LeakyReLU(0.2)
        h1b = h1.astype(jnp.bfloat16)
        mu = jnp.dot(h1b, wmu_ref[...],
                     preferred_element_type=jnp.float32) + bmu_ref[...]
        logvar = jnp.dot(h1b, wlv_ref[...],
                         preferred_element_type=jnp.float32) + blv_ref[...]

        # ---- reparameterize --------------------------------------------------
        std = jnp.exp(0.5 * logvar)
        z = mu + std * eps_ref[...]

        # ---- decoder: Linear -> ReLU -> Linear -> Sigmoid --------------------
        d1 = jnp.dot(z.astype(jnp.bfloat16), w3_ref[...],
                     preferred_element_type=jnp.float32) + b3_ref[...]
        d1 = jnp.maximum(d1, 0.0)                                 # ReLU
        logits = jnp.dot(d1.astype(jnp.bfloat16), w4_ref[...],
                         preferred_element_type=jnp.float32) + b4_ref[...]

        # ---- shared-exp sigmoid + BCE-from-logits -----------------------------
        # One exp(-|x|) feeds both softplus and the sigmoid:
        #   softplus(x)      = relu(x) + log(1 + exp(-|x|))
        #   log(sigmoid(x))  = x - softplus(x)
        #   log(1-sigmoid)   = -softplus(x)
        #   sigmoid(x)       = exp(log(sigmoid(x)))
        e = jnp.exp(-jnp.abs(logits))
        sp_pos = jnp.maximum(logits, 0.0) + jnp.log(1.0 + e)
        log_r = logits - sp_pos
        log_1mr = -sp_pos
        recon = jnp.exp(log_r)
        recon_ref[...] = recon.astype(recon_ref.dtype)            # bf16 writeback

        # ---- loss: BCE(sum) + beta * KLD, per-tile partial -------------------
        # clamp the logs at -100 like torch BCE
        bce = -jnp.sum(x * jnp.maximum(log_r, -100.0)
                       + (1.0 - x) * jnp.maximum(log_1mr, -100.0))
        kld = -0.5 * jnp.sum(1.0 + logvar - mu * mu - std * std)  # std*std == exp(logvar)
        loss_ref[0, 0] = bce + beta * kld

    return deepvib_kernel


def _default_max_tile(batch: int) -> int:
    """256-row tiles fill the 256-wide MXU on v6e/v7x and drop grid steps;
    on v7x keep >= 2 tiles so both TensorCores get work."""
    try:
        kind = jax.devices()[0].device_kind.lower()
    except Exception:
        kind = ""
    if "v7" in kind:
        return max(8, min(256, batch // 2))
    return 256


def _pick_tile(batch: int, max_tile: int) -> int:
    for t in (512, 256, 128, 64, 32, 16, 8):
        if t <= max_tile and t <= batch and batch % t == 0:
            return t
    return batch


def deepvib_forward(x, eps, params, *, beta=BETA):
    """x: [B, IMAGE_SIZE] in [0,1] (bf16 or f32); eps: [B, Z_DIM] standard-normal noise."""
    w1, b1, wmu, bmu, wlv, blv, w3, b3, w4, b4 = params
    batch, image_size = x.shape
    z_dim = eps.shape[1]
    h_dim = w1.shape[1]
    D, H, Z = image_size, h_dim, z_dim

    x = x.astype(jnp.bfloat16)   # bf16 input: MXU operand + half the HBM read
    tb = _pick_tile(batch, _default_max_tile(batch))
    nt = batch // tb

    kernel = _make_kernel(float(beta))

    grid_spec = pltpu.PrefetchScalarGridSpec(
        num_scalar_prefetch=0,
        grid=(nt,),
        in_specs=[
            pl.BlockSpec((tb, D), lambda i: (i, 0)),   # x (batch-tiled, bf16)
            pl.BlockSpec((tb, Z), lambda i: (i, 0)),   # eps (batch-tiled)
            pl.BlockSpec((D, H), lambda i: (0, 0)),    # w1 (VMEM-resident)
            pl.BlockSpec((1, H), lambda i: (0, 0)),    # b1
            pl.BlockSpec((H, Z), lambda i: (0, 0)),    # w_mu
            pl.BlockSpec((1, Z), lambda i: (0, 0)),    # b_mu
            pl.BlockSpec((H, Z), lambda i: (0, 0)),    # w_logvar
            pl.BlockSpec((1, Z), lambda i: (0, 0)),    # b_logvar
            pl.BlockSpec((Z, H), lambda i: (0, 0)),    # w3
            pl.BlockSpec((1, H), lambda i: (0, 0)),    # b3
            pl.BlockSpec((H, D), lambda i: (0, 0)),    # w4
            pl.BlockSpec((1, D), lambda i: (0, 0)),    # b4
        ],
        out_specs=(
            pl.BlockSpec((tb, D), lambda i: (i, 0)),   # recon (batch-tiled, bf16)
            pl.BlockSpec((1, 1), lambda i: (i, 0),
                         memory_space=pltpu.MemorySpace.SMEM),  # per-tile loss
        ),
    )

    recon, loss_parts = pl.pallas_call(
        kernel,
        grid_spec=grid_spec,
        out_shape=(
            jax.ShapeDtypeStruct((batch, image_size), jnp.bfloat16),
            jax.ShapeDtypeStruct((nt, 1), jnp.float32),
        ),
        compiler_params=pltpu.CompilerParams(
            dimension_semantics=("parallel",),
        ),
    )(x, eps, w1, b1, wmu, bmu, wlv, blv, w3, b3, w4, b4)

    return recon, jnp.sum(loss_parts)


def init_params(key):
    """Synthetic parameters. Weights pre-transposed to [in, out] and cast to bf16
    (MXU operands); biases stay f32."""
    ks = jax.random.split(key, 10)
    s = 0.05

    def w(k, shape):
        return (s * jax.random.normal(k, shape, jnp.float32)).astype(jnp.bfloat16)

    def b(k, shape):
        return s * jax.random.normal(k, shape, jnp.float32)

    w1 = w(ks[0], (IMAGE_SIZE, H_DIM)); b1 = b(ks[1], (1, H_DIM))
    wmu = w(ks[2], (H_DIM, Z_DIM));     bmu = b(ks[3], (1, Z_DIM))
    wlv = w(ks[4], (H_DIM, Z_DIM));     blv = b(ks[5], (1, Z_DIM))
    w3 = w(ks[6], (Z_DIM, H_DIM));      b3 = b(ks[7], (1, H_DIM))
    w4 = w(ks[8], (H_DIM, IMAGE_SIZE)); b4 = b(ks[9], (1, IMAGE_SIZE))
    return (w1, b1, wmu, bmu, wlv, blv, w3, b3, w4, b4)


def _reference(x_bf16, eps, params, beta):
    """Pure-JAX reference with the same bf16-matmul / f32-elementwise recipe."""
    w1, b1, wmu, bmu, wlv, blv, w3, b3, w4, b4 = params
    f32 = jnp.float32
    xb = x_bf16.astype(jnp.bfloat16)
    x = xb.astype(f32)
    h1 = jnp.dot(xb, w1, preferred_element_type=f32) + b1
    h1 = jnp.where(h1 > 0, h1, 0.2 * h1)
    h1b = h1.astype(jnp.bfloat16)
    mu = jnp.dot(h1b, wmu, preferred_element_type=f32) + bmu
    logvar = jnp.dot(h1b, wlv, preferred_element_type=f32) + blv
    std = jnp.exp(0.5 * logvar)
    z = mu + std * eps
    d1 = jnp.maximum(jnp.dot(z.astype(jnp.bfloat16), w3,
                             preferred_element_type=f32) + b3, 0.0)
    logits = jnp.dot(d1.astype(jnp.bfloat16), w4,
                     preferred_element_type=f32) + b4
    recon = jax.nn.sigmoid(logits)
    sp = jax.nn.softplus(logits)
    log_r = jnp.maximum(logits - sp, -100.0)
    log_1mr = jnp.maximum(-sp, -100.0)
    bce = -jnp.sum(x * log_r + (1.0 - x) * log_1mr)
    kld = -0.5 * jnp.sum(1.0 + logvar - mu * mu - std * std)
    return recon, bce + beta * kld


if __name__ == "__main__":
    key = jax.random.PRNGKey(0)
    k_x, k_eps, k_p = jax.random.split(key, 3)

    # x in [0,1] (BCE target domain), eps ~ N(0,1) for reparameterization.
    # TODO(synk): the module draws torch.randn inside forward(); the noise is
    # passed in explicitly here (could also use pltpu.prng_* in-kernel).
    x = jax.random.uniform(k_x, (BATCH, IMAGE_SIZE), jnp.float32).astype(jnp.bfloat16)
    eps = jax.random.normal(k_eps, (BATCH, Z_DIM), jnp.float32)
    params = init_params(k_p)

    recon, loss = deepvib_forward(x, eps, params)
    jax.block_until_ready((recon, loss))

    recon_ref, loss_ref = _reference(x, eps, params, BETA)
    recon_f32 = recon.astype(jnp.float32)
    assert recon.shape == (BATCH, IMAGE_SIZE)
    assert bool(jnp.isfinite(loss))
    assert bool(jnp.max(jnp.abs(recon_f32 - recon_ref)) < 2e-2)
    assert bool(jnp.abs(loss - loss_ref) < 2e-2 * jnp.abs(loss_ref) + 1.0)
    print("KERNEL_OK")
</pallas_src>

<mosaic_0001>
module attributes {stable_mosaic.version = 11 : i64} {
  func.func @deepvib_kernel(%arg0: i32, %arg1: memref<256x256xbf16, #tpu.memory_space<vmem>>, %arg2: memref<256x16xf32, #tpu.memory_space<vmem>>, %arg3: memref<256x128xbf16, #tpu.memory_space<vmem>>, %arg4: memref<1x128xf32, #tpu.memory_space<vmem>>, %arg5: memref<128x16xbf16, #tpu.memory_space<vmem>>, %arg6: memref<1x16xf32, #tpu.memory_space<vmem>>, %arg7: memref<128x16xbf16, #tpu.memory_space<vmem>>, %arg8: memref<1x16xf32, #tpu.memory_space<vmem>>, %arg9: memref<16x128xbf16, #tpu.memory_space<vmem>>, %arg10: memref<1x128xf32, #tpu.memory_space<vmem>>, %arg11: memref<128x256xbf16, #tpu.memory_space<vmem>>, %arg12: memref<1x256xf32, #tpu.memory_space<vmem>>, %arg13: memref<256x256xbf16, #tpu.memory_space<vmem>>, %arg14: memref<1x1xf32, #tpu.memory_space<smem>>) attributes {dimension_semantics = [#tpu.dimension_semantics<parallel>], iteration_bounds = array<i64: 1>, scalar_prefetch = 0 : i64, scratch_operands = 0 : i64, tpu.core_type = #tpu.core_type<tc>, window_params = [{transform_indices = @transform_0, window_bounds = array<i64: 256, 256>}, {transform_indices = @transform_1, window_bounds = array<i64: 256, 16>}, {pipeline_mode = #tpu.pipeline_mode<synchronous>, transform_indices = @transform_2, window_bounds = array<i64: 256, 128>}, {pipeline_mode = #tpu.pipeline_mode<synchronous>, transform_indices = @transform_3, window_bounds = array<i64: 1, 128>}, {pipeline_mode = #tpu.pipeline_mode<synchronous>, transform_indices = @transform_4, window_bounds = array<i64: 128, 16>}, {pipeline_mode = #tpu.pipeline_mode<synchronous>, transform_indices = @transform_5, window_bounds = array<i64: 1, 16>}, {pipeline_mode = #tpu.pipeline_mode<synchronous>, transform_indices = @transform_6, window_bounds = array<i64: 128, 16>}, {pipeline_mode = #tpu.pipeline_mode<synchronous>, transform_indices = @transform_7, window_bounds = array<i64: 1, 16>}, {pipeline_mode = #tpu.pipeline_mode<synchronous>, transform_indices = @transform_8, window_bounds = array<i64: 16, 128>}, {pipeline_mode = #tpu.pipeline_mode<synchronous>, transform_indices = @transform_9, window_bounds = array<i64: 1, 128>}, {pipeline_mode = #tpu.pipeline_mode<synchronous>, transform_indices = @transform_10, window_bounds = array<i64: 128, 256>}, {pipeline_mode = #tpu.pipeline_mode<synchronous>, transform_indices = @transform_11, window_bounds = array<i64: 1, 256>}, {transform_indices = @transform_12, window_bounds = array<i64: 256, 256>}, {transform_indices = @transform_13, window_bounds = array<i64: 1, 1>}]} {
    %c0 = arith.constant 0 : index
    %c0_0 = arith.constant 0 : index
    %0 = vector.load %arg1[%c0, %c0_0] : memref<256x256xbf16, #tpu.memory_space<vmem>>, vector<256x256xbf16>
    %1 = arith.extf %0 : vector<256x256xbf16> to vector<256x256xf32>
    %c0_1 = arith.constant 0 : index
    %c0_2 = arith.constant 0 : index
    %2 = vector.load %arg3[%c0_1, %c0_2] : memref<256x128xbf16, #tpu.memory_space<vmem>>, vector<256x128xbf16>
    %cst = arith.constant dense<0.000000e+00> : vector<256x128xf32>
    %3 = tpu.matmul %0, %2, %cst {dimension_numbers = #tpu.dot_dimension_numbers<[1], [0], [0], [1], [0, 0, 1, 1], [], []>} : vector<256x256xbf16>, vector<256x128xbf16>, vector<256x128xf32> -> vector<256x128xf32>
    %c0_3 = arith.constant 0 : index
    %c0_4 = arith.constant 0 : index
    %4 = vector.load %arg4[%c0_3, %c0_4] : memref<1x128xf32, #tpu.memory_space<vmem>>, vector<1x128xf32>
    %5 = vector.broadcast %4 : vector<1x128xf32> to vector<256x128xf32>
    %6 = arith.addf %3, %5 : vector<256x128xf32>
    %cst_5 = arith.constant 0.000000e+00 : f32
    %7 = vector.broadcast %cst_5 : f32 to vector<256x128xf32>
    %8 = arith.cmpf ogt, %6, %7 : vector<256x128xf32>
    %cst_6 = arith.constant 2.000000e-01 : f32
    %9 = vector.broadcast %cst_6 : f32 to vector<256x128xf32>
    %10 = arith.mulf %9, %6 : vector<256x128xf32>
    %11 = arith.select %8, %6, %10 : vector<256x128xi1>, vector<256x128xf32>
    %12 = arith.truncf %11 : vector<256x128xf32> to vector<256x128xbf16>
    %c0_7 = arith.constant 0 : index
    %c0_8 = arith.constant 0 : index
    %13 = vector.load %arg5[%c0_7, %c0_8] : memref<128x16xbf16, #tpu.memory_space<vmem>>, vector<128x16xbf16>
    %cst_9 = arith.constant dense<0.000000e+00> : vector<256x16xf32>
    %14 = tpu.matmul %12, %13, %cst_9 {dimension_numbers = #tpu.dot_dimension_numbers<[1], [0], [0], [1], [0, 0, 1, 1], [], []>} : vector<256x128xbf16>, vector<128x16xbf16>, vector<256x16xf32> -> vector<256x16xf32>
    %c0_10 = arith.constant 0 : index
    %c0_11 = arith.constant 0 : index
    %15 = vector.load %arg6[%c0_10, %c0_11] : memref<1x16xf32, #tpu.memory_space<vmem>>, vector<1x16xf32>
    %16 = vector.broadcast %15 : vector<1x16xf32> to vector<256x16xf32>
    %17 = arith.addf %14, %16 : vector<256x16xf32>
    %c0_12 = arith.constant 0 : index
    %c0_13 = arith.constant 0 : index
    %18 = vector.load %arg7[%c0_12, %c0_13] : memref<128x16xbf16, #tpu.memory_space<vmem>>, vector<128x16xbf16>
    %cst_14 = arith.constant dense<0.000000e+00> : vector<256x16xf32>
    %19 = tpu.matmul %12, %18, %cst_14 {dimension_numbers = #tpu.dot_dimension_numbers<[1], [0], [0], [1], [0, 0, 1, 1], [], []>} : vector<256x128xbf16>, vector<128x16xbf16>, vector<256x16xf32> -> vector<256x16xf32>
    %c0_15 = arith.constant 0 : index
    %c0_16 = arith.constant 0 : index
    %20 = vector.load %arg8[%c0_15, %c0_16] : memref<1x16xf32, #tpu.memory_space<vmem>>, vector<1x16xf32>
    %21 = vector.broadcast %20 : vector<1x16xf32> to vector<256x16xf32>
    %22 = arith.addf %19, %21 : vector<256x16xf32>
    %cst_17 = arith.constant 5.000000e-01 : f32
    %23 = vector.broadcast %cst_17 : f32 to vector<256x16xf32>
    %24 = arith.mulf %23, %22 : vector<256x16xf32>
    %25 = math.exp %24 : vector<256x16xf32>
    %c0_18 = arith.constant 0 : index
    %c0_19 = arith.constant 0 : index
    %26 = vector.load %arg2[%c0_18, %c0_19] : memref<256x16xf32, #tpu.memory_space<vmem>>, vector<256x16xf32>
    %27 = arith.mulf %25, %26 : vector<256x16xf32>
    %28 = arith.addf %17, %27 : vector<256x16xf32>
    %29 = arith.truncf %28 : vector<256x16xf32> to vector<256x16xbf16>
    %c0_20 = arith.constant 0 : index
    %c0_21 = arith.constant 0 : index
    %30 = vector.load %arg9[%c0_20, %c0_21] : memref<16x128xbf16, #tpu.memory_space<vmem>>, vector<16x128xbf16>
    %cst_22 = arith.constant dense<0.000000e+00> : vector<256x128xf32>
    %31 = tpu.matmul %29, %30, %cst_22 {dimension_numbers = #tpu.dot_dimension_numbers<[1], [0], [0], [1], [0, 0, 1, 1], [], []>} : vector<256x16xbf16>, vector<16x128xbf16>, vector<256x128xf32> -> vector<256x128xf32>
    %c0_23 = arith.constant 0 : index
    %c0_24 = arith.constant 0 : index
    %32 = vector.load %arg10[%c0_23, %c0_24] : memref<1x128xf32, #tpu.memory_space<vmem>>, vector<1x128xf32>
    %33 = vector.broadcast %32 : vector<1x128xf32> to vector<256x128xf32>
    %34 = arith.addf %31, %33 : vector<256x128xf32>
    %cst_25 = arith.constant 0.000000e+00 : f32
    %35 = vector.broadcast %cst_25 : f32 to vector<256x128xf32>
    %36 = arith.maximumf %34, %35 : vector<256x128xf32>
    %37 = arith.truncf %36 : vector<256x128xf32> to vector<256x128xbf16>
    %c0_26 = arith.constant 0 : index
    %c0_27 = arith.constant 0 : index
    %38 = vector.load %arg11[%c0_26, %c0_27] : memref<128x256xbf16, #tpu.memory_space<vmem>>, vector<128x256xbf16>
    %cst_28 = arith.constant dense<0.000000e+00> : vector<256x256xf32>
    %39 = tpu.matmul %37, %38, %cst_28 {dimension_numbers = #tpu.dot_dimension_numbers<[1], [0], [0], [1], [0, 0, 1, 1], [], []>} : vector<256x128xbf16>, vector<128x256xbf16>, vector<256x256xf32> -> vector<256x256xf32>
    %c0_29 = arith.constant 0 : index
    %c0_30 = arith.constant 0 : index
    %40 = vector.load %arg12[%c0_29, %c0_30] : memref<1x256xf32, #tpu.memory_space<vmem>>, vector<1x256xf32>
    %41 = vector.broadcast %40 : vector<1x256xf32> to vector<256x256xf32>
    %42 = arith.addf %39, %41 : vector<256x256xf32>
    %43 = math.absf %42 : vector<256x256xf32>
    %cst_31 = arith.constant 0.000000e+00 : f32
    %44 = vector.broadcast %cst_31 : f32 to vector<256x256xf32>
    %45 = arith.subf %44, %43 : vector<256x256xf32>
    %46 = math.exp %45 : vector<256x256xf32>
    %cst_32 = arith.constant 0.000000e+00 : f32
    %47 = vector.broadcast %cst_32 : f32 to vector<256x256xf32>
    %48 = arith.maximumf %42, %47 : vector<256x256xf32>
    %cst_33 = arith.constant 1.000000e+00 : f32
    %49 = vector.broadcast %cst_33 : f32 to vector<256x256xf32>
    %50 = arith.addf %49, %46 : vector<256x256xf32>
    %51 = math.log %50 : vector<256x256xf32>
    %52 = arith.addf %48, %51 : vector<256x256xf32>
    %53 = arith.subf %42, %52 : vector<256x256xf32>
    %cst_34 = arith.constant 0.000000e+00 : f32
    %54 = vector.broadcast %cst_34 : f32 to vector<256x256xf32>
    %55 = arith.subf %54, %52 : vector<256x256xf32>
    %56 = math.exp %53 : vector<256x256xf32>
    %57 = arith.truncf %56 : vector<256x256xf32> to vector<256x256xbf16>
    %c0_35 = arith.constant 0 : index
    %c0_36 = arith.constant 0 : index
    %58 = vector.load %arg13[%c0_35, %c0_36] : memref<256x256xbf16, #tpu.memory_space<vmem>>, vector<256x256xbf16>
    tpu.vector_store %arg13[%c0_35, %c0_36], %57 {strides = array<i32>} : memref<256x256xbf16, #tpu.memory_space<vmem>>, vector<256x256xbf16>,
    %cst_37 = arith.constant -1.000000e+02 : f32
    %59 = vector.broadcast %cst_37 : f32 to vector<256x256xf32>
    %60 = arith.maximumf %53, %59 : vector<256x256xf32>
    %61 = arith.mulf %1, %60 : vector<256x256xf32>
    %cst_38 = arith.constant 1.000000e+00 : f32
    %62 = vector.broadcast %cst_38 : f32 to vector<256x256xf32>
    %63 = arith.subf %62, %1 : vector<256x256xf32>
    %cst_39 = arith.constant -1.000000e+02 : f32
    %64 = vector.broadcast %cst_39 : f32 to vector<256x256xf32>
    %65 = arith.maximumf %55, %64 : vector<256x256xf32>
    %66 = arith.mulf %63, %65 : vector<256x256xf32>
    %67 = arith.addf %61, %66 : vector<256x256xf32>
    %68 = vector.shape_cast %67 : vector<256x256xf32> to vector<1x256x256xf32>
    %cst_40 = arith.constant dense<0.000000e+00> : vector<1xf32>
    %69 = vector.multi_reduction <add>, %68, %cst_40 [1, 2] : vector<1x256x256xf32> to vector<1xf32>
    %70 = vector.shape_cast %69 : vector<1xf32> to vector<1x1x1xf32>
    %71 = vector.extract %70[0, 0, 0] : f32 from vector<1x1x1xf32>
    %cst_41 = arith.constant 0.000000e+00 : f32
    %72 = arith.subf %cst_41, %71 : f32
    %cst_42 = arith.constant 1.000000e+00 : f32
    %73 = vector.broadcast %cst_42 : f32 to vector<256x16xf32>
    %74 = arith.addf %73, %22 : vector<256x16xf32>
    %75 = arith.mulf %17, %17 : vector<256x16xf32>
    %76 = arith.subf %74, %75 : vector<256x16xf32>
    %77 = arith.mulf %25, %25 : vector<256x16xf32>
    %78 = arith.subf %76, %77 : vector<256x16xf32>
    %79 = vector.shape_cast %78 : vector<256x16xf32> to vector<1x256x16xf32>
    %cst_43 = arith.constant dense<0.000000e+00> : vector<1xf32>
    %80 = vector.multi_reduction <add>, %79, %cst_43 [1, 2] : vector<1x256x16xf32> to vector<1xf32>
    %81 = vector.shape_cast %80 : vector<1xf32> to vector<1x1x1xf32>
    %82 = vector.extract %81[0, 0, 0] : f32 from vector<1x1x1xf32>
    %cst_44 = arith.constant -5.000000e-01 : f32
    %83 = arith.mulf %cst_44, %82 : f32
    %cst_45 = arith.constant 1.000000e-03 : f32
    %84 = arith.mulf %cst_45, %83 : f32
    %85 = arith.addf %72, %84 : f32
    %c0_46 = arith.constant 0 : index
    %c0_47 = arith.constant 0 : index
    %86 = memref.load %arg14[%c0_46, %c0_47] : memref<1x1xf32, #tpu.memory_space<smem>>
    memref.store %85, %arg14[%c0_46, %c0_47] : memref<1x1xf32, #tpu.memory_space<smem>>
    return
  }
  func.func @transform_0(%arg0: i32) -> (i32, i32) {
    %c0_i32 = arith.constant 0 : i32
    %c0_i32_0 = arith.constant 0 : i32
    return %arg0, %c0_i32 : i32, i32
  }
  func.func @transform_1(%arg0: i32) -> (i32, i32) {
    %c0_i32 = arith.constant 0 : i32
    %c0_i32_0 = arith.constant 0 : i32
    return %arg0, %c0_i32 : i32, i32
  }
  func.func @transform_2(%arg0: i32) -> (i32, i32) {
    %c0_i32 = arith.constant 0 : i32
    %c0_i32_0 = arith.constant 0 : i32
    %c0_i32_1 = arith.constant 0 : i32
    return %c0_i32, %c0_i32_0 : i32, i32
  }
  func.func @transform_3(%arg0: i32) -> (i32, i32) {
    %c0_i32 = arith.constant 0 : i32
    %c0_i32_0 = arith.constant 0 : i32
    %c0_i32_1 = arith.constant 0 : i32
    return %c0_i32, %c0_i32_0 : i32, i32
  }
  func.func @transform_4(%arg0: i32) -> (i32, i32) {
    %c0_i32 = arith.constant 0 : i32
    %c0_i32_0 = arith.constant 0 : i32
    %c0_i32_1 = arith.constant 0 : i32
    return %c0_i32, %c0_i32_0 : i32, i32
  }
  func.func @transform_5(%arg0: i32) -> (i32, i32) {
    %c0_i32 = arith.constant 0 : i32
    %c0_i32_0 = arith.constant 0 : i32
    %c0_i32_1 = arith.constant 0 : i32
    return %c0_i32, %c0_i32_0 : i32, i32
  }
  func.func @transform_6(%arg0: i32) -> (i32, i32) {
    %c0_i32 = arith.constant 0 : i32
    %c0_i32_0 = arith.constant 0 : i32
    %c0_i32_1 = arith.constant 0 : i32
    return %c0_i32, %c0_i32_0 : i32, i32
  }
  func.func @transform_7(%arg0: i32) -> (i32, i32) {
    %c0_i32 = arith.constant 0 : i32
    %c0_i32_0 = arith.constant 0 : i32
    %c0_i32_1 = arith.constant 0 : i32
    return %c0_i32, %c0_i32_0 : i32, i32
  }
  func.func @transform_8(%arg0: i32) -> (i32, i32) {
    %c0_i32 = arith.constant 0 : i32
    %c0_i32_0 = arith.constant 0 : i32
    %c0_i32_1 = arith.constant 0 : i32
    return %c0_i32, %c0_i32_0 : i32, i32
  }
  func.func @transform_9(%arg0: i32) -> (i32, i32) {
    %c0_i32 = arith.constant 0 : i32
    %c0_i32_0 = arith.constant 0 : i32
    %c0_i32_1 = arith.constant 0 : i32
    return %c0_i32, %c0_i32_0 : i32, i32
  }
  func.func @transform_10(%arg0: i32) -> (i32, i32) {
    %c0_i32 = arith.constant 0 : i32
    %c0_i32_0 = arith.constant 0 : i32
    %c0_i32_1 = arith.constant 0 : i32
    return %c0_i32, %c0_i32_0 : i32, i32
  }
  func.func @transform_11(%arg0: i32) -> (i32, i32) {
    %c0_i32 = arith.constant 0 : i32
    %c0_i32_0 = arith.constant 0 : i32
    %c0_i32_1 = arith.constant 0 : i32
    return %c0_i32, %c0_i32_0 : i32, i32
  }
  func.func @transform_12(%arg0: i32) -> (i32, i32) {
    %c0_i32 = arith.constant 0 : i32
    %c0_i32_0 = arith.constant 0 : i32
    return %arg0, %c0_i32 : i32, i32
  }
  func.func @transform_13(%arg0: i32) -> (i32, i32) {
    %c0_i32 = arith.constant 0 : i32
    %c0_i32_0 = arith.constant 0 : i32
    return %arg0, %c0_i32 : i32, i32
  }
}

</mosaic_0001>

<llo_original>
// kernel: tpu_custom_call.1
$region0: #{tpu_custom_call.1}
  #allocation0 [shape = 'u32[]', space=smem, size = 0x4, offset = 0x4, fixed_abs, tag = 'smem constant byte address 0x4 - core index']
  #allocation1 [shape = 'u32[144,128]{1,0:T(1,128)}', space=vmem, size = 0x12000, scoped, tag = 'internal scratch']
  %s0 = inlined_call_operand.vmem [shape: bf16[256,256], index: 0, kind: input, shape index: {}]
  %s1 = inlined_call_operand.vmem [shape: f32[256,16], index: 1, kind: input, shape index: {}]
  %s2 = inlined_call_operand.vmem [shape: bf16[256,128], index: 2, kind: input, shape index: {}]
  %s3 = inlined_call_operand.vmem [shape: f32[1,128], index: 3, kind: input, shape index: {}]
  %s4 = inlined_call_operand.vmem [shape: bf16[128,16], index: 4, kind: input, shape index: {}]
  %s5 = inlined_call_operand.vmem [shape: f32[1,16], index: 5, kind: input, shape index: {}]
  %s6 = inlined_call_operand.vmem [shape: bf16[128,16], index: 6, kind: input, shape index: {}]
  %s7 = inlined_call_operand.vmem [shape: f32[1,16], index: 7, kind: input, shape index: {}]
  %s8 = inlined_call_operand.vmem [shape: bf16[16,128], index: 8, kind: input, shape index: {}]
  %s9 = inlined_call_operand.vmem [shape: f32[1,128], index: 9, kind: input, shape index: {}]
  %s10 = inlined_call_operand.hbm [shape: bf16[128,256], index: 10, kind: input, shape index: {}]
  %s11 = inlined_call_operand.vmem [shape: f32[1,256], index: 11, kind: input, shape index: {}]
  %s12 = inlined_call_operand.hbm [shape: bf16[256,256], index: 12, kind: output, shape index: {0}]
  %s13 = inlined_call_operand.hbm [shape: f32[1,1], index: 13, kind: output, shape index: {1}]
  %14 = xla_tuple %s12, %s13
  %s15 = sld [smem:[#allocation0]]
  $region70: #{tpu_custom_call.1} parent=0
    _
  %s17 = ssub.s32 1, %s15
  %s18 = scalar_select 0, %s17, %s15
  $region1: #{tpu_custom_call.1} parent=0
    #allocation2 [shape = 'u8[65536]{0}', space=vmem, size = 0x10000, scoped, tag = 'input window, operand 10, single buffered']
    #allocation3 [shape = 's32[1]{0}', space=sflag, size = 0x4, scoped, tag = 'scoped memory for tpu_custom_call.1']
    #allocation4 [shape = 's32[1]{0}', space=sflag, size = 0x4, scoped, tag = 'scoped memory for tpu_custom_call.1']
    #allocation5 [shape = 's32[1]{0}', space=sflag, size = 0x4, scoped, tag = 'scoped memory for tpu_custom_call.1']
    #allocation6 [shape = 'u8[131072]{0}', space=vmem, size = 0x20000, scoped, tag = 'output window, operand 0, single buffered']
    #allocation7 [shape = 'u8[512]{0}', space=smem, size = 0x200, scoped, tag = 'output window, operand 1, single buffered']
    %19 = vsyncpa [#allocation3], 0
    %20 = vsyncpa [#allocation4], 0
    %21 = vsyncpa [#allocation5], 0
    // Predicated region
    $region2: #{tpu_custom_call.1} parent=1 // pred_check
      _
    $region3: #{tpu_custom_call.1} parent=1 // pred_check_branch
      %23 = sbr.rel (0) target = $region5
    $region4: #{tpu_custom_call.1} parent=1 // pred_region
      _
    $region5: #{tpu_custom_call.1} parent=1 // pred_fallthru
      _
    // Predicated region
    $region6: #{tpu_custom_call.1} parent=1 // pred_check
      _
    $region7: #{tpu_custom_call.1} parent=1 // pred_check_branch
      %25 = sbr.rel (0) target = $region9
    $region8: #{tpu_custom_call.1} parent=1 // pred_region
      _
    $region9: #{tpu_custom_call.1} parent=1 // pred_fallthru
      _
    // Predicated region
    $region10: #{tpu_custom_call.1} parent=1 // pred_check
      _
    $region11: #{tpu_custom_call.1} parent=1 // pred_check_branch
      %27 = sbr.rel (0) target = $region13
    $region12: #{tpu_custom_call.1} parent=1 // pred_region
      _
    $region13: #{tpu_custom_call.1} parent=1 // pred_fallthru
      _
    // Predicated region
    $region14: #{tpu_custom_call.1} parent=1 // pred_check
      _
    $region15: #{tpu_custom_call.1} parent=1 // pred_check_branch
      %29 = sbr.rel (0) target = $region17
    $region16: #{tpu_custom_call.1} parent=1 // pred_region
      _
    $region17: #{tpu_custom_call.1} parent=1 // pred_fallthru
      _
    // Predicated region
    $region18: #{tpu_custom_call.1} parent=1 // pred_check
      _
    $region19: #{tpu_custom_call.1} parent=1 // pred_check_branch
      %31 = sbr.rel (0) target = $region21
    $region20: #{tpu_custom_call.1} parent=1 // pred_region
      _
    $region21: #{tpu_custom_call.1} parent=1 // pred_fallthru
      _
    // Predicated region
    $region22: #{tpu_custom_call.1} parent=1 // pred_check
      _
    $region23: #{tpu_custom_call.1} parent=1 // pred_check_branch
      %33 = sbr.rel (0) target = $region25
    $region24: #{tpu_custom_call.1} parent=1 // pred_region
      _
    $region25: #{tpu_custom_call.1} parent=1 // pred_fallthru
      _
    // Predicated region
    $region26: #{tpu_custom_call.1} parent=1 // pred_check
      _
    $region27: #{tpu_custom_call.1} parent=1 // pred_check_branch
      %35 = sbr.rel (0) target = $region29
    $region28: #{tpu_custom_call.1} parent=1 // pred_region
      _
    $region29: #{tpu_custom_call.1} parent=1 // pred_fallthru
      _
    // Predicated region
    $region30: #{tpu_custom_call.1} parent=1 // pred_check
      _
    $region31: #{tpu_custom_call.1} parent=1 // pred_check_branch
      %37 = sbr.rel (0) target = $region33
    $region32: #{tpu_custom_call.1} parent=1 // pred_region
      _
    $region33: #{tpu_custom_call.1} parent=1 // pred_fallthru
      _
    // Predicated region
    $region34: #{tpu_custom_call.1} parent=1 // pred_check
      _
    $region35: #{tpu_custom_call.1} parent=1 // pred_check_branch
      %39 = sbr.rel (0) target = $region37
    $region36: #{tpu_custom_call.1} parent=1 // pred_region
      _
    $region37: #{tpu_custom_call.1} parent=1 // pred_fallthru
      _
    // Predicated region
    $region38: #{tpu_custom_call.1} parent=1 // pred_check
      _
    $region39: #{tpu_custom_call.1} parent=1 // pred_check_branch
      %41 = sbr.rel (0) target = $region41
    $region40: #{tpu_custom_call.1} parent=1 // pred_region
      _
    $region41: #{tpu_custom_call.1} parent=1 // pred_fallthru
      _
    // Predicated region
    $region42: #{tpu_custom_call.1} parent=1 // pred_check
      _
    $region43: #{tpu_custom_call.1} parent=1 // pred_check_branch
      %43 = sbr.rel (0) target = $region45
    $region44: #{tpu_custom_call.1} parent=1 // pred_region
      %s45 = ssub.s32 2048, 2048
      %46 = vsyncadd [#allocation3], %s45
      %s47 = sshll.u32 [#allocation2], 4
      %s48 = int_to_ptr.vmem [resolvable:$true] %s47
      %53 = dma.hbm_to_vmem [thread:$0]  %s10, 2048, %s48, [#allocation3], 128, 128, 8
    $region45: #{tpu_custom_call.1} parent=1 // pred_fallthru
      _
    // Predicated region
    $region46: #{tpu_custom_call.1} parent=1 // pred_check
      _
    $region47: #{tpu_custom_call.1} parent=1 // pred_check_branch
      %55 = sbr.rel (0) target = $region49
    $region48: #{tpu_custom_call.1} parent=1 // pred_region
      _
    $region49: #{tpu_custom_call.1} parent=1 // pred_fallthru
      _
    // Predicated region
    $region50: #{tpu_custom_call.1} parent=1 // pred_check
      _
    $region51: #{tpu_custom_call.1} parent=1 // pred_check_branch
      %57 = sbr.rel (0) target = $region53
    $region52: #{tpu_custom_call.1} parent=1 // pred_region
      %58 = dma.done [#allocation3], 2048
    $region53: #{tpu_custom_call.1} parent=1 // pred_fallthru
      _
    %v60 = vld [vmem:[%s0] sm:$0xff]
    %v61 = vld [vmem:[%s0 + $0x8] sm:$0xff]
    %v62 = vld [vmem:[%s0 + $0x10] sm:$0xff]
    %v63 = vld [vmem:[%s0 + $0x18] sm:$0xff]
    %v64 = vld [vmem:[%s0 + $0x20] sm:$0xff]
    %v65 = vld [vmem:[%s0 + $0x28] sm:$0xff]
    %v66 = vld [vmem:[%s0 + $0x30] sm:$0xff]
    %v67 = vld [vmem:[%s0 + $0x38] sm:$0xff]
    %v68 = vld [vmem:[%s0 + $0x40] sm:$0xff]
    %v69 = vld [vmem:[%s0 + $0x48] sm:$0xff]
    %v70 = vld [vmem:[%s0 + $0x50] sm:$0xff]
    %v71 = vld [vmem:[%s0 + $0x58] sm:$0xff]
    %v72 = vld [vmem:[%s0 + $0x60] sm:$0xff]
    %v73 = vld [vmem:[%s0 + $0x68] sm:$0xff]
    %v74 = vld [vmem:[%s0 + $0x70] sm:$0xff]
    %v75 = vld [vmem:[%s0 + $0x78] sm:$0xff]
    %v76 = vld [vmem:[%s0 + $0x80] sm:$0xff]
    %v77 = vld [vmem:[%s0 + $0x88] sm:$0xff]
    %v78 = vld [vmem:[%s0 + $0x90] sm:$0xff]
    %v79 = vld [vmem:[%s0 + $0x98] sm:$0xff]
    %v80 = vld [vmem:[%s0 + $0xa0] sm:$0xff]
    %v81 = vld [vmem:[%s0 + $0xa8] sm:$0xff]
    %v82 = vld [vmem:[%s0 + $0xb0] sm:$0xff]
    %v83 = vld [vmem:[%s0 + $0xb8] sm:$0xff]
    %v84 = vld [vmem:[%s0 + $0xc0] sm:$0xff]
    %v85 = vld [vmem:[%s0 + $0xc8] sm:$0xff]
    %v86 = vld [vmem:[%s0 + $0xd0] sm:$0xff]
    %v87 = vld [vmem:[%s0 + $0xd8] sm:$0xff]
    %v88 = vld [vmem:[%s0 + $0xe0] sm:$0xff]
    %v89 = vld [vmem:[%s0 + $0xe8] sm:$0xff]
    %v90 = vld [vmem:[%s0 + $0xf0] sm:$0xff]
    %v91 = vld [vmem:[%s0 + $0xf8] sm:$0xff]
    %v92 = vunpack.c.l.bf16 %v60
    %v93 = vunpack.c.h.bf16 %v60
    %v94 = vunpack.c.l.bf16 %v61
    %v95 = vunpack.c.h.bf16 %v61
    %v96 = vunpack.c.l.bf16 %v62
    %v97 = vunpack.c.h.bf16 %v62
    %v98 = vunpack.c.l.bf16 %v63
    %v99 = vunpack.c.h.bf16 %v63
    %v100 = vunpack.c.l.bf16 %v64
    %v101 = vunpack.c.h.bf16 %v64
    %v102 = vunpack.c.l.bf16 %v65
    %v103 = vunpack.c.h.bf16 %v65
    %v104 = vunpack.c.l.bf16 %v66
    %v105 = vunpack.c.h.bf16 %v66
    %v106 = vunpack.c.l.bf16 %v67
    %v107 = vunpack.c.h.bf16 %v67
    %v108 = vunpack.c.l.bf16 %v68
    %v109 = vunpack.c.h.bf16 %v68
    %v110 = vunpack.c.l.bf16 %v69
    %v111 = vunpack.c.h.bf16 %v69
    %v112 = vunpack.c.l.bf16 %v70
    %v113 = vunpack.c.h.bf16 %v70
    %v114 = vunpack.c.l.bf16 %v71
    %v115 = vunpack.c.h.bf16 %v71
    %v116 = vunpack.c.l.bf16 %v72
    %v117 = vunpack.c.h.bf16 %v72
    %v118 = vunpack.c.l.bf16 %v73
    %v119 = vunpack.c.h.bf16 %v73
    %v120 = vunpack.c.l.bf16 %v74
    %v121 = vunpack.c.h.bf16 %v74
    %v122 = vunpack.c.l.bf16 %v75
    %v123 = vunpack.c.h.bf16 %v75
    %v124 = vunpack.c.l.bf16 %v76
    %v125 = vunpack.c.h.bf16 %v76
    %v126 = vunpack.c.l.bf16 %v77
    %v127 = vunpack.c.h.bf16 %v77
    %v128 = vunpack.c.l.bf16 %v78
    %v129 = vunpack.c.h.bf16 %v78
    %v130 = vunpack.c.l.bf16 %v79
    %v131 = vunpack.c.h.bf16 %v79
    %v132 = vunpack.c.l.bf16 %v80
    %v133 = vunpack.c.h.bf16 %v80
    %v134 = vunpack.c.l.bf16 %v81
    %v135 = vunpack.c.h.bf16 %v81
    %v136 = vunpack.c.l.bf16 %v82
    %v137 = vunpack.c.h.bf16 %v82
    %v138 = vunpack.c.l.bf16 %v83
    %v139 = vunpack.c.h.bf16 %v83
    %v140 = vunpack.c.l.bf16 %v84
    %v141 = vunpack.c.h.bf16 %v84
    %v142 = vunpack.c.l.bf16 %v85
    %v143 = vunpack.c.h.bf16 %v85
    %v144 = vunpack.c.l.bf16 %v86
    %v145 = vunpack.c.h.bf16 %v86
    %v146 = vunpack.c.l.bf16 %v87
    %v147 = vunpack.c.h.bf16 %v87
    %v148 = vunpack.c.l.bf16 %v88
    %v149 = vunpack.c.h.bf16 %v88
    %v150 = vunpack.c.l.bf16 %v89
    %v151 = vunpack.c.h.bf16 %v89
    %v152 = vunpack.c.l.bf16 %v90
    %v153 = vunpack.c.h.bf16 %v90
    %v154 = vunpack.c.l.bf16 %v91
    %v155 = vunpack.c.h.bf16 %v91
    %v156 = vld [vmem:[%s2] sm:$0xf]
    %v157 = vld [vmem:[%s2 + $0x4] sm:$0xf]
    %v158 = vld [vmem:[%s2 + $0x8] sm:$0xf]
    %v159 = vld [vmem:[%s2 + $0xc] sm:$0xf]
    %v160 = vld [vmem:[%s2 + $0x10] sm:$0xf]
    %v161 = vld [vmem:[%s2 + $0x14] sm:$0xf]
    %v162 = vld [vmem:[%s2 + $0x18] sm:$0xf]
    %v163 = vld [vmem:[%s2 + $0x1c] sm:$0xf]
    %v164 = vld [vmem:[%s2 + $0x20] sm:$0xf]
    %v165 = vld [vmem:[%s2 + $0x24] sm:$0xf]
    %v166 = vld [vmem:[%s2 + $0x28] sm:$0xf]
    %v167 = vld [vmem:[%s2 + $0x2c] sm:$0xf]
    %v168 = vld [vmem:[%s2 + $0x30] sm:$0xf]
    %v169 = vld [vmem:[%s2 + $0x34] sm:$0xf]
    %v170 = vld [vmem:[%s2 + $0x38] sm:$0xf]
    %v171 = vld [vmem:[%s2 + $0x3c] sm:$0xf]
    %v172 = vld [vmem:[%s2 + $0x40] sm:$0xf]
    %v173 = vld [vmem:[%s2 + $0x44] sm:$0xf]
    %v174 = vld [vmem:[%s2 + $0x48] sm:$0xf]
    %v175 = vld [vmem:[%s2 + $0x4c] sm:$0xf]
    %v176 = vld [vmem:[%s2 + $0x50] sm:$0xf]
    %v177 = vld [vmem:[%s2 + $0x54] sm:$0xf]
    %v178 = vld [vmem:[%s2 + $0x58] sm:$0xf]
    %v179 = vld [vmem:[%s2 + $0x5c] sm:$0xf]
    %v180 = vld [vmem:[%s2 + $0x60] sm:$0xf]
    %v181 = vld [vmem:[%s2 + $0x64] sm:$0xf]
    %v182 = vld [vmem:[%s2 + $0x68] sm:$0xf]
    %v183 = vld [vmem:[%s2 + $0x6c] sm:$0xf]
    %v184 = vld [vmem:[%s2 + $0x70] sm:$0xf]
    %v185 = vld [vmem:[%s2 + $0x74] sm:$0xf]
    %v186 = vld [vmem:[%s2 + $0x78] sm:$0xf]
    %v187 = vld [vmem:[%s2 + $0x7c] sm:$0xf]
    %v188 = vld [vmem:[%s3] sm:$0x1]
    %v190 = vlaneseq
    %v191 = vshrl.u32 %v190, 7
    %v192 = vsub.s32 0, %v191
    %v193 = vrot.slane %v188, %v192
    %v227 = vunpack.c.l.b16 %v60
    %v228 = vunpack.c.h.b16 %v60
    %v229 = vunpack.c.l.b16 %v61
    %v230 = vunpack.c.h.b16 %v61
    %v231 = vunpack.c.l.b16 %v62
    %v232 = vunpack.c.h.b16 %v62
    %v233 = vunpack.c.l.b16 %v63
    %v234 = vunpack.c.h.b16 %v63
    %v235 = vunpack.c.l.b16 %v64
    %v236 = vunpack.c.h.b16 %v64
    %v237 = vunpack.c.l.b16 %v65
    %v238 = vunpack.c.h.b16 %v65
    %v239 = vunpack.c.l.b16 %v66
    %v240 = vunpack.c.h.b16 %v66
    %v241 = vunpack.c.l.b16 %v67
    %v242 = vunpack.c.h.b16 %v67
    %v243 = vunpack.c.l.b16 %v68
    %v244 = vunpack.c.h.b16 %v68
    %v245 = vunpack.c.l.b16 %v69
    %v246 = vunpack.c.h.b16 %v69
    %v247 = vunpack.c.l.b16 %v70
    %v248 = vunpack.c.h.b16 %v70
    %v249 = vunpack.c.l.b16 %v71
    %v250 = vunpack.c.h.b16 %v71
    %v251 = vunpack.c.l.b16 %v72
    %v252 = vunpack.c.h.b16 %v72
    %v253 = vunpack.c.l.b16 %v73
    %v254 = vunpack.c.h.b16 %v73
    %v255 = vunpack.c.l.b16 %v74
    %v256 = vunpack.c.h.b16 %v74
    %v257 = vunpack.c.l.b16 %v75
    %v258 = vunpack.c.h.b16 %v75
    %v259 = vunpack.c.l.b16 %v76
    %v260 = vunpack.c.h.b16 %v76
    %v261 = vunpack.c.l.b16 %v77
    %v262 = vunpack.c.h.b16 %v77
    %v263 = vunpack.c.l.b16 %v78
    %v264 = vunpack.c.h.b16 %v78
    %v265 = vunpack.c.l.b16 %v79
    %v266 = vunpack.c.h.b16 %v79
    %v267 = vunpack.c.l.b16 %v80
    %v268 = vunpack.c.h.b16 %v80
    %v269 = vunpack.c.l.b16 %v81
    %v270 = vunpack.c.h.b16 %v81
    %v271 = vunpack.c.l.b16 %v82
    %v272 = vunpack.c.h.b16 %v82
    %v273 = vunpack.c.l.b16 %v83
    %v274 = vunpack.c.h.b16 %v83
    %v275 = vunpack.c.l.b16 %v84
    %v276 = vunpack.c.h.b16 %v84
    %v277 = vunpack.c.l.b16 %v85
    %v278 = vunpack.c.h.b16 %v85
    %v279 = vunpack.c.l.b16 %v86
    %v280 = vunpack.c.h.b16 %v86
    %v281 = vunpack.c.l.b16 %v87
    %v282 = vunpack.c.h.b16 %v87
    %v283 = vunpack.c.l.b16 %v88
    %v284 = vunpack.c.h.b16 %v88
    %v285 = vunpack.c.l.b16 %v89
    %v286 = vunpack.c.h.b16 %v89
    %v287 = vunpack.c.l.b16 %v90
    %v288 = vunpack.c.h.b16 %v90
    %v289 = vunpack.c.l.b16 %v91
    %v290 = vunpack.c.h.b16 %v91
    %v291 = vpack.c.b16 %v229, %v227
    %v292 = vpack.c.b16 %v230, %v228
    %v293 = vpack.c.b16 %v233, %v231
    %v294 = vpack.c.b16 %v234, %v232
    %v295 = vpack.c.b16 %v237, %v235
    %v296 = vpack.c.b16 %v238, %v236
    %v297 = vpack.c.b16 %v241, %v239
    %v298 = vpack.c.b16 %v242, %v240
    %v299 = vpack.c.b16 %v245, %v243
    %v300 = vpack.c.b16 %v246, %v244
    %v301 = vpack.c.b16 %v249, %v247
    %v302 = vpack.c.b16 %v250, %v248
    %v303 = vpack.c.b16 %v253, %v251
    %v304 = vpack.c.b16 %v254, %v252
    %v305 = vpack.c.b16 %v257, %v255
    %v306 = vpack.c.b16 %v258, %v256
    %v307 = vpack.c.b16 %v261, %v259
    %v308 = vpack.c.b16 %v262, %v260
    %v309 = vpack.c.b16 %v265, %v263
    %v310 = vpack.c.b16 %v266, %v264
    %v311 = vpack.c.b16 %v269, %v267
    %v312 = vpack.c.b16 %v270, %v268
    %v313 = vpack.c.b16 %v273, %v271
    %v314 = vpack.c.b16 %v274, %v272
    %v315 = vpack.c.b16 %v277, %v275
    %v316 = vpack.c.b16 %v278, %v276
    %v317 = vpack.c.b16 %v281, %v279
    %v318 = vpack.c.b16 %v282, %v280
    %v319 = vpack.c.b16 %v285, %v283
    %v320 = vpack.c.b16 %v286, %v284
    %v321 = vpack.c.b16 %v289, %v287
    %v322 = vpack.c.b16 %v290, %v288
    %v387 = vunpack.c.l.b16 %v156
    %v388 = vunpack.c.l.b16 %v157
    %v389 = vunpack.c.l.b16 %v158
    %v390 = vunpack.c.l.b16 %v159
    %v391 = vunpack.c.l.b16 %v160
    %v392 = vunpack.c.l.b16 %v161
    %v393 = vunpack.c.l.b16 %v162
    %v394 = vunpack.c.l.b16 %v163
    %v395 = vunpack.c.l.b16 %v164
    %v396 = vunpack.c.l.b16 %v165
    %v397 = vunpack.c.l.b16 %v166
    %v398 = vunpack.c.l.b16 %v167
    %v399 = vunpack.c.l.b16 %v168
    %v400 = vunpack.c.l.b16 %v169
    %v401 = vunpack.c.l.b16 %v170
    %v402 = vunpack.c.l.b16 %v171
    %v403 = vunpack.c.l.b16 %v172
    %v404 = vunpack.c.l.b16 %v173
    %v405 = vunpack.c.l.b16 %v174
    %v406 = vunpack.c.l.b16 %v175
    %v407 = vunpack.c.l.b16 %v176
    %v408 = vunpack.c.l.b16 %v177
    %v409 = vunpack.c.l.b16 %v178
    %v410 = vunpack.c.l.b16 %v179
    %v411 = vunpack.c.l.b16 %v180
    %v412 = vunpack.c.l.b16 %v181
    %v413 = vunpack.c.l.b16 %v182
    %v414 = vunpack.c.l.b16 %v183
    %v415 = vunpack.c.l.b16 %v184
    %v416 = vunpack.c.l.b16 %v185
    %v417 = vunpack.c.l.b16 %v186
    %v418 = vunpack.c.l.b16 %v187
    %v419 = vpack.c.b16 %v388, %v387
    %v420 = vpack.c.b16 %v390, %v389
    %v421 = vpack.c.b16 %v392, %v391
    %v422 = vpack.c.b16 %v394, %v393
    %v423 = vpack.c.b16 %v396, %v395
    %v424 = vpack.c.b16 %v398, %v397
    %v425 = vpack.c.b16 %v400, %v399
    %v426 = vpack.c.b16 %v402, %v401
    %v427 = vpack.c.b16 %v404, %v403
    %v428 = vpack.c.b16 %v406, %v405
    %v429 = vpack.c.b16 %v408, %v407
    %v430 = vpack.c.b16 %v410, %v409
    %v431 = vpack.c.b16 %v412, %v411
    %v432 = vpack.c.b16 %v414, %v413
    %v433 = vpack.c.b16 %v416, %v415
    %v434 = vpack.c.b16 %v418, %v417
    %451 = vmatprep.subr.bf16.mxu0 0
    %452 = vmatpush1.bf16.msra.mxu0 %v419
    %453 = vmatprep.subr.bf16.mxu0 0
    %454 = vmatpush1.bf16.msra.mxu0 %v420
    %455 = vmatprep.subr.bf16.mxu0 0
    %456 = vmatpush1.bf16.msra.mxu0 %v421
    %457 = vmatprep.subr.bf16.mxu0 0
    %458 = vmatpush1.bf16.msra.mxu0 %v422
    %459 = vmatprep.subr.bf16.mxu0 0
    %460 = vmatpush1.bf16.msra.mxu0 %v423
    %461 = vmatprep.subr.bf16.mxu0 0
    %462 = vmatpush1.bf16.msra.mxu0 %v424
    %463 = vmatprep.subr.bf16.mxu0 0
    %464 = vmatpush1.bf16.msra.mxu0 %v425
    %465 = vmatprep.subr.bf16.mxu0 0
    %466 = vmatpush1.bf16.msra.mxu0 %v426
    %467 = vmatprep.subr.bf16.mxu0 0
    %468 = vmatpush1.bf16.msra.mxu0 %v427
    %469 = vmatprep.subr.bf16.mxu0 0
    %470 = vmatpush1.bf16.msra.mxu0 %v428
    %471 = vmatprep.subr.bf16.mxu0 0
    %472 = vmatpush1.bf16.msra.mxu0 %v429
    %473 = vmatprep.subr.bf16.mxu0 0
    %474 = vmatpush1.bf16.msra.mxu0 %v430
    %475 = vmatprep.subr.bf16.mxu0 0
    %476 = vmatpush1.bf16.msra.mxu0 %v431
    %477 = vmatprep.subr.bf16.mxu0 0
    %478 = vmatpush1.bf16.msra.mxu0 %v432
    %479 = vmatprep.subr.bf16.mxu0 0
    %480 = vmatpush1.bf16.msra.mxu0 %v433
    %481 = vmatprep.subr.bf16.mxu0 0
    %482 = vmatpush1.bf16.msra.mxu0 %v434
    %483 = vmatprep.mubr.bf16.mxu0 %v292
    %484 = vmatmul.mubr.bf16.gmra.mrb[0].mxu0 %v291
    %v485 = vpop.f32.mrb[0].mxu0
    %v486 = vadd.f32 %v193, %v485
    %v487 = vpop.f32.mrb[0].mxu0
    %v488 = vpop.f32.mrb[0].mxu0
    %v489 = vadd.f32 %v193, %v488
    %v490 = vpop.f32.mrb[0].mxu0
    %491 = vmatprep.mubr.bf16.mxu0 %v294
    %492 = vmatmul.mubr.bf16.gmra.mrb[0].mxu0 %v293
    %v493 = vpop.f32.mrb[0].mxu0
    %v494 = vadd.f32 %v193, %v493
    %v495 = vpop.f32.mrb[0].mxu0
    %v496 = vpop.f32.mrb[0].mxu0
    %v497 = vadd.f32 %v193, %v496
    %v498 = vpop.f32.mrb[0].mxu0
    %499 = vmatprep.mubr.bf16.mxu0 %v296
    %500 = vmatmul.mubr.bf16.gmra.mrb[0].mxu0 %v295
    %v501 = vpop.f32.mrb[0].mxu0
    %v502 = vadd.f32 %v193, %v501
    %v503 = vpop.f32.mrb[0].mxu0
    %v504 = vpop.f32.mrb[0].mxu0
    %v505 = vadd.f32 %v193, %v504
    %v506 = vpop.f32.mrb[0].mxu0
    %507 = vmatprep.mubr.bf16.mxu0 %v298
    %508 = vmatmul.mubr.bf16.gmra.mrb[0].mxu0 %v297
    %v509 = vpop.f32.mrb[0].mxu0
    %v510 = vadd.f32 %v193, %v509
    %v511 = vpop.f32.mrb[0].mxu0
    %v512 = vpop.f32.mrb[0].mxu0
    %v513 = vadd.f32 %v193, %v512
    %v514 = vpop.f32.mrb[0].mxu0
    %515 = vmatprep.mubr.bf16.mxu0 %v300
    %516 = vmatmul.mubr.bf16.gmra.mrb[0].mxu0 %v299
    %v517 = vpop.f32.mrb[0].mxu0
    %v518 = vadd.f32 %v193, %v517
    %v519 = vpop.f32.mrb[0].mxu0
    %v520 = vpop.f32.mrb[0].mxu0
    %v521 = vadd.f32 %v193, %v520
    %v522 = vpop.f32.mrb[0].mxu0
    %523 = vmatprep.mubr.bf16.mxu0 %v302
    %524 = vmatmul.mubr.bf16.gmra.mrb[0].mxu0 %v301
    %v525 = vpop.f32.mrb[0].mxu0
    %v526 = vadd.f32 %v193, %v525
    %v527 = vpop.f32.mrb[0].mxu0
    %v528 = vpop.f32.mrb[0].mxu0
    %v529 = vadd.f32 %v193, %v528
    %v530 = vpop.f32.mrb[0].mxu0
    %531 = vmatprep.mubr.bf16.mxu0 %v304
    %532 = vmatmul.mubr.bf16.gmra.mrb[0].mxu0 %v303
    %v533 = vpop.f32.mrb[0].mxu0
    %v534 = vadd.f32 %v193, %v533
    %v535 = vpop.f32.mrb[0].mxu0
    %v536 = vpop.f32.mrb[0].mxu0
    %v537 = vadd.f32 %v193, %v536
    %v538 = vpop.f32.mrb[0].mxu0
    %539 = vmatprep.mubr.bf16.mxu0 %v306
    %540 = vmatmul.mubr.bf16.gmra.mrb[0].mxu0 %v305
    %v541 = vpop.f32.mrb[0].mxu0
    %v542 = vadd.f32 %v193, %v541
    %v543 = vpop.f32.mrb[0].mxu0
    %v544 = vpop.f32.mrb[0].mxu0
    %v545 = vadd.f32 %v193, %v544
    %v546 = vpop.f32.mrb[0].mxu0
    %547 = vmatprep.mubr.bf16.mxu0 %v308
    %548 = vmatmul.mubr.bf16.gmra.mrb[0].mxu0 %v307
    %v549 = vpop.f32.mrb[0].mxu0
    %v550 = vadd.f32 %v193, %v549
    %v551 = vpop.f32.mrb[0].mxu0
    %v552 = vpop.f32.mrb[0].mxu0
    %v553 = vadd.f32 %v193, %v552
    %v554 = vpop.f32.mrb[0].mxu0
    %555 = vmatprep.mubr.bf16.mxu0 %v310
    %556 = vmatmul.mubr.bf16.gmra.mrb[0].mxu0 %v309
    %v557 = vpop.f32.mrb[0].mxu0
    %v558 = vadd.f32 %v193, %v557
    %v559 = vpop.f32.mrb[0].mxu0
    %v560 = vpop.f32.mrb[0].mxu0
    %v561 = vadd.f32 %v193, %v560
    %v562 = vpop.f32.mrb[0].mxu0
    %563 = vmatprep.mubr.bf16.mxu0 %v312
    %564 = vmatmul.mubr.bf16.gmra.mrb[0].mxu0 %v311
    %v565 = vpop.f32.mrb[0].mxu0
    %v566 = vadd.f32 %v193, %v565
    %v567 = vpop.f32.mrb[0].mxu0
    %v568 = vpop.f32.mrb[0].mxu0
    %v569 = vadd.f32 %v193, %v568
    %v570 = vpop.f32.mrb[0].mxu0
    %571 = vmatprep.mubr.bf16.mxu0 %v314
    %572 = vmatmul.mubr.bf16.gmra.mrb[0].mxu0 %v313
    %v573 = vpop.f32.mrb[0].mxu0
    %v574 = vadd.f32 %v193, %v573
    %v575 = vpop.f32.mrb[0].mxu0
    %v576 = vpop.f32.mrb[0].mxu0
    %v577 = vadd.f32 %v193, %v576
    %v578 = vpop.f32.mrb[0].mxu0
    %579 = vmatprep.mubr.bf16.mxu0 %v316
    %580 = vmatmul.mubr.bf16.gmra.mrb[0].mxu0 %v315
    %v581 = vpop.f32.mrb[0].mxu0
    %v582 = vadd.f32 %v193, %v581
    %v583 = vpop.f32.mrb[0].mxu0
    %v584 = vpop.f32.mrb[0].mxu0
    %v585 = vadd.f32 %v193, %v584
    %v586 = vpop.f32.mrb[0].mxu0
    %587 = vmatprep.mubr.bf16.mxu0 %v318
    %588 = vmatmul.mubr.bf16.gmra.mrb[0].mxu0 %v317
    %v589 = vpop.f32.mrb[0].mxu0
    %v590 = vadd.f32 %v193, %v589
    %v591 = vpop.f32.mrb[0].mxu0
    %v592 = vpop.f32.mrb[0].mxu0
    %v593 = vadd.f32 %v193, %v592
    %v594 = vpop.f32.mrb[0].mxu0
    %595 = vmatprep.mubr.bf16.mxu0 %v320
    %596 = vmatmul.mubr.bf16.gmra.mrb[0].mxu0 %v319
    %v597 = vpop.f32.mrb[0].mxu0
    %v598 = vadd.f32 %v193, %v597
    %v599 = vpop.f32.mrb[0].mxu0
    %v600 = vpop.f32.mrb[0].mxu0
    %v601 = vadd.f32 %v193, %v600
    %v602 = vpop.f32.mrb[0].mxu0
    %603 = vmatprep.mubr.bf16.mxu0 %v322
    %604 = vmatmul.mubr.bf16.gmra.mrb[0].mxu0 %v321
    %v605 = vpop.f32.mrb[0].mxu0
    %v606 = vadd.f32 %v193, %v605
    %v607 = vpop.f32.mrb[0].mxu0
    %v608 = vpop.f32.mrb[0].mxu0
    %v609 = vadd.f32 %v193, %v608
    %v610 = vpop.f32.mrb[0].mxu0
    %611 = vdwg.mxu0
    %vm612 = vcmp.gt.f32.partialorder %v486, 0.0
    %vm613 = vcmp.gt.f32.partialorder %v489, 0.0
    %vm614 = vcmp.gt.f32.partialorder %v494, 0.0
    %vm615 = vcmp.gt.f32.partialorder %v497, 0.0
    %vm616 = vcmp.gt.f32.partialorder %v502, 0.0
    %vm617 = vcmp.gt.f32.partialorder %v505, 0.0
    %vm618 = vcmp.gt.f32.partialorder %v510, 0.0
    %vm619 = vcmp.gt.f32.partialorder %v513, 0.0
    %vm620 = vcmp.gt.f32.partialorder %v518, 0.0
    %vm621 = vcmp.gt.f32.partialorder %v521, 0.0
    %vm622 = vcmp.gt.f32.partialorder %v526, 0.0
    %vm623 = vcmp.gt.f32.partialorder %v529, 0.0
    %vm624 = vcmp.gt.f32.partialorder %v534, 0.0
    %vm625 = vcmp.gt.f32.partialorder %v537, 0.0
    %vm626 = vcmp.gt.f32.partialorder %v542, 0.0
    %vm627 = vcmp.gt.f32.partialorder %v545, 0.0
    %vm628 = vcmp.gt.f32.partialorder %v550, 0.0
    %vm629 = vcmp.gt.f32.partialorder %v553, 0.0
    %vm630 = vcmp.gt.f32.partialorder %v558, 0.0
    %vm631 = vcmp.gt.f32.partialorder %v561, 0.0
    %vm632 = vcmp.gt.f32.partialorder %v566, 0.0
    %vm633 = vcmp.gt.f32.partialorder %v569, 0.0
    %vm634 = vcmp.gt.f32.partialorder %v574, 0.0
    %vm635 = vcmp.gt.f32.partialorder %v577, 0.0
    %vm636 = vcmp.gt.f32.partialorder %v582, 0.0
    %vm637 = vcmp.gt.f32.partialorder %v585, 0.0
    %vm638 = vcmp.gt.f32.partialorder %v590, 0.0
    %vm639 = vcmp.gt.f32.partialorder %v593, 0.0
    %vm640 = vcmp.gt.f32.partialorder %v598, 0.0
    %vm641 = vcmp.gt.f32.partialorder %v601, 0.0
    %vm642 = vcmp.gt.f32.partialorder %v606, 0.0
    %vm643 = vcmp.gt.f32.partialorder %v609, 0.0
    %v644 = vmul.f32 %v486, 0.2
    %v645 = vmul.f32 %v489, 0.2
    %v646 = vmul.f32 %v494, 0.2
    %v647 = vmul.f32 %v497, 0.2
    %v648 = vmul.f32 %v502, 0.2
    %v649 = vmul.f32 %v505, 0.2
    %v650 = vmul.f32 %v510, 0.2
    %v651 = vmul.f32 %v513, 0.2
    %v652 = vmul.f32 %v518, 0.2
    %v653 = vmul.f32 %v521, 0.2
    %v654 = vmul.f32 %v526, 0.2
    %v655 = vmul.f32 %v529, 0.2
    %v656 = vmul.f32 %v534, 0.2
    %v657 = vmul.f32 %v537, 0.2
    %v658 = vmul.f32 %v542, 0.2
    %v659 = vmul.f32 %v545, 0.2
    %v660 = vmul.f32 %v550, 0.2
    %v661 = vmul.f32 %v553, 0.2
    %v662 = vmul.f32 %v558, 0.2
    %v663 = vmul.f32 %v561, 0.2
    %v664 = vmul.f32 %v566, 0.2
    %v665 = vmul.f32 %v569, 0.2
    %v666 = vmul.f32 %v574, 0.2
    %v667 = vmul.f32 %v577, 0.2
    %v668 = vmul.f32 %v582, 0.2
    %v669 = vmul.f32 %v585, 0.2
    %v670 = vmul.f32 %v590, 0.2
    %v671 = vmul.f32 %v593, 0.2
    %v672 = vmul.f32 %v598, 0.2
    %v673 = vmul.f32 %v601, 0.2
    %v674 = vmul.f32 %v606, 0.2
    %v675 = vmul.f32 %v609, 0.2
    %v676 = vsel %vm612, %v486, %v644
    %v677 = vsel %vm613, %v489, %v645
    %v678 = vsel %vm614, %v494, %v646
    %v679 = vsel %vm615, %v497, %v647
    %v680 = vsel %vm616, %v502, %v648
    %v681 = vsel %vm617, %v505, %v649
    %v682 = vsel %vm618, %v510, %v650
    %v683 = vsel %vm619, %v513, %v651
    %v684 = vsel %vm620, %v518, %v652
    %v685 = vsel %vm621, %v521, %v653
    %v686 = vsel %vm622, %v526, %v654
    %v687 = vsel %vm623, %v529, %v655
    %v688 = vsel %vm624, %v534, %v656
    %v689 = vsel %vm625, %v537, %v657
    %v690 = vsel %vm626, %v542, %v658
    %v691 = vsel %vm627, %v545, %v659
    %v692 = vsel %vm628, %v550, %v660
    %v693 = vsel %vm629, %v553, %v661
    %v694 = vsel %vm630, %v558, %v662
    %v695 = vsel %vm631, %v561, %v663
    %v696 = vsel %vm632, %v566, %v664
    %v697 = vsel %vm633, %v569, %v665
    %v698 = vsel %vm634, %v574, %v666
    %v699 = vsel %vm635, %v577, %v667
    %v700 = vsel %vm636, %v582, %v668
    %v701 = vsel %vm637, %v585, %v669
    %v702 = vsel %vm638, %v590, %v670
    %v703 = vsel %vm639, %v593, %v671
    %v704 = vsel %vm640, %v598, %v672
    %v705 = vsel %vm641, %v601, %v673
    %v706 = vsel %vm642, %v606, %v674
    %v707 = vsel %vm643, %v609, %v675
    %v708 = vpack.c.bf16 %v677, %v676
    %v709 = vpack.c.bf16 %v679, %v678
    %v710 = vpack.c.bf16 %v681, %v680
    %v711 = vpack.c.bf16 %v683, %v682
    %v712 = vpack.c.bf16 %v685, %v684
    %v713 = vpack.c.bf16 %v687, %v686
    %v714 = vpack.c.bf16 %v689, %v688
    %v715 = vpack.c.bf16 %v691, %v690
    %v716 = vpack.c.bf16 %v693, %v692
    %v717 = vpack.c.bf16 %v695, %v694
    %v718 = vpack.c.bf16 %v697, %v696
    %v719 = vpack.c.bf16 %v699, %v698
    %v720 = vpack.c.bf16 %v701, %v700
    %v721 = vpack.c.bf16 %v703, %v702
    %v722 = vpack.c.bf16 %v705, %v704
    %v723 = vpack.c.bf16 %v707, %v706
    %v724 = vld [vmem:[%s4] sm:$0xf]
    %v725 = vld [vmem:[%s4 + $0x4] sm:$0xf]
    %v726 = vld [vmem:[%s4 + $0x8] sm:$0xf]
    %v727 = vld [vmem:[%s4 + $0xc] sm:$0xf]
    %v728 = vld [vmem:[%s4 + $0x10] sm:$0xf]
    %v729 = vld [vmem:[%s4 + $0x14] sm:$0xf]
    %v730 = vld [vmem:[%s4 + $0x18] sm:$0xf]
    %v731 = vld [vmem:[%s4 + $0x1c] sm:$0xf]
    %v732 = vld [vmem:[%s4 + $0x20] sm:$0xf]
    %v733 = vld [vmem:[%s4 + $0x24] sm:$0xf]
    %v734 = vld [vmem:[%s4 + $0x28] sm:$0xf]
    %v735 = vld [vmem:[%s4 + $0x2c] sm:$0xf]
    %v736 = vld [vmem:[%s4 + $0x30] sm:$0xf]
    %v737 = vld [vmem:[%s4 + $0x34] sm:$0xf]
    %v738 = vld [vmem:[%s4 + $0x38] sm:$0xf]
    %v739 = vld [vmem:[%s4 + $0x3c] sm:$0xf]
    %v740 = vld [vmem:[%s5] sm:$0x1]
    %v742 = vlaneseq
    %v743 = vshrl.u32 %v742, 7
    %v744 = vsub.s32 0, %v743
    %v745 = vrot.slane %v740, %v744
    %v763 = vunpack.c.l.b16 %v724
    %v764 = vunpack.c.l.b16 %v725
    %v765 = vunpack.c.l.b16 %v726
    %v766 = vunpack.c.l.b16 %v727
    %v767 = vunpack.c.l.b16 %v728
    %v768 = vunpack.c.l.b16 %v729
    %v769 = vunpack.c.l.b16 %v730
    %v770 = vunpack.c.l.b16 %v731
    %v771 = vunpack.c.l.b16 %v732
    %v772 = vunpack.c.l.b16 %v733
    %v773 = vunpack.c.l.b16 %v734
    %v774 = vunpack.c.l.b16 %v735
    %v775 = vunpack.c.l.b16 %v736
    %v776 = vunpack.c.l.b16 %v737
    %v777 = vunpack.c.l.b16 %v738
    %v778 = vunpack.c.l.b16 %v739
    %v779 = vpack.c.b16 %v764, %v763
    %v780 = vpack.c.b16 %v766, %v765
    %v781 = vpack.c.b16 %v768, %v767
    %v782 = vpack.c.b16 %v770, %v769
    %v783 = vpack.c.b16 %v772, %v771
    %v784 = vpack.c.b16 %v774, %v773
    %v785 = vpack.c.b16 %v776, %v775
    %v786 = vpack.c.b16 %v778, %v777
    %795 = vmatprep.subr.bf16.mxu0 0
    %796 = vmatpush1.bf16.msra.mxu0 %v779
    %797 = vmatprep.subr.bf16.mxu0 0
    %798 = vmatpush1.bf16.msra.mxu0 %v780
    %799 = vmatprep.subr.bf16.mxu0 0
    %800 = vmatpush1.bf16.msra.mxu0 %v781
    %801 = vmatprep.subr.bf16.mxu0 0
    %802 = vmatpush1.bf16.msra.mxu0 %v782
    %803 = vmatprep.subr.bf16.mxu0 0
    %804 = vmatpush1.bf16.msra.mxu0 %v783
    %805 = vmatprep.subr.bf16.mxu0 0
    %806 = vmatpush1.bf16.msra.mxu0 %v784
    %807 = vmatprep.subr.bf16.mxu0 0
    %808 = vmatpush1.bf16.msra.mxu0 %v785
    %809 = vmatprep.subr.bf16.mxu0 0
    %810 = vmatpush1.bf16.msra.mxu0 %v786
    %811 = vmatprep.subr.bf16.mxu0 0
    %812 = vmatpush1.bf16.msra.mxu0 0
    %813 = vmatprep.subr.bf16.mxu0 0
    %814 = vmatpush1.bf16.msra.mxu0 0
    %815 = vmatprep.subr.bf16.mxu0 0
    %816 = vmatpush1.bf16.msra.mxu0 0
    %817 = vmatprep.subr.bf16.mxu0 0
    %818 = vmatpush1.bf16.msra.mxu0 0
    %819 = vmatprep.subr.bf16.mxu0 0
    %820 = vmatpush1.bf16.msra.mxu0 0
    %821 = vmatprep.subr.bf16.mxu0 0
    %822 = vmatpush1.bf16.msra.mxu0 0
    %823 = vmatprep.subr.bf16.mxu0 0
    %824 = vmatpush1.bf16.msra.mxu0 0
    %825 = vmatprep.subr.bf16.mxu0 0
    %826 = vmatpush1.bf16.msra.mxu0 0
    %827 = vmatprep.mubr.bf16.mxu0 0
    %828 = vmatmul.mubr.bf16.gmra.mrb[0].mxu0 %v708
    %v829 = vpop.f32.mrb[0].mxu0
    %v830 = vadd.f32 %v745, %v829
    %v831 = vpop.f32.mrb[0].mxu0
    %v832 = vpop.f32.mrb[0].mxu0
    %v833 = vadd.f32 %v745, %v832
    %v834 = vpop.f32.mrb[0].mxu0
    %835 = vmatprep.mubr.bf16.mxu0 0
    %836 = vmatmul.mubr.bf16.gmra.mrb[0].mxu0 %v709
    %v837 = vpop.f32.mrb[0].mxu0
    %v838 = vadd.f32 %v745, %v837
    %v839 = vpop.f32.mrb[0].mxu0
    %v840 = vpop.f32.mrb[0].mxu0
    %v841 = vadd.f32 %v745, %v840
    %v842 = vpop.f32.mrb[0].mxu0
    %843 = vmatprep.mubr.bf16.mxu0 0
    %844 = vmatmul.mubr.bf16.gmra.mrb[0].mxu0 %v710
    %v845 = vpop.f32.mrb[0].mxu0
    %v846 = vadd.f32 %v745, %v845
    %v847 = vpop.f32.mrb[0].mxu0
    %v848 = vpop.f32.mrb[0].mxu0
    %v849 = vadd.f32 %v745, %v848
    %v850 = vpop.f32.mrb[0].mxu0
    %851 = vmatprep.mubr.bf16.mxu0 0
    %852 = vmatmul.mubr.bf16.gmra.mrb[0].mxu0 %v711
    %v853 = vpop.f32.mrb[0].mxu0
    %v854 = vadd.f32 %v745, %v853
    %v855 = vpop.f32.mrb[0].mxu0
    %v856 = vpop.f32.mrb[0].mxu0
    %v857 = vadd.f32 %v745, %v856
    %v858 = vpop.f32.mrb[0].mxu0
    %859 = vmatprep.mubr.bf16.mxu0 0
    %860 = vmatmul.mubr.bf16.gmra.mrb[0].mxu0 %v712
    %v861 = vpop.f32.mrb[0].mxu0
    %v862 = vadd.f32 %v745, %v861
    %v863 = vpop.f32.mrb[0].mxu0
    %v864 = vpop.f32.mrb[0].mxu0
    %v865 = vadd.f32 %v745, %v864
    %v866 = vpop.f32.mrb[0].mxu0
    %867 = vmatprep.mubr.bf16.mxu0 0
    %868 = vmatmul.mubr.bf16.gmra.mrb[0].mxu0 %v713
    %v869 = vpop.f32.mrb[0].mxu0
    %v870 = vadd.f32 %v745, %v869
    %v871 = vpop.f32.mrb[0].mxu0
    %v872 = vpop.f32.mrb[0].mxu0
    %v873 = vadd.f32 %v745, %v872
    %v874 = vpop.f32.mrb[0].mxu0
    %875 = vmatprep.mubr.bf16.mxu0 0
    %876 = vmatmul.mubr.bf16.gmra.mrb[0].mxu0 %v714
    %v877 = vpop.f32.mrb[0].mxu0
    %v878 = vadd.f32 %v745, %v877
    %v879 = vpop.f32.mrb[0].mxu0
    %v880 = vpop.f32.mrb[0].mxu0
    %v881 = vadd.f32 %v745, %v880
    %v882 = vpop.f32.mrb[0].mxu0
    %883 = vmatprep.mubr.bf16.mxu0 0
    %884 = vmatmul.mubr.bf16.gmra.mrb[0].mxu0 %v715
    %v885 = vpop.f32.mrb[0].mxu0
    %v886 = vadd.f32 %v745, %v885
    %v887 = vpop.f32.mrb[0].mxu0
    %v888 = vpop.f32.mrb[0].mxu0
    %v889 = vadd.f32 %v745, %v888
    %v890 = vpop.f32.mrb[0].mxu0
    %891 = vmatprep.mubr.bf16.mxu0 0
    %892 = vmatmul.mubr.bf16.gmra.mrb[0].mxu0 %v716
    %v893 = vpop.f32.mrb[0].mxu0
    %v894 = vadd.f32 %v745, %v893
    %v895 = vpop.f32.mrb[0].mxu0
    %v896 = vpop.f32.mrb[0].mxu0
    %v897 = vadd.f32 %v745, %v896
    %v898 = vpop.f32.mrb[0].mxu0
    %899 = vmatprep.mubr.bf16.mxu0 0
    %900 = vmatmul.mubr.bf16.gmra.mrb[0].mxu0 %v717
    %v901 = vpop.f32.mrb[0].mxu0
    %v902 = vadd.f32 %v745, %v901
    %v903 = vpop.f32.mrb[0].mxu0
    %v904 = vpop.f32.mrb[0].mxu0
    %v905 = vadd.f32 %v745, %v904
    %v906 = vpop.f32.mrb[0].mxu0
    %907 = vmatprep.mubr.bf16.mxu0 0
    %908 = vmatmul.mubr.bf16.gmra.mrb[0].mxu0 %v718
    %v909 = vpop.f32.mrb[0].mxu0
    %v910 = vadd.f32 %v745, %v909
    %v911 = vpop.f32.mrb[0].mxu0
    %v912 = vpop.f32.mrb[0].mxu0
    %v913 = vadd.f32 %v745, %v912
    %v914 = vpop.f32.mrb[0].mxu0
    %915 = vmatprep.mubr.bf16.mxu0 0
    %916 = vmatmul.mubr.bf16.gmra.mrb[0].mxu0 %v719
    %v917 = vpop.f32.mrb[0].mxu0
    %v918 = vadd.f32 %v745, %v917
    %v919 = vpop.f32.mrb[0].mxu0
    %v920 = vpop.f32.mrb[0].mxu0
    %v921 = vadd.f32 %v745, %v920
    %v922 = vpop.f32.mrb[0].mxu0
    %923 = vmatprep.mubr.bf16.mxu0 0
    %924 = vmatmul.mubr.bf16.gmra.mrb[0].mxu0 %v720
    %v925 = vpop.f32.mrb[0].mxu0
    %v926 = vadd.f32 %v745, %v925
    %v927 = vpop.f32.mrb[0].mxu0
    %v928 = vpop.f32.mrb[0].mxu0
    %v929 = vadd.f32 %v745, %v928
    %v930 = vpop.f32.mrb[0].mxu0
    %931 = vmatprep.mubr.bf16.mxu0 0
    %932 = vmatmul.mubr.bf16.gmra.mrb[0].mxu0 %v721
    %v933 = vpop.f32.mrb[0].mxu0
    %v934 = vadd.f32 %v745, %v933
    %v935 = vpop.f32.mrb[0].mxu0
    %v936 = vpop.f32.mrb[0].mxu0
    %v937 = vadd.f32 %v745, %v936
    %v938 = vpop.f32.mrb[0].mxu0
    %939 = vmatprep.mubr.bf16.mxu0 0
    %940 = vmatmul.mubr.bf16.gmra.mrb[0].mxu0 %v722
    %v941 = vpop.f32.mrb[0].mxu0
    %v942 = vadd.f32 %v745, %v941
    %v943 = vpop.f32.mrb[0].mxu0
    %v944 = vpop.f32.mrb[0].mxu0
    %v945 = vadd.f32 %v745, %v944
    %v946 = vpop.f32.mrb[0].mxu0
    %947 = vmatprep.mubr.bf16.mxu0 0
    %948 = vmatmul.mubr.bf16.gmra.mrb[0].mxu0 %v723
    %v949 = vpop.f32.mrb[0].mxu0
    %v950 = vadd.f32 %v745, %v949
    %v951 = vpop.f32.mrb[0].mxu0
    %v952 = vpop.f32.mrb[0].mxu0
    %v953 = vadd.f32 %v745, %v952
    %v954 = vpop.f32.mrb[0].mxu0
    %955 = vdwg.mxu0
    %v956 = vld [vmem:[%s6] sm:$0xf]
    %v957 = vld [vmem:[%s6 + $0x4] sm:$0xf]
    %v958 = vld [vmem:[%s6 + $0x8] sm:$0xf]
    %v959 = vld [vmem:[%s6 + $0xc] sm:$0xf]
    %v960 = vld [vmem:[%s6 + $0x10] sm:$0xf]
    %v961 = vld [vmem:[%s6 + $0x14] sm:$0xf]
    %v962 = vld [vmem:[%s6 + $0x18] sm:$0xf]
    %v963 = vld [vmem:[%s6 + $0x1c] sm:$0xf]
    %v964 = vld [vmem:[%s6 + $0x20] sm:$0xf]
    %v965 = vld [vmem:[%s6 + $0x24] sm:$0xf]
    %v966 = vld [vmem:[%s6 + $0x28] sm:$0xf]
    %v967 = vld [vmem:[%s6 + $0x2c] sm:$0xf]
    %v968 = vld [vmem:[%s6 + $0x30] sm:$0xf]
    %v969 = vld [vmem:[%s6 + $0x34] sm:$0xf]
    %v970 = vld [vmem:[%s6 + $0x38] sm:$0xf]
    %v971 = vld [vmem:[%s6 + $0x3c] sm:$0xf]
    %v972 = vld [vmem:[%s7] sm:$0x1]
    %v974 = vlaneseq
    %v975 = vshrl.u32 %v974, 7
    %v976 = vsub.s32 0, %v975
    %v977 = vrot.slane %v972, %v976
    %v995 = vunpack.c.l.b16 %v956
    %v996 = vunpack.c.l.b16 %v957
    %v997 = vunpack.c.l.b16 %v958
    %v998 = vunpack.c.l.b16 %v959
    %v999 = vunpack.c.l.b16 %v960
    %v1000 = vunpack.c.l.b16 %v961
    %v1001 = vunpack.c.l.b16 %v962
    %v1002 = vunpack.c.l.b16 %v963
    %v1003 = vunpack.c.l.b16 %v964
    %v1004 = vunpack.c.l.b16 %v965
    %v1005 = vunpack.c.l.b16 %v966
    %v1006 = vunpack.c.l.b16 %v967
    %v1007 = vunpack.c.l.b16 %v968
    %v1008 = vunpack.c.l.b16 %v969
    %v1009 = vunpack.c.l.b16 %v970
    %v1010 = vunpack.c.l.b16 %v971
    %v1011 = vpack.c.b16 %v996, %v995
    %v1012 = vpack.c.b16 %v998, %v997
    %v1013 = vpack.c.b16 %v1000, %v999
    %v1014 = vpack.c.b16 %v1002, %v1001
    %v1015 = vpack.c.b16 %v1004, %v1003
    %v1016 = vpack.c.b16 %v1006, %v1005
    %v1017 = vpack.c.b16 %v1008, %v1007
    %v1018 = vpack.c.b16 %v1010, %v1009
    %1027 = vmatprep.subr.bf16.mxu0 0
    %1028 = vmatpush1.bf16.msra.mxu0 %v1011
    %1029 = vmatprep.subr.bf16.mxu0 0
    %1030 = vmatpush1.bf16.msra.mxu0 %v1012
    %1031 = vmatprep.subr.bf16.mxu0 0
    %1032 = vmatpush1.bf16.msra.mxu0 %v1013
    %1033 = vmatprep.subr.bf16.mxu0 0
    %1034 = vmatpush1.bf16.msra.mxu0 %v1014
    %1035 = vmatprep.subr.bf16.mxu0 0
    %1036 = vmatpush1.bf16.msra.mxu0 %v1015
    %1037 = vmatprep.subr.bf16.mxu0 0
    %1038 = vmatpush1.bf16.msra.mxu0 %v1016
    %1039 = vmatprep.subr.bf16.mxu0 0
    %1040 = vmatpush1.bf16.msra.mxu0 %v1017
    %1041 = vmatprep.subr.bf16.mxu0 0
    %1042 = vmatpush1.bf16.msra.mxu0 %v1018
    %1043 = vmatprep.subr.bf16.mxu0 0
    %1044 = vmatpush1.bf16.msra.mxu0 0
    %1045 = vmatprep.subr.bf16.mxu0 0
    %1046 = vmatpush1.bf16.msra.mxu0 0
    %1047 = vmatprep.subr.bf16.mxu0 0
    %1048 = vmatpush1.bf16.msra.mxu0 0
    %1049 = vmatprep.subr.bf16.mxu0 0
    %1050 = vmatpush1.bf16.msra.mxu0 0
    %1051 = vmatprep.subr.bf16.mxu0 0
    %1052 = vmatpush1.bf16.msra.mxu0 0
    %1053 = vmatprep.subr.bf16.mxu0 0
    %1054 = vmatpush1.bf16.msra.mxu0 0
    %1055 = vmatprep.subr.bf16.mxu0 0
    %1056 = vmatpush1.bf16.msra.mxu0 0
    %1057 = vmatprep.subr.bf16.mxu0 0
    %1058 = vmatpush1.bf16.msra.mxu0 0
    %1059 = vmatprep.mubr.bf16.mxu0 0
    %1060 = vmatmul.mubr.bf16.gmra.mrb[0].mxu0 %v708
    %v1061 = vpop.f32.mrb[0].mxu0
    %v1062 = vadd.f32 %v977, %v1061
    %v1063 = vpop.f32.mrb[0].mxu0
    %v1064 = vpop.f32.mrb[0].mxu0
    %v1065 = vadd.f32 %v977, %v1064
    %v1066 = vpop.f32.mrb[0].mxu0
    %1067 = vmatprep.mubr.bf16.mxu0 0
    %1068 = vmatmul.mubr.bf16.gmra.mrb[0].mxu0 %v709
    %v1069 = vpop.f32.mrb[0].mxu0
    %v1070 = vadd.f32 %v977, %v1069
    %v1071 = vpop.f32.mrb[0].mxu0
    %v1072 = vpop.f32.mrb[0].mxu0
    %v1073 = vadd.f32 %v977, %v1072
    %v1074 = vpop.f32.mrb[0].mxu0
    %1075 = vmatprep.mubr.bf16.mxu0 0
    %1076 = vmatmul.mubr.bf16.gmra.mrb[0].mxu0 %v710
    %v1077 = vpop.f32.mrb[0].mxu0
    %v1078 = vadd.f32 %v977, %v1077
    %v1079 = vpop.f32.mrb[0].mxu0
    %v1080 = vpop.f32.mrb[0].mxu0
    %v1081 = vadd.f32 %v977, %v1080
    %v1082 = vpop.f32.mrb[0].mxu0
    %1083 = vmatprep.mubr.bf16.mxu0 0
    %1084 = vmatmul.mubr.bf16.gmra.mrb[0].mxu0 %v711
    %v1085 = vpop.f32.mrb[0].mxu0
    %v1086 = vadd.f32 %v977, %v1085
    %v1087 = vpop.f32.mrb[0].mxu0
    %v1088 = vpop.f32.mrb[0].mxu0
    %v1089 = vadd.f32 %v977, %v1088
    %v1090 = vpop.f32.mrb[0].mxu0
    %1091 = vmatprep.mubr.bf16.mxu0 0
    %1092 = vmatmul.mubr.bf16.gmra.mrb[0].mxu0 %v712
    %v1093 = vpop.f32.mrb[0].mxu0
    %v1094 = vadd.f32 %v977, %v1093
    %v1095 = vpop.f32.mrb[0].mxu0
    %v1096 = vpop.f32.mrb[0].mxu0
    %v1097 = vadd.f32 %v977, %v1096
    %v1098 = vpop.f32.mrb[0].mxu0
    %1099 = vmatprep.mubr.bf16.mxu0 0
    %1100 = vmatmul.mubr.bf16.gmra.mrb[0].mxu0 %v713
    %v1101 = vpop.f32.mrb[0].mxu0
    %v1102 = vadd.f32 %v977, %v1101
    %v1103 = vpop.f32.mrb[0].mxu0
    %v1104 = vpop.f32.mrb[0].mxu0
    %v1105 = vadd.f32 %v977, %v1104
    %v1106 = vpop.f32.mrb[0].mxu0
    %1107 = vmatprep.mubr.bf16.mxu0 0
    %1108 = vmatmul.mubr.bf16.gmra.mrb[0].mxu0 %v714
    %v1109 = vpop.f32.mrb[0].mxu0
    %v1110 = vadd.f32 %v977, %v1109
    %v1111 = vpop.f32.mrb[0].mxu0
    %v1112 = vpop.f32.mrb[0].mxu0
    %v1113 = vadd.f32 %v977, %v1112
    %v1114 = vpop.f32.mrb[0].mxu0
    %1115 = vmatprep.mubr.bf16.mxu0 0
    %1116 = vmatmul.mubr.bf16.gmra.mrb[0].mxu0 %v715
    %v1117 = vpop.f32.mrb[0].mxu0
    %v1118 = vadd.f32 %v977, %v1117
    %v1119 = vpop.f32.mrb[0].mxu0
    %v1120 = vpop.f32.mrb[0].mxu0
    %v1121 = vadd.f32 %v977, %v1120
    %v1122 = vpop.f32.mrb[0].mxu0
    %1123 = vmatprep.mubr.bf16.mxu0 0
    %1124 = vmatmul.mubr.bf16.gmra.mrb[0].mxu0 %v716
    %v1125 = vpop.f32.mrb[0].mxu0
    %v1126 = vadd.f32 %v977, %v1125
    %v1127 = vpop.f32.mrb[0].mxu0
    %v1128 = vpop.f32.mrb[0].mxu0
    %v1129 = vadd.f32 %v977, %v1128
    %v1130 = vpop.f32.mrb[0].mxu0
    %1131 = vmatprep.mubr.bf16.mxu0 0
    %1132 = vmatmul.mubr.bf16.gmra.mrb[0].mxu0 %v717
    %v1133 = vpop.f32.mrb[0].mxu0
    %v1134 = vadd.f32 %v977, %v1133
    %v1135 = vpop.f32.mrb[0].mxu0
    %v1136 = vpop.f32.mrb[0].mxu0
    %v1137 = vadd.f32 %v977, %v1136
    %v1138 = vpop.f32.mrb[0].mxu0
    %1139 = vmatprep.mubr.bf16.mxu0 0
    %1140 = vmatmul.mubr.bf16.gmra.mrb[0].mxu0 %v718
    %v1141 = vpop.f32.mrb[0].mxu0
    %v1142 = vadd.f32 %v977, %v1141
    %v1143 = vpop.f32.mrb[0].mxu0
    %v1144 = vpop.f32.mrb[0].mxu0
    %v1145 = vadd.f32 %v977, %v1144
    %v1146 = vpop.f32.mrb[0].mxu0
    %1147 = vmatprep.mubr.bf16.mxu0 0
    %1148 = vmatmul.mubr.bf16.gmra.mrb[0].mxu0 %v719
    %v1149 = vpop.f32.mrb[0].mxu0
    %v1150 = vadd.f32 %v977, %v1149
    %v1151 = vpop.f32.mrb[0].mxu0
    %v1152 = vpop.f32.mrb[0].mxu0
    %v1153 = vadd.f32 %v977, %v1152
    %v1154 = vpop.f32.mrb[0].mxu0
    %1155 = vmatprep.mubr.bf16.mxu0 0
    %1156 = vmatmul.mubr.bf16.gmra.mrb[0].mxu0 %v720
    %v1157 = vpop.f32.mrb[0].mxu0
    %v1158 = vadd.f32 %v977, %v1157
    %v1159 = vpop.f32.mrb[0].mxu0
    %v1160 = vpop.f32.mrb[0].mxu0
    %v1161 = vadd.f32 %v977, %v1160
    %v1162 = vpop.f32.mrb[0].mxu0
    %1163 = vmatprep.mubr.bf16.mxu0 0
    %1164 = vmatmul.mubr.bf16.gmra.mrb[0].mxu0 %v721
    %v1165 = vpop.f32.mrb[0].mxu0
    %v1166 = vadd.f32 %v977, %v1165
    %v1167 = vpop.f32.mrb[0].mxu0
    %v1168 = vpop.f32.mrb[0].mxu0
    %v1169 = vadd.f32 %v977, %v1168
    %v1170 = vpop.f32.mrb[0].mxu0
    %1171 = vmatprep.mubr.bf16.mxu0 0
    %1172 = vmatmul.mubr.bf16.gmra.mrb[0].mxu0 %v722
    %v1173 = vpop.f32.mrb[0].mxu0
    %v1174 = vadd.f32 %v977, %v1173
    %v1175 = vpop.f32.mrb[0].mxu0
    %v1176 = vpop.f32.mrb[0].mxu0
    %v1177 = vadd.f32 %v977, %v1176
    %v1178 = vpop.f32.mrb[0].mxu0
    %1179 = vmatprep.mubr.bf16.mxu0 0
    %1180 = vmatmul.mubr.bf16.gmra.mrb[0].mxu0 %v723
    %v1181 = vpop.f32.mrb[0].mxu0
    %v1182 = vadd.f32 %v977, %v1181
    %v1183 = vpop.f32.mrb[0].mxu0
    %v1184 = vpop.f32.mrb[0].mxu0
    %v1185 = vadd.f32 %v977, %v1184
    %v1186 = vpop.f32.mrb[0].mxu0
    %1187 = vdwg.mxu0
    %v1188 = vmul.f32 %v1062, 0.5
    %v1189 = vmul.f32 %v1065, 0.5
    %v1190 = vmul.f32 %v1070, 0.5
    %v1191 = vmul.f32 %v1073, 0.5
    %v1192 = vmul.f32 %v1078, 0.5
    %v1193 = vmul.f32 %v1081, 0.5
    %v1194 = vmul.f32 %v1086, 0.5
    %v1195 = vmul.f32 %v1089, 0.5
    %v1196 = vmul.f32 %v1094, 0.5
    %v1197 = vmul.f32 %v1097, 0.5
    %v1198 = vmul.f32 %v1102, 0.5
    %v1199 = vmul.f32 %v1105, 0.5
    %v1200 = vmul.f32 %v1110, 0.5
    %v1201 = vmul.f32 %v1113, 0.5
    %v1202 = vmul.f32 %v1118, 0.5
    %v1203 = vmul.f32 %v1121, 0.5
    %v1204 = vmul.f32 %v1126, 0.5
    %v1205 = vmul.f32 %v1129, 0.5
    %v1206 = vmul.f32 %v1134, 0.5
    %v1207 = vmul.f32 %v1137, 0.5
    %v1208 = vmul.f32 %v1142, 0.5
    %v1209 = vmul.f32 %v1145, 0.5
    %v1210 = vmul.f32 %v1150, 0.5
    %v1211 = vmul.f32 %v1153, 0.5
    %v1212 = vmul.f32 %v1158, 0.5
    %v1213 = vmul.f32 %v1161, 0.5
    %v1214 = vmul.f32 %v1166, 0.5
    %v1215 = vmul.f32 %v1169, 0.5
    %v1216 = vmul.f32 %v1174, 0.5
    %v1217 = vmul.f32 %v1177, 0.5
    %v1218 = vmul.f32 %v1182, 0.5
    %v1219 = vmul.f32 %v1185, 0.5
    %v1220 = vmul.f32 %v1188, 1.442695
    %v1221 = vpow.pop %v1220
    %v1222 = vmul.f32 %v1189, 1.442695
    %v1223 = vpow.pop %v1222
    %v1224 = vmul.f32 %v1190, 1.442695
    %v1225 = vpow.pop %v1224
    %v1226 = vmul.f32 %v1191, 1.442695
    %v1227 = vpow.pop %v1226
    %v1228 = vmul.f32 %v1192, 1.442695
    %v1229 = vpow.pop %v1228
    %v1230 = vmul.f32 %v1193, 1.442695
    %v1231 = vpow.pop %v1230
    %v1232 = vmul.f32 %v1194, 1.442695
    %v1233 = vpow.pop %v1232
    %v1234 = vmul.f32 %v1195, 1.442695
    %v1235 = vpow.pop %v1234
    %v1236 = vmul.f32 %v1196, 1.442695
    %v1237 = vpow.pop %v1236
    %v1238 = vmul.f32 %v1197, 1.442695
    %v1239 = vpow.pop %v1238
    %v1240 = vmul.f32 %v1198, 1.442695
    %v1241 = vpow.pop %v1240
    %v1242 = vmul.f32 %v1199, 1.442695
    %v1243 = vpow.pop %v1242
    %v1244 = vmul.f32 %v1200, 1.442695
    %v1245 = vpow.pop %v1244
    %v1246 = vmul.f32 %v1201, 1.442695
    %v1247 = vpow.pop %v1246
    %v1248 = vmul.f32 %v1202, 1.442695
    %v1249 = vpow.pop %v1248
    %v1250 = vmul.f32 %v1203, 1.442695
    %v1251 = vpow.pop %v1250
    %v1252 = vmul.f32 %v1204, 1.442695
    %v1253 = vpow.pop %v1252
    %v1254 = vmul.f32 %v1205, 1.442695
    %v1255 = vpow.pop %v1254
    %v1256 = vmul.f32 %v1206, 1.442695
    %v1257 = vpow.pop %v1256
    %v1258 = vmul.f32 %v1207, 1.442695
    %v1259 = vpow.pop %v1258
    %v1260 = vmul.f32 %v1208, 1.442695
    %v1261 = vpow.pop %v1260
    %v1262 = vmul.f32 %v1209, 1.442695
    %v1263 = vpow.pop %v1262
    %v1264 = vmul.f32 %v1210, 1.442695
    %v1265 = vpow.pop %v1264
    %v1266 = vmul.f32 %v1211, 1.442695
    %v1267 = vpow.pop %v1266
    %v1268 = vmul.f32 %v1212, 1.442695
    %v1269 = vpow.pop %v1268
    %v1270 = vmul.f32 %v1213, 1.442695
    %v1271 = vpow.pop %v1270
    %v1272 = vmul.f32 %v1214, 1.442695
    %v1273 = vpow.pop %v1272
    %v1274 = vmul.f32 %v1215, 1.442695
    %v1275 = vpow.pop %v1274
    %v1276 = vmul.f32 %v1216, 1.442695
    %v1277 = vpow.pop %v1276
    %v1278 = vmul.f32 %v1217, 1.442695
    %v1279 = vpow.pop %v1278
    %v1280 = vmul.f32 %v1218, 1.442695
    %v1281 = vpow.pop %v1280
    %v1282 = vmul.f32 %v1219, 1.442695
    %v1283 = vpow.pop %v1282
    %v1284 = vld [vmem:[%s1] sm:$0xff]
    %v1285 = vld [vmem:[%s1 + $0x8] sm:$0xff]
    %v1286 = vld [vmem:[%s1 + $0x10] sm:$0xff]
    %v1287 = vld [vmem:[%s1 + $0x18] sm:$0xff]
    %v1288 = vld [vmem:[%s1 + $0x20] sm:$0xff]
    %v1289 = vld [vmem:[%s1 + $0x28] sm:$0xff]
    %v1290 = vld [vmem:[%s1 + $0x30] sm:$0xff]
    %v1291 = vld [vmem:[%s1 + $0x38] sm:$0xff]
    %v1292 = vld [vmem:[%s1 + $0x40] sm:$0xff]
    %v1293 = vld [vmem:[%s1 + $0x48] sm:$0xff]
    %v1294 = vld [vmem:[%s1 + $0x50] sm:$0xff]
    %v1295 = vld [vmem:[%s1 + $0x58] sm:$0xff]
    %v1296 = vld [vmem:[%s1 + $0x60] sm:$0xff]
    %v1297 = vld [vmem:[%s1 + $0x68] sm:$0xff]
    %v1298 = vld [vmem:[%s1 + $0x70] sm:$0xff]
    %v1299 = vld [vmem:[%s1 + $0x78] sm:$0xff]
    %v1300 = vld [vmem:[%s1 + $0x80] sm:$0xff]
    %v1301 = vld [vmem:[%s1 + $0x88] sm:$0xff]
    %v1302 = vld [vmem:[%s1 + $0x90] sm:$0xff]
    %v1303 = vld [vmem:[%s1 + $0x98] sm:$0xff]
    %v1304 = vld [vmem:[%s1 + $0xa0] sm:$0xff]
    %v1305 = vld [vmem:[%s1 + $0xa8] sm:$0xff]
    %v1306 = vld [vmem:[%s1 + $0xb0] sm:$0xff]
    %v1307 = vld [vmem:[%s1 + $0xb8] sm:$0xff]
    %v1308 = vld [vmem:[%s1 + $0xc0] sm:$0xff]
    %v1309 = vld [vmem:[%s1 + $0xc8] sm:$0xff]
    %v1310 = vld [vmem:[%s1 + $0xd0] sm:$0xff]
    %v1311 = vld [vmem:[%s1 + $0xd8] sm:$0xff]
    %v1312 = vld [vmem:[%s1 + $0xe0] sm:$0xff]
    %v1313 = vld [vmem:[%s1 + $0xe8] sm:$0xff]
    %v1314 = vld [vmem:[%s1 + $0xf0] sm:$0xff]
    %v1315 = vld [vmem:[%s1 + $0xf8] sm:$0xff]
    %v1316 = vmul.f32 %v1221, %v1284
    %v1317 = vmul.f32 %v1223, %v1285
    %v1318 = vmul.f32 %v1225, %v1286
    %v1319 = vmul.f32 %v1227, %v1287
    %v1320 = vmul.f32 %v1229, %v1288
    %v1321 = vmul.f32 %v1231, %v1289
    %v1322 = vmul.f32 %v1233, %v1290
    %v1323 = vmul.f32 %v1235, %v1291
    %v1324 = vmul.f32 %v1237, %v1292
    %v1325 = vmul.f32 %v1239, %v1293
    %v1326 = vmul.f32 %v1241, %v1294
    %v1327 = vmul.f32 %v1243, %v1295
    %v1328 = vmul.f32 %v1245, %v1296
    %v1329 = vmul.f32 %v1247, %v1297
    %v1330 = vmul.f32 %v1249, %v1298
    %v1331 = vmul.f32 %v1251, %v1299
    %v1332 = vmul.f32 %v1253, %v1300
    %v1333 = vmul.f32 %v1255, %v1301
    %v1334 = vmul.f32 %v1257, %v1302
    %v1335 = vmul.f32 %v1259, %v1303
    %v1336 = vmul.f32 %v1261, %v1304
    %v1337 = vmul.f32 %v1263, %v1305
    %v1338 = vmul.f32 %v1265, %v1306
    %v1339 = vmul.f32 %v1267, %v1307
    %v1340 = vmul.f32 %v1269, %v1308
    %v1341 = vmul.f32 %v1271, %v1309
    %v1342 = vmul.f32 %v1273, %v1310
    %v1343 = vmul.f32 %v1275, %v1311
    %v1344 = vmul.f32 %v1277, %v1312
    %v1345 = vmul.f32 %v1279, %v1313
    %v1346 = vmul.f32 %v1281, %v1314
    %v1347 = vmul.f32 %v1283, %v1315
    %v1348 = vadd.f32 %v830, %v1316
    %v1349 = vadd.f32 %v833, %v1317
    %v1350 = vadd.f32 %v838, %v1318
    %v1351 = vadd.f32 %v841, %v1319
    %v1352 = vadd.f32 %v846, %v1320
    %v1353 = vadd.f32 %v849, %v1321
    %v1354 = vadd.f32 %v854, %v1322
    %v1355 = vadd.f32 %v857, %v1323
    %v1356 = vadd.f32 %v862, %v1324
    %v1357 = vadd.f32 %v865, %v1325
    %v1358 = vadd.f32 %v870, %v1326
    %v1359 = vadd.f32 %v873, %v1327
    %v1360 = vadd.f32 %v878, %v1328
    %v1361 = vadd.f32 %v881, %v1329
    %v1362 = vadd.f32 %v886, %v1330
    %v1363 = vadd.f32 %v889, %v1331
    %v1364 = vadd.f32 %v894, %v1332
    %v1365 = vadd.f32 %v897, %v1333
    %v1366 = vadd.f32 %v902, %v1334
    %v1367 = vadd.f32 %v905, %v1335
    %v1368 = vadd.f32 %v910, %v1336
    %v1369 = vadd.f32 %v913, %v1337
    %v1370 = vadd.f32 %v918, %v1338
    %v1371 = vadd.f32 %v921, %v1339
    %v1372 = vadd.f32 %v926, %v1340
    %v1373 = vadd.f32 %v929, %v1341
    %v1374 = vadd.f32 %v934, %v1342
    %v1375 = vadd.f32 %v937, %v1343
    %v1376 = vadd.f32 %v942, %v1344
    %v1377 = vadd.f32 %v945, %v1345
    %v1378 = vadd.f32 %v950, %v1346
    %v1379 = vadd.f32 %v953, %v1347
    %v1380 = vpack.c.bf16 %v1349, %v1348
    %v1381 = vpack.c.bf16 %v1351, %v1350
    %v1382 = vpack.c.bf16 %v1353, %v1352
    %v1383 = vpack.c.bf16 %v1355, %v1354
    %v1384 = vpack.c.bf16 %v1357, %v1356
    %v1385 = vpack.c.bf16 %v1359, %v1358
    %v1386 = vpack.c.bf16 %v1361, %v1360
    %v1387 = vpack.c.bf16 %v1363, %v1362
    %v1388 = vpack.c.bf16 %v1365, %v1364
    %v1389 = vpack.c.bf16 %v1367, %v1366
    %v1390 = vpack.c.bf16 %v1369, %v1368
    %v1391 = vpack.c.bf16 %v1371, %v1370
    %v1392 = vpack.c.bf16 %v1373, %v1372
    %v1393 = vpack.c.bf16 %v1375, %v1374
    %v1394 = vpack.c.bf16 %v1377, %v1376
    %v1395 = vpack.c.bf16 %v1379, %v1378
    %v1396 = vld [vmem:[%s8] sm:$0xf]
    %v1397 = vld [vmem:[%s8 + $0x4] sm:$0xf]
    %v1398 = vld [vmem:[%s9] sm:$0x1]
    %v1400 = vlaneseq
    %v1401 = vshrl.u32 %v1400, 7
    %v1402 = vsub.s32 0, %v1401
    %v1403 = vrot.slane %v1398, %v1402
    %v1407 = vunpack.c.l.b16 %v1396
    %v1408 = vunpack.c.l.b16 %v1397
    %v1409 = vpack.c.b16 %v1408, %v1407
    %vm1411 = vcmask 130048
    %v1413 = vsel %vm1411, %v1380, 0
    %v1416 = vsel %vm1411, %v1381, 0
    %v1419 = vsel %vm1411, %v1382, 0
    %v1422 = vsel %vm1411, %v1383, 0
    %v1425 = vsel %vm1411, %v1384, 0
    %v1428 = vsel %vm1411, %v1385, 0
    %v1431 = vsel %vm1411, %v1386, 0
    %v1434 = vsel %vm1411, %v1387, 0
    %v1437 = vsel %vm1411, %v1388, 0
    %v1440 = vsel %vm1411, %v1389, 0
    %v1443 = vsel %vm1411, %v1390, 0
    %v1446 = vsel %vm1411, %v1391, 0
    %v1449 = vsel %vm1411, %v1392, 0
    %v1452 = vsel %vm1411, %v1393, 0
    %v1455 = vsel %vm1411, %v1394, 0
    %v1458 = vsel %vm1411, %v1395, 0
    %1460 = vmatprep.subr.bf16.mxu0 0
    %1461 = vmatpush1.bf16.msra.mxu0 %v1409
    %1462 = vmatprep.subr.bf16.mxu0 0
    %1463 = vmatpush1.bf16.msra.mxu0 0
    %1464 = vmatprep.subr.bf16.mxu0 0
    %1465 = vmatpush1.bf16.msra.mxu0 0
    %1466 = vmatprep.subr.bf16.mxu0 0
    %1467 = vmatpush1.bf16.msra.mxu0 0
    %1468 = vmatprep.subr.bf16.mxu0 0
    %1469 = vmatpush1.bf16.msra.mxu0 0
    %1470 = vmatprep.subr.bf16.mxu0 0
    %1471 = vmatpush1.bf16.msra.mxu0 0
    %1472 = vmatprep.subr.bf16.mxu0 0
    %1473 = vmatpush1.bf16.msra.mxu0 0
    %1474 = vmatprep.subr.bf16.mxu0 0
    %1475 = vmatpush1.bf16.msra.mxu0 0
    %1476 = vmatprep.subr.bf16.mxu0 0
    %1477 = vmatpush1.bf16.msra.mxu0 0
    %1478 = vmatprep.subr.bf16.mxu0 0
    %1479 = vmatpush1.bf16.msra.mxu0 0
    %1480 = vmatprep.subr.bf16.mxu0 0
    %1481 = vmatpush1.bf16.msra.mxu0 0
    %1482 = vmatprep.subr.bf16.mxu0 0
    %1483 = vmatpush1.bf16.msra.mxu0 0
    %1484 = vmatprep.subr.bf16.mxu0 0
    %1485 = vmatpush1.bf16.msra.mxu0 0
    %1486 = vmatprep.subr.bf16.mxu0 0
    %1487 = vmatpush1.bf16.msra.mxu0 0
    %1488 = vmatprep.subr.bf16.mxu0 0
    %1489 = vmatpush1.bf16.msra.mxu0 0
    %1490 = vmatprep.subr.bf16.mxu0 0
    %1491 = vmatpush1.bf16.msra.mxu0 0
    %1492 = vmatprep.mubr.bf16.mxu0 0
    %1493 = vmatmul.mubr.bf16.gmra.mrb[0].mxu0 %v1413
    %v1494 = vpop.f32.mrb[0].mxu0
    %v1495 = vadd.f32 %v1403, %v1494
    %v1496 = vpop.f32.mrb[0].mxu0
    %v1497 = vpop.f32.mrb[0].mxu0
    %v1498 = vadd.f32 %v1403, %v1497
    %v1499 = vpop.f32.mrb[0].mxu0
    %1500 = vmatprep.mubr.bf16.mxu0 0
    %1501 = vmatmul.mubr.bf16.gmra.mrb[0].mxu0 %v1416
    %v1502 = vpop.f32.mrb[0].mxu0
    %v1503 = vadd.f32 %v1403, %v1502
    %v1504 = vpop.f32.mrb[0].mxu0
    %v1505 = vpop.f32.mrb[0].mxu0
    %v1506 = vadd.f32 %v1403, %v1505
    %v1507 = vpop.f32.mrb[0].mxu0
    %1508 = vmatprep.mubr.bf16.mxu0 0
    %1509 = vmatmul.mubr.bf16.gmra.mrb[0].mxu0 %v1419
    %v1510 = vpop.f32.mrb[0].mxu0
    %v1511 = vadd.f32 %v1403, %v1510
    %v1512 = vpop.f32.mrb[0].mxu0
    %v1513 = vpop.f32.mrb[0].mxu0
    %v1514 = vadd.f32 %v1403, %v1513
    %v1515 = vpop.f32.mrb[0].mxu0
    %1516 = vmatprep.mubr.bf16.mxu0 0
    %1517 = vmatmul.mubr.bf16.gmra.mrb[0].mxu0 %v1422
    %v1518 = vpop.f32.mrb[0].mxu0
    %v1519 = vadd.f32 %v1403, %v1518
    %v1520 = vpop.f32.mrb[0].mxu0
    %v1521 = vpop.f32.mrb[0].mxu0
    %v1522 = vadd.f32 %v1403, %v1521
    %v1523 = vpop.f32.mrb[0].mxu0
    %1524 = vmatprep.mubr.bf16.mxu0 0
    %1525 = vmatmul.mubr.bf16.gmra.mrb[0].mxu0 %v1425
    %v1526 = vpop.f32.mrb[0].mxu0
    %v1527 = vadd.f32 %v1403, %v1526
    %v1528 = vpop.f32.mrb[0].mxu0
    %v1529 = vpop.f32.mrb[0].mxu0
    %v1530 = vadd.f32 %v1403, %v1529
    %v1531 = vpop.f32.mrb[0].mxu0
    %1532 = vmatprep.mubr.bf16.mxu0 0
    %1533 = vmatmul.mubr.bf16.gmra.mrb[0].mxu0 %v1428
    %v1534 = vpop.f32.mrb[0].mxu0
    %v1535 = vadd.f32 %v1403, %v1534
    %v1536 = vpop.f32.mrb[0].mxu0
    %v1537 = vpop.f32.mrb[0].mxu0
    %v1538 = vadd.f32 %v1403, %v1537
    %v1539 = vpop.f32.mrb[0].mxu0
    %1540 = vmatprep.mubr.bf16.mxu0 0
    %1541 = vmatmul.mubr.bf16.gmra.mrb[0].mxu0 %v1431
    %v1542 = vpop.f32.mrb[0].mxu0
    %v1543 = vadd.f32 %v1403, %v1542
    %v1544 = vpop.f32.mrb[0].mxu0
    %v1545 = vpop.f32.mrb[0].mxu0
    %v1546 = vadd.f32 %v1403, %v1545
    %v1547 = vpop.f32.mrb[0].mxu0
    %1548 = vmatprep.mubr.bf16.mxu0 0
    %1549 = vmatmul.mubr.bf16.gmra.mrb[0].mxu0 %v1434
    %v1550 = vpop.f32.mrb[0].mxu0
    %v1551 = vadd.f32 %v1403, %v1550
    %v1552 = vpop.f32.mrb[0].mxu0
    %v1553 = vpop.f32.mrb[0].mxu0
    %v1554 = vadd.f32 %v1403, %v1553
    %v1555 = vpop.f32.mrb[0].mxu0
    %1556 = vmatprep.mubr.bf16.mxu0 0
    %1557 = vmatmul.mubr.bf16.gmra.mrb[0].mxu0 %v1437
    %v1558 = vpop.f32.mrb[0].mxu0
    %v1559 = vadd.f32 %v1403, %v1558
    %v1560 = vpop.f32.mrb[0].mxu0
    %v1561 = vpop.f32.mrb[0].mxu0
    %v1562 = vadd.f32 %v1403, %v1561
    %v1563 = vpop.f32.mrb[0].mxu0
    %1564 = vmatprep.mubr.bf16.mxu0 0
    %1565 = vmatmul.mubr.bf16.gmra.mrb[0].mxu0 %v1440
    %v1566 = vpop.f32.mrb[0].mxu0
    %v1567 = vadd.f32 %v1403, %v1566
    %v1568 = vpop.f32.mrb[0].mxu0
    %v1569 = vpop.f32.mrb[0].mxu0
    %v1570 = vadd.f32 %v1403, %v1569
    %v1571 = vpop.f32.mrb[0].mxu0
    %1572 = vmatprep.mubr.bf16.mxu0 0
    %1573 = vmatmul.mubr.bf16.gmra.mrb[0].mxu0 %v1443
    %v1574 = vpop.f32.mrb[0].mxu0
    %v1575 = vadd.f32 %v1403, %v1574
    %v1576 = vpop.f32.mrb[0].mxu0
    %v1577 = vpop.f32.mrb[0].mxu0
    %v1578 = vadd.f32 %v1403, %v1577
    %v1579 = vpop.f32.mrb[0].mxu0
    %1580 = vmatprep.mubr.bf16.mxu0 0
    %1581 = vmatmul.mubr.bf16.gmra.mrb[0].mxu0 %v1446
    %v1582 = vpop.f32.mrb[0].mxu0
    %v1583 = vadd.f32 %v1403, %v1582
    %v1584 = vpop.f32.mrb[0].mxu0
    %v1585 = vpop.f32.mrb[0].mxu0
    %v1586 = vadd.f32 %v1403, %v1585
    %v1587 = vpop.f32.mrb[0].mxu0
    %1588 = vmatprep.mubr.bf16.mxu0 0
    %1589 = vmatmul.mubr.bf16.gmra.mrb[0].mxu0 %v1449
    %v1590 = vpop.f32.mrb[0].mxu0
    %v1591 = vadd.f32 %v1403, %v1590
    %v1592 = vpop.f32.mrb[0].mxu0
    %v1593 = vpop.f32.mrb[0].mxu0
    %v1594 = vadd.f32 %v1403, %v1593
    %v1595 = vpop.f32.mrb[0].mxu0
    %1596 = vmatprep.mubr.bf16.mxu0 0
    %1597 = vmatmul.mubr.bf16.gmra.mrb[0].mxu0 %v1452
    %v1598 = vpop.f32.mrb[0].mxu0
    %v1599 = vadd.f32 %v1403, %v1598
    %v1600 = vpop.f32.mrb[0].mxu0
    %v1601 = vpop.f32.mrb[0].mxu0
    %v1602 = vadd.f32 %v1403, %v1601
    %v1603 = vpop.f32.mrb[0].mxu0
    %1604 = vmatprep.mubr.bf16.mxu0 0
    %1605 = vmatmul.mubr.bf16.gmra.mrb[0].mxu0 %v1455
    %v1606 = vpop.f32.mrb[0].mxu0
    %v1607 = vadd.f32 %v1403, %v1606
    %v1608 = vpop.f32.mrb[0].mxu0
    %v1609 = vpop.f32.mrb[0].mxu0
    %v1610 = vadd.f32 %v1403, %v1609
    %v1611 = vpop.f32.mrb[0].mxu0
    %1612 = vmatprep.mubr.bf16.mxu0 0
    %1613 = vmatmul.mubr.bf16.gmra.mrb[0].mxu0 %v1458
    %v1614 = vpop.f32.mrb[0].mxu0
    %v1615 = vadd.f32 %v1403, %v1614
    %v1616 = vpop.f32.mrb[0].mxu0
    %v1617 = vpop.f32.mrb[0].mxu0
    %v1618 = vadd.f32 %v1403, %v1617
    %v1619 = vpop.f32.mrb[0].mxu0
    %1620 = vdwg.mxu0
    %v1621 = vmax.f32 %v1495, 0.0
    %v1622 = vmax.f32 %v1498, 0.0
    %v1623 = vmax.f32 %v1503, 0.0
    %v1624 = vmax.f32 %v1506, 0.0
    %v1625 = vmax.f32 %v1511, 0.0
    %v1626 = vmax.f32 %v1514, 0.0
    %v1627 = vmax.f32 %v1519, 0.0
    %v1628 = vmax.f32 %v1522, 0.0
    %v1629 = vmax.f32 %v1527, 0.0
    %v1630 = vmax.f32 %v1530, 0.0
    %v1631 = vmax.f32 %v1535, 0.0
    %v1632 = vmax.f32 %v1538, 0.0
    %v1633 = vmax.f32 %v1543, 0.0
    %v1634 = vmax.f32 %v1546, 0.0
    %v1635 = vmax.f32 %v1551, 0.0
    %v1636 = vmax.f32 %v1554, 0.0
    %v1637 = vmax.f32 %v1559, 0.0
    %v1638 = vmax.f32 %v1562, 0.0
    %v1639 = vmax.f32 %v1567, 0.0
    %v1640 = vmax.f32 %v1570, 0.0
    %v1641 = vmax.f32 %v1575, 0.0
    %v1642 = vmax.f32 %v1578, 0.0
    %v1643 = vmax.f32 %v1583, 0.0
    %v1644 = vmax.f32 %v1586, 0.0
    %v1645 = vmax.f32 %v1591, 0.0
    %v1646 = vmax.f32 %v1594, 0.0
    %v1647 = vmax.f32 %v1599, 0.0
    %v1648 = vmax.f32 %v1602, 0.0
    %v1649 = vmax.f32 %v1607, 0.0
    %v1650 = vmax.f32 %v1610, 0.0
    %v1651 = vmax.f32 %v1615, 0.0
    %v1652 = vmax.f32 %v1618, 0.0
    %v1653 = vpack.c.bf16 %v1622, %v1621
    %v1654 = vpack.c.bf16 %v1624, %v1623
    %v1655 = vpack.c.bf16 %v1626, %v1625
    %v1656 = vpack.c.bf16 %v1628, %v1627
    %v1657 = vpack.c.bf16 %v1630, %v1629
    %v1658 = vpack.c.bf16 %v1632, %v1631
    %v1659 = vpack.c.bf16 %v1634, %v1633
    %v1660 = vpack.c.bf16 %v1636, %v1635
    %v1661 = vpack.c.bf16 %v1638, %v1637
    %v1662 = vpack.c.bf16 %v1640, %v1639
    %v1663 = vpack.c.bf16 %v1642, %v1641
    %v1664 = vpack.c.bf16 %v1644, %v1643
    %v1665 = vpack.c.bf16 %v1646, %v1645
    %v1666 = vpack.c.bf16 %v1648, %v1647
    %v1667 = vpack.c.bf16 %v1650, %v1649
    %v1668 = vpack.c.bf16 %v1652, %v1651
    %v1669 = vld [vmem:[#allocation2] sm:$0xff]
    %v1670 = vld [vmem:[#allocation2 + $0x8] sm:$0xff]
    %v1671 = vld [vmem:[#allocation2 + $0x10] sm:$0xff]
    %v1672 = vld [vmem:[#allocation2 + $0x18] sm:$0xff]
    %v1673 = vld [vmem:[#allocation2 + $0x20] sm:$0xff]
    %v1674 = vld [vmem:[#allocation2 + $0x28] sm:$0xff]
    %v1675 = vld [vmem:[#allocation2 + $0x30] sm:$0xff]
    %v1676 = vld [vmem:[#allocation2 + $0x38] sm:$0xff]
    %v1677 = vld [vmem:[#allocation2 + $0x40] sm:$0xff]
    %v1678 = vld [vmem:[#allocation2 + $0x48] sm:$0xff]
    %v1679 = vld [vmem:[#allocation2 + $0x50] sm:$0xff]
    %v1680 = vld [vmem:[#allocation2 + $0x58] sm:$0xff]
    %v1681 = vld [vmem:[#allocation2 + $0x60] sm:$0xff]
    %v1682 = vld [vmem:[#allocation2 + $0x68] sm:$0xff]
    %v1683 = vld [vmem:[#allocation2 + $0x70] sm:$0xff]
    %v1684 = vld [vmem:[#allocation2 + $0x78] sm:$0xff]
    %v1685 = vld [vmem:[%s11] sm:$0x3]
    %v1687 = vlaneseq
    %v1688 = vshrl.u32 %v1687, 7
    %v1689 = vsub.s32 0, %v1688
    %v1690 = vrot.slane %v1685, %v1689
    %v1691 = vlaneseq
    %v1692 = vshrl.u32 %v1691, 7
    %v1693 = vsub.s32 1, %v1692
    %v1694 = vrot.slane %v1685, %v1693
    %v1713 = vunpack.c.l.b16 %v1669
    %v1714 = vunpack.c.h.b16 %v1669
    %v1715 = vunpack.c.l.b16 %v1670
    %v1716 = vunpack.c.h.b16 %v1670
    %v1717 = vunpack.c.l.b16 %v1671
    %v1718 = vunpack.c.h.b16 %v1671
    %v1719 = vunpack.c.l.b16 %v1672
    %v1720 = vunpack.c.h.b16 %v1672
    %v1721 = vunpack.c.l.b16 %v1673
    %v1722 = vunpack.c.h.b16 %v1673
    %v1723 = vunpack.c.l.b16 %v1674
    %v1724 = vunpack.c.h.b16 %v1674
    %v1725 = vunpack.c.l.b16 %v1675
    %v1726 = vunpack.c.h.b16 %v1675
    %v1727 = vunpack.c.l.b16 %v1676
    %v1728 = vunpack.c.h.b16 %v1676
    %v1729 = vunpack.c.l.b16 %v1677
    %v1730 = vunpack.c.h.b16 %v1677
    %v1731 = vunpack.c.l.b16 %v1678
    %v1732 = vunpack.c.h.b16 %v1678
    %v1733 = vunpack.c.l.b16 %v1679
    %v1734 = vunpack.c.h.b16 %v1679
    %v1735 = vunpack.c.l.b16 %v1680
    %v1736 = vunpack.c.h.b16 %v1680
    %v1737 = vunpack.c.l.b16 %v1681
    %v1738 = vunpack.c.h.b16 %v1681
    %v1739 = vunpack.c.l.b16 %v1682
    %v1740 = vunpack.c.h.b16 %v1682
    %v1741 = vunpack.c.l.b16 %v1683
    %v1742 = vunpack.c.h.b16 %v1683
    %v1743 = vunpack.c.l.b16 %v1684
    %v1744 = vunpack.c.h.b16 %v1684
    %v1745 = vpack.c.b16 %v1715, %v1713
    %v1746 = vpack.c.b16 %v1716, %v1714
    %v1747 = vpack.c.b16 %v1719, %v1717
    %v1748 = vpack.c.b16 %v1720, %v1718
    %v1749 = vpack.c.b16 %v1723, %v1721
    %v1750 = vpack.c.b16 %v1724, %v1722
    %v1751 = vpack.c.b16 %v1727, %v1725
    %v1752 = vpack.c.b16 %v1728, %v1726
    %v1753 = vpack.c.b16 %v1731, %v1729
    %v1754 = vpack.c.b16 %v1732, %v1730
    %v1755 = vpack.c.b16 %v1735, %v1733
    %v1756 = vpack.c.b16 %v1736, %v1734
    %v1757 = vpack.c.b16 %v1739, %v1737
    %v1758 = vpack.c.b16 %v1740, %v1738
    %v1759 = vpack.c.b16 %v1743, %v1741
    %v1760 = vpack.c.b16 %v1744, %v1742
    %1777 = vmatprep.subr.bf16.mxu0 %v1746
    %1778 = vmatpush1.bf16.msra.mxu0 %v1745
    %1779 = vmatprep.subr.bf16.mxu0 %v1748
    %1780 = vmatpush1.bf16.msra.mxu0 %v1747
    %1781 = vmatprep.subr.bf16.mxu0 %v1750
    %1782 = vmatpush1.bf16.msra.mxu0 %v1749
    %1783 = vmatprep.subr.bf16.mxu0 %v1752
    %1784 = vmatpush1.bf16.msra.mxu0 %v1751
    %1785 = vmatprep.subr.bf16.mxu0 %v1754
    %1786 = vmatpush1.bf16.msra.mxu0 %v1753
    %1787 = vmatprep.subr.bf16.mxu0 %v1756
    %1788 = vmatpush1.bf16.msra.mxu0 %v1755
    %1789 = vmatprep.subr.bf16.mxu0 %v1758
    %1790 = vmatpush1.bf16.msra.mxu0 %v1757
    %1791 = vmatprep.subr.bf16.mxu0 %v1760
    %1792 = vmatpush1.bf16.msra.mxu0 %v1759
    %1793 = vmatprep.subr.bf16.mxu0 0
    %1794 = vmatpush1.bf16.msra.mxu0 0
    %1795 = vmatprep.subr.bf16.mxu0 0
    %1796 = vmatpush1.bf16.msra.mxu0 0
    %1797 = vmatprep.subr.bf16.mxu0 0
    %1798 = vmatpush1.bf16.msra.mxu0 0
    %1799 = vmatprep.subr.bf16.mxu0 0
    %1800 = vmatpush1.bf16.msra.mxu0 0
    %1801 = vmatprep.subr.bf16.mxu0 0
    %1802 = vmatpush1.bf16.msra.mxu0 0
    %1803 = vmatprep.subr.bf16.mxu0 0
    %1804 = vmatpush1.bf16.msra.mxu0 0
    %1805 = vmatprep.subr.bf16.mxu0 0
    %1806 = vmatpush1.bf16.msra.mxu0 0
    %1807 = vmatprep.subr.bf16.mxu0 0
    %1808 = vmatpush1.bf16.msra.mxu0 0
    %1809 = vmatprep.mubr.bf16.mxu0 0
    %1810 = vmatmul.mubr.bf16.gmra.mrb[0].mxu0 %v1653
    %v1811 = vpop.f32.mrb[0].mxu0
    %v1812 = vadd.f32 %v1690, %v1811
    %v1813 = vpop.f32.mrb[0].mxu0
    %v1814 = vadd.f32 %v1694, %v1813
    %v1815 = vpop.f32.mrb[0].mxu0
    %v1816 = vadd.f32 %v1690, %v1815
    %v1817 = vpop.f32.mrb[0].mxu0
    %v1818 = vadd.f32 %v1694, %v1817
    %1819 = vmatprep.mubr.bf16.mxu0 0
    %1820 = vmatmul.mubr.bf16.gmra.mrb[0].mxu0 %v1654
    %v1821 = vpop.f32.mrb[0].mxu0
    %v1822 = vadd.f32 %v1690, %v1821
    %v1823 = vpop.f32.mrb[0].mxu0
    %v1824 = vadd.f32 %v1694, %v1823
    %v1825 = vpop.f32.mrb[0].mxu0
    %v1826 = vadd.f32 %v1690, %v1825
    %v1827 = vpop.f32.mrb[0].mxu0
    %v1828 = vadd.f32 %v1694, %v1827
    %1829 = vmatprep.mubr.bf16.mxu0 0
    %1830 = vmatmul.mubr.bf16.gmra.mrb[0].mxu0 %v1655
    %v1831 = vpop.f32.mrb[0].mxu0
    %v1832 = vadd.f32 %v1690, %v1831
    %v1833 = vpop.f32.mrb[0].mxu0
    %v1834 = vadd.f32 %v1694, %v1833
    %v1835 = vpop.f32.mrb[0].mxu0
    %v1836 = vadd.f32 %v1690, %v1835
    %v1837 = vpop.f32.mrb[0].mxu0
    %v1838 = vadd.f32 %v1694, %v1837
    %1839 = vmatprep.mubr.bf16.mxu0 0
    %1840 = vmatmul.mubr.bf16.gmra.mrb[0].mxu0 %v1656
    %v1841 = vpop.f32.mrb[0].mxu0
    %v1842 = vadd.f32 %v1690, %v1841
    %v1843 = vpop.f32.mrb[0].mxu0
    %v1844 = vadd.f32 %v1694, %v1843
    %v1845 = vpop.f32.mrb[0].mxu0
    %v1846 = vadd.f32 %v1690, %v1845
    %v1847 = vpop.f32.mrb[0].mxu0
    %v1848 = vadd.f32 %v1694, %v1847
    %1849 = vmatprep.mubr.bf16.mxu0 0
    %1850 = vmatmul.mubr.bf16.gmra.mrb[0].mxu0 %v1657
    %v1851 = vpop.f32.mrb[0].mxu0
    %v1852 = vadd.f32 %v1690, %v1851
    %v1853 = vpop.f32.mrb[0].mxu0
    %v1854 = vadd.f32 %v1694, %v1853
    %v1855 = vpop.f32.mrb[0].mxu0
    %v1856 = vadd.f32 %v1690, %v1855
    %v1857 = vpop.f32.mrb[0].mxu0
    %v1858 = vadd.f32 %v1694, %v1857
    %1859 = vmatprep.mubr.bf16.mxu0 0
    %1860 = vmatmul.mubr.bf16.gmra.mrb[0].mxu0 %v1658
    %v1861 = vpop.f32.mrb[0].mxu0
    %v1862 = vadd.f32 %v1690, %v1861
    %v1863 = vpop.f32.mrb[0].mxu0
    %v1864 = vadd.f32 %v1694, %v1863
    %v1865 = vpop.f32.mrb[0].mxu0
    %v1866 = vadd.f32 %v1690, %v1865
    %v1867 = vpop.f32.mrb[0].mxu0
    %v1868 = vadd.f32 %v1694, %v1867
    %1869 = vmatprep.mubr.bf16.mxu0 0
    %1870 = vmatmul.mubr.bf16.gmra.mrb[0].mxu0 %v1659
    %v1871 = vpop.f32.mrb[0].mxu0
    %v1872 = vadd.f32 %v1690, %v1871
    %v1873 = vpop.f32.mrb[0].mxu0
    %v1874 = vadd.f32 %v1694, %v1873
    %v1875 = vpop.f32.mrb[0].mxu0
    %v1876 = vadd.f32 %v1690, %v1875
    %v1877 = vpop.f32.mrb[0].mxu0
    %v1878 = vadd.f32 %v1694, %v1877
    %1879 = vmatprep.mubr.bf16.mxu0 0
    %1880 = vmatmul.mubr.bf16.gmra.mrb[0].mxu0 %v1660
    %v1881 = vpop.f32.mrb[0].mxu0
    %v1882 = vadd.f32 %v1690, %v1881
    %v1883 = vpop.f32.mrb[0].mxu0
    %v1884 = vadd.f32 %v1694, %v1883
    %v1885 = vpop.f32.mrb[0].mxu0
    %v1886 = vadd.f32 %v1690, %v1885
    %v1887 = vpop.f32.mrb[0].mxu0
    %v1888 = vadd.f32 %v1694, %v1887
    %1889 = vmatprep.mubr.bf16.mxu0 0
    %1890 = vmatmul.mubr.bf16.gmra.mrb[0].mxu0 %v1661
    %v1891 = vpop.f32.mrb[0].mxu0
    %v1892 = vadd.f32 %v1690, %v1891
    %v1893 = vpop.f32.mrb[0].mxu0
    %v1894 = vadd.f32 %v1694, %v1893
    %v1895 = vpop.f32.mrb[0].mxu0
    %v1896 = vadd.f32 %v1690, %v1895
    %v1897 = vpop.f32.mrb[0].mxu0
    %v1898 = vadd.f32 %v1694, %v1897
    %1899 = vmatprep.mubr.bf16.mxu0 0
    %1900 = vmatmul.mubr.bf16.gmra.mrb[0].mxu0 %v1662
    %v1901 = vpop.f32.mrb[0].mxu0
    %v1902 = vadd.f32 %v1690, %v1901
    %v1903 = vpop.f32.mrb[0].mxu0
    %v1904 = vadd.f32 %v1694, %v1903
    %v1905 = vpop.f32.mrb[0].mxu0
    %v1906 = vadd.f32 %v1690, %v1905
    %v1907 = vpop.f32.mrb[0].mxu0
    %v1908 = vadd.f32 %v1694, %v1907
    %1909 = vmatprep.mubr.bf16.mxu0 0
    %1910 = vmatmul.mubr.bf16.gmra.mrb[0].mxu0 %v1663
    %v1911 = vpop.f32.mrb[0].mxu0
    %v1912 = vadd.f32 %v1690, %v1911
    %v1913 = vpop.f32.mrb[0].mxu0
    %v1914 = vadd.f32 %v1694, %v1913
    %v1915 = vpop.f32.mrb[0].mxu0
    %v1916 = vadd.f32 %v1690, %v1915
    %v1917 = vpop.f32.mrb[0].mxu0
    %v1918 = vadd.f32 %v1694, %v1917
    %1919 = vmatprep.mubr.bf16.mxu0 0
    %1920 = vmatmul.mubr.bf16.gmra.mrb[0].mxu0 %v1664
    %v1921 = vpop.f32.mrb[0].mxu0
    %v1922 = vadd.f32 %v1690, %v1921
    %v1923 = vpop.f32.mrb[0].mxu0
    %v1924 = vadd.f32 %v1694, %v1923
    %v1925 = vpop.f32.mrb[0].mxu0
    %v1926 = vadd.f32 %v1690, %v1925
    %v1927 = vpop.f32.mrb[0].mxu0
    %v1928 = vadd.f32 %v1694, %v1927
    %1929 = vmatprep.mubr.bf16.mxu0 0
    %1930 = vmatmul.mubr.bf16.gmra.mrb[0].mxu0 %v1665
    %v1931 = vpop.f32.mrb[0].mxu0
    %v1932 = vadd.f32 %v1690, %v1931
    %v1933 = vpop.f32.mrb[0].mxu0
    %v1934 = vadd.f32 %v1694, %v1933
    %v1935 = vpop.f32.mrb[0].mxu0
    %v1936 = vadd.f32 %v1690, %v1935
    %v1937 = vpop.f32.mrb[0].mxu0
    %v1938 = vadd.f32 %v1694, %v1937
    %1939 = vmatprep.mubr.bf16.mxu0 0
    %1940 = vmatmul.mubr.bf16.gmra.mrb[0].mxu0 %v1666
    %v1941 = vpop.f32.mrb[0].mxu0
    %v1942 = vadd.f32 %v1690, %v1941
    %v1943 = vpop.f32.mrb[0].mxu0
    %v1944 = vadd.f32 %v1694, %v1943
    %v1945 = vpop.f32.mrb[0].mxu0
    %v1946 = vadd.f32 %v1690, %v1945
    %v1947 = vpop.f32.mrb[0].mxu0
    %v1948 = vadd.f32 %v1694, %v1947
    %1949 = vmatprep.mubr.bf16.mxu0 0
    %1950 = vmatmul.mubr.bf16.gmra.mrb[0].mxu0 %v1667
    %v1951 = vpop.f32.mrb[0].mxu0
    %v1952 = vadd.f32 %v1690, %v1951
    %v1953 = vpop.f32.mrb[0].mxu0
    %v1954 = vadd.f32 %v1694, %v1953
    %v1955 = vpop.f32.mrb[0].mxu0
    %v1956 = vadd.f32 %v1690, %v1955
    %v1957 = vpop.f32.mrb[0].mxu0
    %v1958 = vadd.f32 %v1694, %v1957
    %1959 = vmatprep.mubr.bf16.mxu0 0
    %1960 = vmatmul.mubr.bf16.gmra.mrb[0].mxu0 %v1668
    %v1961 = vpop.f32.mrb[0].mxu0
    %v1962 = vadd.f32 %v1690, %v1961
    %v1963 = vpop.f32.mrb[0].mxu0
    %v1964 = vadd.f32 %v1694, %v1963
    %v1965 = vpop.f32.mrb[0].mxu0
    %v1966 = vadd.f32 %v1690, %v1965
    %v1967 = vpop.f32.mrb[0].mxu0
    %v1968 = vadd.f32 %v1694, %v1967
    %1969 = vdwg.mxu0
    %v1970 = vand.u32 2147483647, %v1812
    %v1971 = vand.u32 2147483647, %v1814
    %v1972 = vand.u32 2147483647, %v1816
    %v1973 = vand.u32 2147483647, %v1818
    %v1974 = vand.u32 2147483647, %v1822
    %v1975 = vand.u32 2147483647, %v1824
    %v1976 = vand.u32 2147483647, %v1826
    %v1977 = vand.u32 2147483647, %v1828
    %v1978 = vand.u32 2147483647, %v1832
    %v1979 = vand.u32 2147483647, %v1834
    %v1980 = vand.u32 2147483647, %v1836
    %v1981 = vand.u32 2147483647, %v1838
    %v1982 = vand.u32 2147483647, %v1842
    %v1983 = vand.u32 2147483647, %v1844
    %v1984 = vand.u32 2147483647, %v1846
    %v1985 = vand.u32 2147483647, %v1848
    %v1986 = vand.u32 2147483647, %v1852
    %v1987 = vand.u32 2147483647, %v1854
    %v1988 = vand.u32 2147483647, %v1856
    %v1989 = vand.u32 2147483647, %v1858
    %v1990 = vand.u32 2147483647, %v1862
    %v1991 = vand.u32 2147483647, %v1864
    %v1992 = vand.u32 2147483647, %v1866
    %v1993 = vand.u32 2147483647, %v1868
    %v1994 = vand.u32 2147483647, %v1872
    %v1995 = vand.u32 2147483647, %v1874
    %v1996 = vand.u32 2147483647, %v1876
    %v1997 = vand.u32 2147483647, %v1878
    %v1998 = vand.u32 2147483647, %v1882
    %v1999 = vand.u32 2147483647, %v1884
    %v2000 = vand.u32 2147483647, %v1886
    %v2001 = vand.u32 2147483647, %v1888
    %v2002 = vand.u32 2147483647, %v1892
    %v2003 = vand.u32 2147483647, %v1894
    %v2004 = vand.u32 2147483647, %v1896
    %v2005 = vand.u32 2147483647, %v1898
    %v2006 = vand.u32 2147483647, %v1902
    %v2007 = vand.u32 2147483647, %v1904
    %v2008 = vand.u32 2147483647, %v1906
    %v2009 = vand.u32 2147483647, %v1908
    %v2010 = vand.u32 2147483647, %v1912
    %v2011 = vand.u32 2147483647, %v1914
    %v2012 = vand.u32 2147483647, %v1916
    %v2013 = vand.u32 2147483647, %v1918
    %v2014 = vand.u32 2147483647, %v1922
    %v2015 = vand.u32 2147483647, %v1924
    %v2016 = vand.u32 2147483647, %v1926
    %v2017 = vand.u32 2147483647, %v1928
    %v2018 = vand.u32 2147483647, %v1932
    %v2019 = vand.u32 2147483647, %v1934
    %v2020 = vand.u32 2147483647, %v1936
    %v2021 = vand.u32 2147483647, %v1938
    %v2022 = vand.u32 2147483647, %v1942
    %v2023 = vand.u32 2147483647, %v1944
    %v2024 = vand.u32 2147483647, %v1946
    %v2025 = vand.u32 2147483647, %v1948
    %v2026 = vand.u32 2147483647, %v1952
    %v2027 = vand.u32 2147483647, %v1954
    %v2028 = vand.u32 2147483647, %v1956
    %v2029 = vand.u32 2147483647, %v1958
    %v2030 = vand.u32 2147483647, %v1962
    %v2031 = vand.u32 2147483647, %v1964
    %v2032 = vand.u32 2147483647, %v1966
    %v2033 = vand.u32 2147483647, %v1968
    %v2034 = vsub.f32 0.0, %v1970
    %v2035 = vsub.f32 0.0, %v1971
    %v2036 = vsub.f32 0.0, %v1972
    %v2037 = vsub.f32 0.0, %v1973
    %v2038 = vsub.f32 0.0, %v1974
    %v2039 = vsub.f32 0.0, %v1975
    %v2040 = vsub.f32 0.0, %v1976
    %v2041 = vsub.f32 0.0, %v1977
    %v2042 = vsub.f32 0.0, %v1978
    %v2043 = vsub.f32 0.0, %v1979
    %v2044 = vsub.f32 0.0, %v1980
    %v2045 = vsub.f32 0.0, %v1981
    %v2046 = vsub.f32 0.0, %v1982
    %v2047 = vsub.f32 0.0, %v1983
    %v2048 = vsub.f32 0.0, %v1984
    %v2049 = vsub.f32 0.0, %v1985
    %v2050 = vsub.f32 0.0, %v1986
    %v2051 = vsub.f32 0.0, %v1987
    %v2052 = vsub.f32 0.0, %v1988
    %v2053 = vsub.f32 0.0, %v1989
    %v2054 = vsub.f32 0.0, %v1990
    %v2055 = vsub.f32 0.0, %v1991
    %v2056 = vsub.f32 0.0, %v1992
    %v2057 = vsub.f32 0.0, %v1993
    %v2058 = vsub.f32 0.0, %v1994
    %v2059 = vsub.f32 0.0, %v1995
    %v2060 = vsub.f32 0.0, %v1996
    %v2061 = vsub.f32 0.0, %v1997
    %v2062 = vsub.f32 0.0, %v1998
    %v2063 = vsub.f32 0.0, %v1999
    %v2064 = vsub.f32 0.0, %v2000
    %v2065 = vsub.f32 0.0, %v2001
    %v2066 = vsub.f32 0.0, %v2002
    %v2067 = vsub.f32 0.0, %v2003
    %v2068 = vsub.f32 0.0, %v2004
    %v2069 = vsub.f32 0.0, %v2005
    %v2070 = vsub.f32 0.0, %v2006
    %v2071 = vsub.f32 0.0, %v2007
    %v2072 = vsub.f32 0.0, %v2008
    %v2073 = vsub.f32 0.0, %v2009
    %v2074 = vsub.f32 0.0, %v2010
    %v2075 = vsub.f32 0.0, %v2011
    %v2076 = vsub.f32 0.0, %v2012
    %v2077 = vsub.f32 0.0, %v2013
    %v2078 = vsub.f32 0.0, %v2014
    %v2079 = vsub.f32 0.0, %v2015
    %v2080 = vsub.f32 0.0, %v2016
    %v2081 = vsub.f32 0.0, %v2017
    %v2082 = vsub.f32 0.0, %v2018
    %v2083 = vsub.f32 0.0, %v2019
    %v2084 = vsub.f32 0.0, %v2020
    %v2085 = vsub.f32 0.0, %v2021
    %v2086 = vsub.f32 0.0, %v2022
    %v2087 = vsub.f32 0.0, %v2023
    %v2088 = vsub.f32 0.0, %v2024
    %v2089 = vsub.f32 0.0, %v2025
    %v2090 = vsub.f32 0.0, %v2026
    %v2091 = vsub.f32 0.0, %v2027
    %v2092 = vsub.f32 0.0, %v2028
    %v2093 = vsub.f32 0.0, %v2029
    %v2094 = vsub.f32 0.0, %v2030
    %v2095 = vsub.f32 0.0, %v2031
    %v2096 = vsub.f32 0.0, %v2032
    %v2097 = vsub.f32 0.0, %v2033
    %v2098 = vmul.f32 %v2034, 1.442695
    %v2099 = vpow.pop %v2098
    %v2100 = vmul.f32 %v2035, 1.442695
    %v2101 = vpow.pop %v2100
    %v2102 = vmul.f32 %v2036, 1.442695
    %v2103 = vpow.pop %v2102
    %v2104 = vmul.f32 %v2037, 1.442695
    %v2105 = vpow.pop %v2104
    %v2106 = vmul.f32 %v2038, 1.442695
    %v2107 = vpow.pop %v2106
    %v2108 = vmul.f32 %v2039, 1.442695
    %v2109 = vpow.pop %v2108
    %v2110 = vmul.f32 %v2040, 1.442695
    %v2111 = vpow.pop %v2110
    %v2112 = vmul.f32 %v2041, 1.442695
    %v2113 = vpow.pop %v2112
    %v2114 = vmul.f32 %v2042, 1.442695
    %v2115 = vpow.pop %v2114
    %v2116 = vmul.f32 %v2043, 1.442695
    %v2117 = vpow.pop %v2116
    %v2118 = vmul.f32 %v2044, 1.442695
    %v2119 = vpow.pop %v2118
    %v2120 = vmul.f32 %v2045, 1.442695
    %v2121 = vpow.pop %v2120
    %v2122 = vmul.f32 %v2046, 1.442695
    %v2123 = vpow.pop %v2122
    %v2124 = vmul.f32 %v2047, 1.442695
    %v2125 = vpow.pop %v2124
    %v2126 = vmul.f32 %v2048, 1.442695
    %v2127 = vpow.pop %v2126
    %v2128 = vmul.f32 %v2049, 1.442695
    %v2129 = vpow.pop %v2128
    %v2130 = vmul.f32 %v2050, 1.442695
    %v2131 = vpow.pop %v2130
    %v2132 = vmul.f32 %v2051, 1.442695
    %v2133 = vpow.pop %v2132
    %v2134 = vmul.f32 %v2052, 1.442695
    %v2135 = vpow.pop %v2134
    %v2136 = vmul.f32 %v2053, 1.442695
    %v2137 = vpow.pop %v2136
    %v2138 = vmul.f32 %v2054, 1.442695
    %v2139 = vpow.pop %v2138
    %v2140 = vmul.f32 %v2055, 1.442695
    %v2141 = vpow.pop %v2140
    %v2142 = vmul.f32 %v2056, 1.442695
    %v2143 = vpow.pop %v2142
    %v2144 = vmul.f32 %v2057, 1.442695
    %v2145 = vpow.pop %v2144
    %v2146 = vmul.f32 %v2058, 1.442695
    %v2147 = vpow.pop %v2146
    %v2148 = vmul.f32 %v2059, 1.442695
    %v2149 = vpow.pop %v2148
    %v2150 = vmul.f32 %v2060, 1.442695
    %v2151 = vpow.pop %v2150
    %v2152 = vmul.f32 %v2061, 1.442695
    %v2153 = vpow.pop %v2152
    %v2154 = vmul.f32 %v2062, 1.442695
    %v2155 = vpow.pop %v2154
    %v2156 = vmul.f32 %v2063, 1.442695
    %v2157 = vpow.pop %v2156
    %v2158 = vmul.f32 %v2064, 1.442695
    %v2159 = vpow.pop %v2158
    %v2160 = vmul.f32 %v2065, 1.442695
    %v2161 = vpow.pop %v2160
    %v2162 = vmul.f32 %v2066, 1.442695
    %v2163 = vpow.pop %v2162
    %v2164 = vmul.f32 %v2067, 1.442695
    %v2165 = vpow.pop %v2164
    %v2166 = vmul.f32 %v2068, 1.442695
    %v2167 = vpow.pop %v2166
    %v2168 = vmul.f32 %v2069, 1.442695
    %v2169 = vpow.pop %v2168
    %v2170 = vmul.f32 %v2070, 1.442695
    %v2171 = vpow.pop %v2170
    %v2172 = vmul.f32 %v2071, 1.442695
    %v2173 = vpow.pop %v2172
    %v2174 = vmul.f32 %v2072, 1.442695
    %v2175 = vpow.pop %v2174
    %v2176 = vmul.f32 %v2073, 1.442695
    %v2177 = vpow.pop %v2176
    %v2178 = vmul.f32 %v2074, 1.442695
    %v2179 = vpow.pop %v2178
    %v2180 = vmul.f32 %v2075, 1.442695
    %v2181 = vpow.pop %v2180
    %v2182 = vmul.f32 %v2076, 1.442695
    %v2183 = vpow.pop %v2182
    %v2184 = vmul.f32 %v2077, 1.442695
    %v2185 = vpow.pop %v2184
    %v2186 = vmul.f32 %v2078, 1.442695
    %v2187 = vpow.pop %v2186
    %v2188 = vmul.f32 %v2079, 1.442695
    %v2189 = vpow.pop %v2188
    %v2190 = vmul.f32 %v2080, 1.442695
    %v2191 = vpow.pop %v2190
    %v2192 = vmul.f32 %v2081, 1.442695
    %v2193 = vpow.pop %v2192
    %v2194 = vmul.f32 %v2082, 1.442695
    %v2195 = vpow.pop %v2194
    %v2196 = vmul.f32 %v2083, 1.442695
    %v2197 = vpow.pop %v2196
    %v2198 = vmul.f32 %v2084, 1.442695
    %v2199 = vpow.pop %v2198
    %v2200 = vmul.f32 %v2085, 1.442695
    %v2201 = vpow.pop %v2200
    %v2202 = vmul.f32 %v2086, 1.442695
    %v2203 = vpow.pop %v2202
    %v2204 = vmul.f32 %v2087, 1.442695
    %v2205 = vpow.pop %v2204
    %v2206 = vmul.f32 %v2088, 1.442695
    %v2207 = vpow.pop %v2206
    %v2208 = vmul.f32 %v2089, 1.442695
    %v2209 = vpow.pop %v2208
    %v2210 = vmul.f32 %v2090, 1.442695
    %v2211 = vpow.pop %v2210
    %v2212 = vmul.f32 %v2091, 1.442695
    %v2213 = vpow.pop %v2212
    %v2214 = vmul.f32 %v2092, 1.442695
    %v2215 = vpow.pop %v2214
    %v2216 = vmul.f32 %v2093, 1.442695
    %v2217 = vpow.pop %v2216
    %v2218 = vmul.f32 %v2094, 1.442695
    %v2219 = vpow.pop %v2218
    %v2220 = vmul.f32 %v2095, 1.442695
    %v2221 = vpow.pop %v2220
    %v2222 = vmul.f32 %v2096, 1.442695
    %v2223 = vpow.pop %v2222
    %v2224 = vmul.f32 %v2097, 1.442695
    %v2225 = vpow.pop %v2224
    %v2226 = vmax.f32 %v1812, 0.0
    %v2227 = vmax.f32 %v1814, 0.0
    %v2228 = vmax.f32 %v1816, 0.0
    %v2229 = vmax.f32 %v1818, 0.0
    %v2230 = vmax.f32 %v1822, 0.0
    %v2231 = vmax.f32 %v1824, 0.0
    %v2232 = vmax.f32 %v1826, 0.0
    %v2233 = vmax.f32 %v1828, 0.0
    %v2234 = vmax.f32 %v1832, 0.0
    %v2235 = vmax.f32 %v1834, 0.0
    %v2236 = vmax.f32 %v1836, 0.0
    %v2237 = vmax.f32 %v1838, 0.0
    %v2238 = vmax.f32 %v1842, 0.0
    %v2239 = vmax.f32 %v1844, 0.0
    %v2240 = vmax.f32 %v1846, 0.0
    %v2241 = vmax.f32 %v1848, 0.0
    %v2242 = vmax.f32 %v1852, 0.0
    %v2243 = vmax.f32 %v1854, 0.0
    %v2244 = vmax.f32 %v1856, 0.0
    %v2245 = vmax.f32 %v1858, 0.0
    %v2246 = vmax.f32 %v1862, 0.0
    %v2247 = vmax.f32 %v1864, 0.0
    %v2248 = vmax.f32 %v1866, 0.0
    %v2249 = vmax.f32 %v1868, 0.0
    %v2250 = vmax.f32 %v1872, 0.0
    %v2251 = vmax.f32 %v1874, 0.0
    %v2252 = vmax.f32 %v1876, 0.0
    %v2253 = vmax.f32 %v1878, 0.0
    %v2254 = vmax.f32 %v1882, 0.0
    %v2255 = vmax.f32 %v1884, 0.0
    %v2256 = vmax.f32 %v1886, 0.0
    %v2257 = vmax.f32 %v1888, 0.0
    %v2258 = vmax.f32 %v1892, 0.0
    %v2259 = vmax.f32 %v1894, 0.0
    %v2260 = vmax.f32 %v1896, 0.0
    %v2261 = vmax.f32 %v1898, 0.0
    %v2262 = vmax.f32 %v1902, 0.0
    %v2263 = vmax.f32 %v1904, 0.0
    %v2264 = vmax.f32 %v1906, 0.0
    %v2265 = vmax.f32 %v1908, 0.0
    %v2266 = vmax.f32 %v1912, 0.0
    %v2267 = vmax.f32 %v1914, 0.0
    %v2268 = vmax.f32 %v1916, 0.0
    %v2269 = vmax.f32 %v1918, 0.0
    %v2270 = vmax.f32 %v1922, 0.0
    %v2271 = vmax.f32 %v1924, 0.0
    %v2272 = vmax.f32 %v1926, 0.0
    %v2273 = vmax.f32 %v1928, 0.0
    %v2274 = vmax.f32 %v1932, 0.0
    %v2275 = vmax.f32 %v1934, 0.0
    %v2276 = vmax.f32 %v1936, 0.0
    %v2277 = vmax.f32 %v1938, 0.0
    %v2278 = vmax.f32 %v1942, 0.0
    %v2279 = vmax.f32 %v1944, 0.0
    %v2280 = vmax.f32 %v1946, 0.0
    %v2281 = vmax.f32 %v1948, 0.0
    %v2282 = vmax.f32 %v1952, 0.0
    %v2283 = vmax.f32 %v1954, 0.0
    %v2284 = vmax.f32 %v1956, 0.0
    %v2285 = vmax.f32 %v1958, 0.0
    %v2286 = vmax.f32 %v1962, 0.0
    %v2287 = vmax.f32 %v1964, 0.0
    %v2288 = vmax.f32 %v1966, 0.0
    %v2289 = vmax.f32 %v1968, 0.0
    %v2290 = vadd.f32 %v2099, 1.0
    %v2291 = vadd.f32 %v2101, 1.0
    %v2292 = vadd.f32 %v2103, 1.0
    %v2293 = vadd.f32 %v2105, 1.0
    %v2294 = vadd.f32 %v2107, 1.0
    %v2295 = vadd.f32 %v2109, 1.0
    %v2296 = vadd.f32 %v2111, 1.0
    %v2297 = vadd.f32 %v2113, 1.0
    %v2298 = vadd.f32 %v2115, 1.0
    %v2299 = vadd.f32 %v2117, 1.0
    %v2300 = vadd.f32 %v2119, 1.0
    %v2301 = vadd.f32 %v2121, 1.0
    %v2302 = vadd.f32 %v2123, 1.0
    %v2303 = vadd.f32 %v2125, 1.0
    %v2304 = vadd.f32 %v2127, 1.0
    %v2305 = vadd.f32 %v2129, 1.0
    %v2306 = vadd.f32 %v2131, 1.0
    %v2307 = vadd.f32 %v2133, 1.0
    %v2308 = vadd.f32 %v2135, 1.0
    %v2309 = vadd.f32 %v2137, 1.0
    %v2310 = vadd.f32 %v2139, 1.0
    %v2311 = vadd.f32 %v2141, 1.0
    %v2312 = vadd.f32 %v2143, 1.0
    %v2313 = vadd.f32 %v2145, 1.0
    %v2314 = vadd.f32 %v2147, 1.0
    %v2315 = vadd.f32 %v2149, 1.0
    %v2316 = vadd.f32 %v2151, 1.0
    %v2317 = vadd.f32 %v2153, 1.0
    %v2318 = vadd.f32 %v2155, 1.0
    %v2319 = vadd.f32 %v2157, 1.0
    %v2320 = vadd.f32 %v2159, 1.0
    %v2321 = vadd.f32 %v2161, 1.0
    %v2322 = vadd.f32 %v2163, 1.0
    %v2323 = vadd.f32 %v2165, 1.0
    %v2324 = vadd.f32 %v2167, 1.0
    %v2325 = vadd.f32 %v2169, 1.0
    %v2326 = vadd.f32 %v2171, 1.0
    %v2327 = vadd.f32 %v2173, 1.0
    %v2328 = vadd.f32 %v2175, 1.0
    %v2329 = vadd.f32 %v2177, 1.0
    %v2330 = vadd.f32 %v2179, 1.0
    %v2331 = vadd.f32 %v2181, 1.0
    %v2332 = vadd.f32 %v2183, 1.0
    %v2333 = vadd.f32 %v2185, 1.0
    %v2334 = vadd.f32 %v2187, 1.0
    %v2335 = vadd.f32 %v2189, 1.0
    %v2336 = vadd.f32 %v2191, 1.0
    %v2337 = vadd.f32 %v2193, 1.0
    %v2338 = vadd.f32 %v2195, 1.0
    %v2339 = vadd.f32 %v2197, 1.0
    %v2340 = vadd.f32 %v2199, 1.0
    %v2341 = vadd.f32 %v2201, 1.0
    %v2342 = vadd.f32 %v2203, 1.0
    %v2343 = vadd.f32 %v2205, 1.0
    %v2344 = vadd.f32 %v2207, 1.0
    %v2345 = vadd.f32 %v2209, 1.0
    %v2346 = vadd.f32 %v2211, 1.0
    %v2347 = vadd.f32 %v2213, 1.0
    %v2348 = vadd.f32 %v2215, 1.0
    %v2349 = vadd.f32 %v2217, 1.0
    %v2350 = vadd.f32 %v2219, 1.0
    %v2351 = vadd.f32 %v2221, 1.0
    %v2352 = vadd.f32 %v2223, 1.0
    %v2353 = vadd.f32 %v2225, 1.0
    %v2354 = vlog2.pop %v2290
    %v2355 = vmul.f32 %v2354, 0.6931472
    %v2356 = vlog2.pop %v2291
    %v2357 = vmul.f32 %v2356, 0.6931472
    %v2358 = vlog2.pop %v2292
    %v2359 = vmul.f32 %v2358, 0.6931472
    %v2360 = vlog2.pop %v2293
    %v2361 = vmul.f32 %v2360, 0.6931472
    %v2362 = vlog2.pop %v2294
    %v2363 = vmul.f32 %v2362, 0.6931472
    %v2364 = vlog2.pop %v2295
    %v2365 = vmul.f32 %v2364, 0.6931472
    %v2366 = vlog2.pop %v2296
    %v2367 = vmul.f32 %v2366, 0.6931472
    %v2368 = vlog2.pop %v2297
    %v2369 = vmul.f32 %v2368, 0.6931472
    %v2370 = vlog2.pop %v2298
    %v2371 = vmul.f32 %v2370, 0.6931472
    %v2372 = vlog2.pop %v2299
    %v2373 = vmul.f32 %v2372, 0.6931472
    %v2374 = vlog2.pop %v2300
    %v2375 = vmul.f32 %v2374, 0.6931472
    %v2376 = vlog2.pop %v2301
    %v2377 = vmul.f32 %v2376, 0.6931472
    %v2378 = vlog2.pop %v2302
    %v2379 = vmul.f32 %v2378, 0.6931472
    %v2380 = vlog2.pop %v2303
    %v2381 = vmul.f32 %v2380, 0.6931472
    %v2382 = vlog2.pop %v2304
    %v2383 = vmul.f32 %v2382, 0.6931472
    %v2384 = vlog2.pop %v2305
    %v2385 = vmul.f32 %v2384, 0.6931472
    %v2386 = vlog2.pop %v2306
    %v2387 = vmul.f32 %v2386, 0.6931472
    %v2388 = vlog2.pop %v2307
    %v2389 = vmul.f32 %v2388, 0.6931472
    %v2390 = vlog2.pop %v2308
    %v2391 = vmul.f32 %v2390, 0.6931472
    %v2392 = vlog2.pop %v2309
    %v2393 = vmul.f32 %v2392, 0.6931472
    %v2394 = vlog2.pop %v2310
    %v2395 = vmul.f32 %v2394, 0.6931472
    %v2396 = vlog2.pop %v2311
    %v2397 = vmul.f32 %v2396, 0.6931472
    %v2398 = vlog2.pop %v2312
    %v2399 = vmul.f32 %v2398, 0.6931472
    %v2400 = vlog2.pop %v2313
    %v2401 = vmul.f32 %v2400, 0.6931472
    %v2402 = vlog2.pop %v2314
    %v2403 = vmul.f32 %v2402, 0.6931472
    %v2404 = vlog2.pop %v2315
    %v2405 = vmul.f32 %v2404, 0.6931472
    %v2406 = vlog2.pop %v2316
    %v2407 = vmul.f32 %v2406, 0.6931472
    %v2408 = vlog2.pop %v2317
    %v2409 = vmul.f32 %v2408, 0.6931472
    %v2410 = vlog2.pop %v2318
    %v2411 = vmul.f32 %v2410, 0.6931472
    %v2412 = vlog2.pop %v2319
    %v2413 = vmul.f32 %v2412, 0.6931472
    %v2414 = vlog2.pop %v2320
    %v2415 = vmul.f32 %v2414, 0.6931472
    %v2416 = vlog2.pop %v2321
    %v2417 = vmul.f32 %v2416, 0.6931472
    %v2418 = vlog2.pop %v2322
    %v2419 = vmul.f32 %v2418, 0.6931472
    %v2420 = vlog2.pop %v2323
    %v2421 = vmul.f32 %v2420, 0.6931472
    %v2422 = vlog2.pop %v2324
    %v2423 = vmul.f32 %v2422, 0.6931472
    %v2424 = vlog2.pop %v2325
    %v2425 = vmul.f32 %v2424, 0.6931472
    %v2426 = vlog2.pop %v2326
    %v2427 = vmul.f32 %v2426, 0.6931472
    %v2428 = vlog2.pop %v2327
    %v2429 = vmul.f32 %v2428, 0.6931472
    %v2430 = vlog2.pop %v2328
    %v2431 = vmul.f32 %v2430, 0.6931472
    %v2432 = vlog2.pop %v2329
    %v2433 = vmul.f32 %v2432, 0.6931472
    %v2434 = vlog2.pop %v2330
    %v2435 = vmul.f32 %v2434, 0.6931472
    %v2436 = vlog2.pop %v2331
    %v2437 = vmul.f32 %v2436, 0.6931472
    %v2438 = vlog2.pop %v2332
    %v2439 = vmul.f32 %v2438, 0.6931472
    %v2440 = vlog2.pop %v2333
    %v2441 = vmul.f32 %v2440, 0.6931472
    %v2442 = vlog2.pop %v2334
    %v2443 = vmul.f32 %v2442, 0.6931472
    %v2444 = vlog2.pop %v2335
    %v2445 = vmul.f32 %v2444, 0.6931472
    %v2446 = vlog2.pop %v2336
    %v2447 = vmul.f32 %v2446, 0.6931472
    %v2448 = vlog2.pop %v2337
    %v2449 = vmul.f32 %v2448, 0.6931472
    %v2450 = vlog2.pop %v2338
    %v2451 = vmul.f32 %v2450, 0.6931472
    %v2452 = vlog2.pop %v2339
    %v2453 = vmul.f32 %v2452, 0.6931472
    %v2454 = vlog2.pop %v2340
    %v2455 = vmul.f32 %v2454, 0.6931472
    %v2456 = vlog2.pop %v2341
    %v2457 = vmul.f32 %v2456, 0.6931472
    %v2458 = vlog2.pop %v2342
    %v2459 = vmul.f32 %v2458, 0.6931472
    %v2460 = vlog2.pop %v2343
    %v2461 = vmul.f32 %v2460, 0.6931472
    %v2462 = vlog2.pop %v2344
    %v2463 = vmul.f32 %v2462, 0.6931472
    %v2464 = vlog2.pop %v2345
    %v2465 = vmul.f32 %v2464, 0.6931472
    %v2466 = vlog2.pop %v2346
    %v2467 = vmul.f32 %v2466, 0.6931472
    %v2468 = vlog2.pop %v2347
    %v2469 = vmul.f32 %v2468, 0.6931472
    %v2470 = vlog2.pop %v2348
    %v2471 = vmul.f32 %v2470, 0.6931472
    %v2472 = vlog2.pop %v2349
    %v2473 = vmul.f32 %v2472, 0.6931472
    %v2474 = vlog2.pop %v2350
    %v2475 = vmul.f32 %v2474, 0.6931472
    %v2476 = vlog2.pop %v2351
    %v2477 = vmul.f32 %v2476, 0.6931472
    %v2478 = vlog2.pop %v2352
    %v2479 = vmul.f32 %v2478, 0.6931472
    %v2480 = vlog2.pop %v2353
    %v2481 = vmul.f32 %v2480, 0.6931472
    %v2482 = vadd.f32 %v2226, %v2355
    %v2483 = vadd.f32 %v2227, %v2357
    %v2484 = vadd.f32 %v2228, %v2359
    %v2485 = vadd.f32 %v2229, %v2361
    %v2486 = vadd.f32 %v2230, %v2363
    %v2487 = vadd.f32 %v2231, %v2365
    %v2488 = vadd.f32 %v2232, %v2367
    %v2489 = vadd.f32 %v2233, %v2369
    %v2490 = vadd.f32 %v2234, %v2371
    %v2491 = vadd.f32 %v2235, %v2373
    %v2492 = vadd.f32 %v2236, %v2375
    %v2493 = vadd.f32 %v2237, %v2377
    %v2494 = vadd.f32 %v2238, %v2379
    %v2495 = vadd.f32 %v2239, %v2381
    %v2496 = vadd.f32 %v2240, %v2383
    %v2497 = vadd.f32 %v2241, %v2385
    %v2498 = vadd.f32 %v2242, %v2387
    %v2499 = vadd.f32 %v2243, %v2389
    %v2500 = vadd.f32 %v2244, %v2391
    %v2501 = vadd.f32 %v2245, %v2393
    %v2502 = vadd.f32 %v2246, %v2395
    %v2503 = vadd.f32 %v2247, %v2397
    %v2504 = vadd.f32 %v2248, %v2399
    %v2505 = vadd.f32 %v2249, %v2401
    %v2506 = vadd.f32 %v2250, %v2403
    %v2507 = vadd.f32 %v2251, %v2405
    %v2508 = vadd.f32 %v2252, %v2407
    %v2509 = vadd.f32 %v2253, %v2409
    %v2510 = vadd.f32 %v2254, %v2411
    %v2511 = vadd.f32 %v2255, %v2413
    %v2512 = vadd.f32 %v2256, %v2415
    %v2513 = vadd.f32 %v2257, %v2417
    %v2514 = vadd.f32 %v2258, %v2419
    %v2515 = vadd.f32 %v2259, %v2421
    %v2516 = vadd.f32 %v2260, %v2423
    %v2517 = vadd.f32 %v2261, %v2425
    %v2518 = vadd.f32 %v2262, %v2427
    %v2519 = vadd.f32 %v2263, %v2429
    %v2520 = vadd.f32 %v2264, %v2431
    %v2521 = vadd.f32 %v2265, %v2433
    %v2522 = vadd.f32 %v2266, %v2435
    %v2523 = vadd.f32 %v2267, %v2437
    %v2524 = vadd.f32 %v2268, %v2439
    %v2525 = vadd.f32 %v2269, %v2441
    %v2526 = vadd.f32 %v2270, %v2443
    %v2527 = vadd.f32 %v2271, %v2445
    %v2528 = vadd.f32 %v2272, %v2447
    %v2529 = vadd.f32 %v2273, %v2449
    %v2530 = vadd.f32 %v2274, %v2451
    %v2531 = vadd.f32 %v2275, %v2453
    %v2532 = vadd.f32 %v2276, %v2455
    %v2533 = vadd.f32 %v2277, %v2457
    %v2534 = vadd.f32 %v2278, %v2459
    %v2535 = vadd.f32 %v2279, %v2461
    %v2536 = vadd.f32 %v2280, %v2463
    %v2537 = vadd.f32 %v2281, %v2465
    %v2538 = vadd.f32 %v2282, %v2467
    %v2539 = vadd.f32 %v2283, %v2469
    %v2540 = vadd.f32 %v2284, %v2471
    %v2541 = vadd.f32 %v2285, %v2473
    %v2542 = vadd.f32 %v2286, %v2475
    %v2543 = vadd.f32 %v2287, %v2477
    %v2544 = vadd.f32 %v2288, %v2479
    %v2545 = vadd.f32 %v2289, %v2481
    %v2546 = vsub.f32 %v1812, %v2482
    %v2547 = vsub.f32 %v1814, %v2483
    %v2548 = vsub.f32 %v1816, %v2484
    %v2549 = vsub.f32 %v1818, %v2485
    %v2550 = vsub.f32 %v1822, %v2486
    %v2551 = vsub.f32 %v1824, %v2487
    %v2552 = vsub.f32 %v1826, %v2488
    %v2553 = vsub.f32 %v1828, %v2489
    %v2554 = vsub.f32 %v1832, %v2490
    %v2555 = vsub.f32 %v1834, %v2491
    %v2556 = vsub.f32 %v1836, %v2492
    %v2557 = vsub.f32 %v1838, %v2493
    %v2558 = vsub.f32 %v1842, %v2494
    %v2559 = vsub.f32 %v1844, %v2495
    %v2560 = vsub.f32 %v1846, %v2496
    %v2561 = vsub.f32 %v1848, %v2497
    %v2562 = vsub.f32 %v1852, %v2498
    %v2563 = vsub.f32 %v1854, %v2499
    %v2564 = vsub.f32 %v1856, %v2500
    %v2565 = vsub.f32 %v1858, %v2501
    %v2566 = vsub.f32 %v1862, %v2502
    %v2567 = vsub.f32 %v1864, %v2503
    %v2568 = vsub.f32 %v1866, %v2504
    %v2569 = vsub.f32 %v1868, %v2505
    %v2570 = vsub.f32 %v1872, %v2506
    %v2571 = vsub.f32 %v1874, %v2507
    %v2572 = vsub.f32 %v1876, %v2508
    %v2573 = vsub.f32 %v1878, %v2509
    %v2574 = vsub.f32 %v1882, %v2510
    %v2575 = vsub.f32 %v1884, %v2511
    %v2576 = vsub.f32 %v1886, %v2512
    %v2577 = vsub.f32 %v1888, %v2513
    %v2578 = vsub.f32 %v1892, %v2514
    %v2579 = vsub.f32 %v1894, %v2515
    %v2580 = vsub.f32 %v1896, %v2516
    %v2581 = vsub.f32 %v1898, %v2517
    %v2582 = vsub.f32 %v1902, %v2518
    %v2583 = vsub.f32 %v1904, %v2519
    %v2584 = vsub.f32 %v1906, %v2520
    %v2585 = vsub.f32 %v1908, %v2521
    %v2586 = vsub.f32 %v1912, %v2522
    %v2587 = vsub.f32 %v1914, %v2523
    %v2588 = vsub.f32 %v1916, %v2524
    %v2589 = vsub.f32 %v1918, %v2525
    %v2590 = vsub.f32 %v1922, %v2526
    %v2591 = vsub.f32 %v1924, %v2527
    %v2592 = vsub.f32 %v1926, %v2528
    %v2593 = vsub.f32 %v1928, %v2529
    %v2594 = vsub.f32 %v1932, %v2530
    %v2595 = vsub.f32 %v1934, %v2531
    %v2596 = vsub.f32 %v1936, %v2532
    %v2597 = vsub.f32 %v1938, %v2533
    %v2598 = vsub.f32 %v1942, %v2534
    %v2599 = vsub.f32 %v1944, %v2535
    %v2600 = vsub.f32 %v1946, %v2536
    %v2601 = vsub.f32 %v1948, %v2537
    %v2602 = vsub.f32 %v1952, %v2538
    %v2603 = vsub.f32 %v1954, %v2539
    %v2604 = vsub.f32 %v1956, %v2540
    %v2605 = vsub.f32 %v1958, %v2541
    %v2606 = vsub.f32 %v1962, %v2542
    %v2607 = vsub.f32 %v1964, %v2543
    %v2608 = vsub.f32 %v1966, %v2544
    %v2609 = vsub.f32 %v1968, %v2545
    %v2610 = vsub.f32 0.0, %v2482
    %v2611 = vsub.f32 0.0, %v2483
    %v2612 = vsub.f32 0.0, %v2484
    %v2613 = vsub.f32 0.0, %v2485
    %v2614 = vsub.f32 0.0, %v2486
    %v2615 = vsub.f32 0.0, %v2487
    %v2616 = vsub.f32 0.0, %v2488
    %v2617 = vsub.f32 0.0, %v2489
    %v2618 = vsub.f32 0.0, %v2490
    %v2619 = vsub.f32 0.0, %v2491
    %v2620 = vsub.f32 0.0, %v2492
    %v2621 = vsub.f32 0.0, %v2493
    %v2622 = vsub.f32 0.0, %v2494
    %v2623 = vsub.f32 0.0, %v2495
    %v2624 = vsub.f32 0.0, %v2496
    %v2625 = vsub.f32 0.0, %v2497
    %v2626 = vsub.f32 0.0, %v2498
    %v2627 = vsub.f32 0.0, %v2499
    %v2628 = vsub.f32 0.0, %v2500
    %v2629 = vsub.f32 0.0, %v2501
    %v2630 = vsub.f32 0.0, %v2502
    %v2631 = vsub.f32 0.0, %v2503
    %v2632 = vsub.f32 0.0, %v2504
    %v2633 = vsub.f32 0.0, %v2505
    %v2634 = vsub.f32 0.0, %v2506
    %v2635 = vsub.f32 0.0, %v2507
    %v2636 = vsub.f32 0.0, %v2508
    %v2637 = vsub.f32 0.0, %v2509
    %v2638 = vsub.f32 0.0, %v2510
    %v2639 = vsub.f32 0.0, %v2511
    %v2640 = vsub.f32 0.0, %v2512
    %v2641 = vsub.f32 0.0, %v2513
    %v2642 = vsub.f32 0.0, %v2514
    %v2643 = vsub.f32 0.0, %v2515
    %v2644 = vsub.f32 0.0, %v2516
    %v2645 = vsub.f32 0.0, %v2517
    %v2646 = vsub.f32 0.0, %v2518
    %v2647 = vsub.f32 0.0, %v2519
    %v2648 = vsub.f32 0.0, %v2520
    %v2649 = vsub.f32 0.0, %v2521
    %v2650 = vsub.f32 0.0, %v2522
    %v2651 = vsub.f32 0.0, %v2523
    %v2652 = vsub.f32 0.0, %v2524
    %v2653 = vsub.f32 0.0, %v2525
    %v2654 = vsub.f32 0.0, %v2526
    %v2655 = vsub.f32 0.0, %v2527
    %v2656 = vsub.f32 0.0, %v2528
    %v2657 = vsub.f32 0.0, %v2529
    %v2658 = vsub.f32 0.0, %v2530
    %v2659 = vsub.f32 0.0, %v2531
    %v2660 = vsub.f32 0.0, %v2532
    %v2661 = vsub.f32 0.0, %v2533
    %v2662 = vsub.f32 0.0, %v2534
    %v2663 = vsub.f32 0.0, %v2535
    %v2664 = vsub.f32 0.0, %v2536
    %v2665 = vsub.f32 0.0, %v2537
    %v2666 = vsub.f32 0.0, %v2538
    %v2667 = vsub.f32 0.0, %v2539
    %v2668 = vsub.f32 0.0, %v2540
    %v2669 = vsub.f32 0.0, %v2541
    %v2670 = vsub.f32 0.0, %v2542
    %v2671 = vsub.f32 0.0, %v2543
    %v2672 = vsub.f32 0.0, %v2544
    %v2673 = vsub.f32 0.0, %v2545
    %v2674 = vmul.f32 %v2546, 1.442695
    %v2675 = vpow.pop %v2674
    %v2676 = vmul.f32 %v2547, 1.442695
    %v2677 = vpow.pop %v2676
    %v2678 = vmul.f32 %v2548, 1.442695
    %v2679 = vpow.pop %v2678
    %v2680 = vmul.f32 %v2549, 1.442695
    %v2681 = vpow.pop %v2680
    %v2682 = vmul.f32 %v2550, 1.442695
    %v2683 = vpow.pop %v2682
    %v2684 = vmul.f32 %v2551, 1.442695
    %v2685 = vpow.pop %v2684
    %v2686 = vmul.f32 %v2552, 1.442695
    %v2687 = vpow.pop %v2686
    %v2688 = vmul.f32 %v2553, 1.442695
    %v2689 = vpow.pop %v2688
    %v2690 = vmul.f32 %v2554, 1.442695
    %v2691 = vpow.pop %v2690
    %v2692 = vmul.f32 %v2555, 1.442695
    %v2693 = vpow.pop %v2692
    %v2694 = vmul.f32 %v2556, 1.442695
    %v2695 = vpow.pop %v2694
    %v2696 = vmul.f32 %v2557, 1.442695
    %v2697 = vpow.pop %v2696
    %v2698 = vmul.f32 %v2558, 1.442695
    %v2699 = vpow.pop %v2698
    %v2700 = vmul.f32 %v2559, 1.442695
    %v2701 = vpow.pop %v2700
    %v2702 = vmul.f32 %v2560, 1.442695
    %v2703 = vpow.pop %v2702
    %v2704 = vmul.f32 %v2561, 1.442695
    %v2705 = vpow.pop %v2704
    %v2706 = vmul.f32 %v2562, 1.442695
    %v2707 = vpow.pop %v2706
    %v2708 = vmul.f32 %v2563, 1.442695
    %v2709 = vpow.pop %v2708
    %v2710 = vmul.f32 %v2564, 1.442695
    %v2711 = vpow.pop %v2710
    %v2712 = vmul.f32 %v2565, 1.442695
    %v2713 = vpow.pop %v2712
    %v2714 = vmul.f32 %v2566, 1.442695
    %v2715 = vpow.pop %v2714
    %v2716 = vmul.f32 %v2567, 1.442695
    %v2717 = vpow.pop %v2716
    %v2718 = vmul.f32 %v2568, 1.442695
    %v2719 = vpow.pop %v2718
    %v2720 = vmul.f32 %v2569, 1.442695
    %v2721 = vpow.pop %v2720
    %v2722 = vmul.f32 %v2570, 1.442695
    %v2723 = vpow.pop %v2722
    %v2724 = vmul.f32 %v2571, 1.442695
    %v2725 = vpow.pop %v2724
    %v2726 = vmul.f32 %v2572, 1.442695
    %v2727 = vpow.pop %v2726
    %v2728 = vmul.f32 %v2573, 1.442695
    %v2729 = vpow.pop %v2728
    %v2730 = vmul.f32 %v2574, 1.442695
    %v2731 = vpow.pop %v2730
    %v2732 = vmul.f32 %v2575, 1.442695
    %v2733 = vpow.pop %v2732
    %v2734 = vmul.f32 %v2576, 1.442695
    %v2735 = vpow.pop %v2734
    %v2736 = vmul.f32 %v2577, 1.442695
    %v2737 = vpow.pop %v2736
    %v2738 = vmul.f32 %v2578, 1.442695
    %v2739 = vpow.pop %v2738
    %v2740 = vmul.f32 %v2579, 1.442695
    %v2741 = vpow.pop %v2740
    %v2742 = vmul.f32 %v2580, 1.442695
    %v2743 = vpow.pop %v2742
    %v2744 = vmul.f32 %v2581, 1.442695
    %v2745 = vpow.pop %v2744
    %v2746 = vmul.f32 %v2582, 1.442695
    %v2747 = vpow.pop %v2746
    %v2748 = vmul.f32 %v2583, 1.442695
    %v2749 = vpow.pop %v2748
    %v2750 = vmul.f32 %v2584, 1.442695
    %v2751 = vpow.pop %v2750
    %v2752 = vmul.f32 %v2585, 1.442695
    %v2753 = vpow.pop %v2752
    %v2754 = vmul.f32 %v2586, 1.442695
    %v2755 = vpow.pop %v2754
    %v2756 = vmul.f32 %v2587, 1.442695
    %v2757 = vpow.pop %v2756
    %v2758 = vmul.f32 %v2588, 1.442695
    %v2759 = vpow.pop %v2758
    %v2760 = vmul.f32 %v2589, 1.442695
    %v2761 = vpow.pop %v2760
    %v2762 = vmul.f32 %v2590, 1.442695
    %v2763 = vpow.pop %v2762
    %v2764 = vmul.f32 %v2591, 1.442695
    %v2765 = vpow.pop %v2764
    %v2766 = vmul.f32 %v2592, 1.442695
    %v2767 = vpow.pop %v2766
    %v2768 = vmul.f32 %v2593, 1.442695
    %v2769 = vpow.pop %v2768
    %v2770 = vmul.f32 %v2594, 1.442695
    %v2771 = vpow.pop %v2770
    %v2772 = vmul.f32 %v2595, 1.442695
    %v2773 = vpow.pop %v2772
    %v2774 = vmul.f32 %v2596, 1.442695
    %v2775 = vpow.pop %v2774
    %v2776 = vmul.f32 %v2597, 1.442695
    %v2777 = vpow.pop %v2776
    %v2778 = vmul.f32 %v2598, 1.442695
    %v2779 = vpow.pop %v2778
    %v2780 = vmul.f32 %v2599, 1.442695
    %v2781 = vpow.pop %v2780
    %v2782 = vmul.f32 %v2600, 1.442695
    %v2783 = vpow.pop %v2782
    %v2784 = vmul.f32 %v2601, 1.442695
    %v2785 = vpow.pop %v2784
    %v2786 = vmul.f32 %v2602, 1.442695
    %v2787 = vpow.pop %v2786
    %v2788 = vmul.f32 %v2603, 1.442695
    %v2789 = vpow.pop %v2788
    %v2790 = vmul.f32 %v2604, 1.442695
    %v2791 = vpow.pop %v2790
    %v2792 = vmul.f32 %v2605, 1.442695
    %v2793 = vpow.pop %v2792
    %v2794 = vmul.f32 %v2606, 1.442695
    %v2795 = vpow.pop %v2794
    %v2796 = vmul.f32 %v2607, 1.442695
    %v2797 = vpow.pop %v2796
    %v2798 = vmul.f32 %v2608, 1.442695
    %v2799 = vpow.pop %v2798
    %v2800 = vmul.f32 %v2609, 1.442695
    %v2801 = vpow.pop %v2800
    %v2802 = vpack.c.bf16 %v2679, %v2675
    %v2803 = vpack.c.bf16 %v2681, %v2677
    %v2804 = vpack.c.bf16 %v2687, %v2683
    %v2805 = vpack.c.bf16 %v2689, %v2685
    %v2806 = vpack.c.bf16 %v2695, %v2691
    %v2807 = vpack.c.bf16 %v2697, %v2693
    %v2808 = vpack.c.bf16 %v2703, %v2699
    %v2809 = vpack.c.bf16 %v2705, %v2701
    %v2810 = vpack.c.bf16 %v2711, %v2707
    %v2811 = vpack.c.bf16 %v2713, %v2709
    %v2812 = vpack.c.bf16 %v2719, %v2715
    %v2813 = vpack.c.bf16 %v2721, %v2717
    %v2814 = vpack.c.bf16 %v2727, %v2723
    %v2815 = vpack.c.bf16 %v2729, %v2725
    %v2816 = vpack.c.bf16 %v2735, %v2731
    %v2817 = vpack.c.bf16 %v2737, %v2733
    %v2818 = vpack.c.bf16 %v2743, %v2739
    %v2819 = vpack.c.bf16 %v2745, %v2741
    %v2820 = vpack.c.bf16 %v2751, %v2747
    %v2821 = vpack.c.bf16 %v2753, %v2749
    %v2822 = vpack.c.bf16 %v2759, %v2755
    %v2823 = vpack.c.bf16 %v2761, %v2757
    %v2824 = vpack.c.bf16 %v2767, %v2763
    %v2825 = vpack.c.bf16 %v2769, %v2765
    %v2826 = vpack.c.bf16 %v2775, %v2771
    %v2827 = vpack.c.bf16 %v2777, %v2773
    %v2828 = vpack.c.bf16 %v2783, %v2779
    %v2829 = vpack.c.bf16 %v2785, %v2781
    %v2830 = vpack.c.bf16 %v2791, %v2787
    %v2831 = vpack.c.bf16 %v2793, %v2789
    %v2832 = vpack.c.bf16 %v2799, %v2795
    %v2833 = vpack.c.bf16 %v2801, %v2797
    %v2866 = vunpack.c.l.b16 %v2802
    %v2867 = vunpack.c.l.b16 %v2803
    %v2868 = vunpack.c.h.b16 %v2802
    %v2869 = vunpack.c.h.b16 %v2803
    %v2870 = vunpack.c.l.b16 %v2804
    %v2871 = vunpack.c.l.b16 %v2805
    %v2872 = vunpack.c.h.b16 %v2804
    %v2873 = vunpack.c.h.b16 %v2805
    %v2874 = vunpack.c.l.b16 %v2806
    %v2875 = vunpack.c.l.b16 %v2807
    %v2876 = vunpack.c.h.b16 %v2806
    %v2877 = vunpack.c.h.b16 %v2807
    %v2878 = vunpack.c.l.b16 %v2808
    %v2879 = vunpack.c.l.b16 %v2809
    %v2880 = vunpack.c.h.b16 %v2808
    %v2881 = vunpack.c.h.b16 %v2809
    %v2882 = vunpack.c.l.b16 %v2810
    %v2883 = vunpack.c.l.b16 %v2811
    %v2884 = vunpack.c.h.b16 %v2810
    %v2885 = vunpack.c.h.b16 %v2811
    %v2886 = vunpack.c.l.b16 %v2812
    %v2887 = vunpack.c.l.b16 %v2813
    %v2888 = vunpack.c.h.b16 %v2812
    %v2889 = vunpack.c.h.b16 %v2813
    %v2890 = vunpack.c.l.b16 %v2814
    %v2891 = vunpack.c.l.b16 %v2815
    %v2892 = vunpack.c.h.b16 %v2814
    %v2893 = vunpack.c.h.b16 %v2815
    %v2894 = vunpack.c.l.b16 %v2816
    %v2895 = vunpack.c.l.b16 %v2817
    %v2896 = vunpack.c.h.b16 %v2816
    %v2897 = vunpack.c.h.b16 %v2817
    %v2898 = vunpack.c.l.b16 %v2818
    %v2899 = vunpack.c.l.b16 %v2819
    %v2900 = vunpack.c.h.b16 %v2818
    %v2901 = vunpack.c.h.b16 %v2819
    %v2902 = vunpack.c.l.b16 %v2820
    %v2903 = vunpack.c.l.b16 %v2821
    %v2904 = vunpack.c.h.b16 %v2820
    %v2905 = vunpack.c.h.b16 %v2821
    %v2906 = vunpack.c.l.b16 %v2822
    %v2907 = vunpack.c.l.b16 %v2823
    %v2908 = vunpack.c.h.b16 %v2822
    %v2909 = vunpack.c.h.b16 %v2823
    %v2910 = vunpack.c.l.b16 %v2824
    %v2911 = vunpack.c.l.b16 %v2825
    %v2912 = vunpack.c.h.b16 %v2824
    %v2913 = vunpack.c.h.b16 %v2825
    %v2914 = vunpack.c.l.b16 %v2826
    %v2915 = vunpack.c.l.b16 %v2827
    %v2916 = vunpack.c.h.b16 %v2826
    %v2917 = vunpack.c.h.b16 %v2827
    %v2918 = vunpack.c.l.b16 %v2828
    %v2919 = vunpack.c.l.b16 %v2829
    %v2920 = vunpack.c.h.b16 %v2828
    %v2921 = vunpack.c.h.b16 %v2829
    %v2922 = vunpack.c.l.b16 %v2830
    %v2923 = vunpack.c.l.b16 %v2831
    %v2924 = vunpack.c.h.b16 %v2830
    %v2925 = vunpack.c.h.b16 %v2831
    %v2926 = vunpack.c.l.b16 %v2832
    %v2927 = vunpack.c.l.b16 %v2833
    %v2928 = vunpack.c.h.b16 %v2832
    %v2929 = vunpack.c.h.b16 %v2833
    %v2930 = vpack.c.b16 %v2867, %v2866
    %v2931 = vpack.c.b16 %v2869, %v2868
    %v2932 = vpack.c.b16 %v2871, %v2870
    %v2933 = vpack.c.b16 %v2873, %v2872
    %v2934 = vpack.c.b16 %v2875, %v2874
    %v2935 = vpack.c.b16 %v2877, %v2876
    %v2936 = vpack.c.b16 %v2879, %v2878
    %v2937 = vpack.c.b16 %v2881, %v2880
    %v2938 = vpack.c.b16 %v2883, %v2882
    %v2939 = vpack.c.b16 %v2885, %v2884
    %v2940 = vpack.c.b16 %v2887, %v2886
    %v2941 = vpack.c.b16 %v2889, %v2888
    %v2942 = vpack.c.b16 %v2891, %v2890
    %v2943 = vpack.c.b16 %v2893, %v2892
    %v2944 = vpack.c.b16 %v2895, %v2894
    %v2945 = vpack.c.b16 %v2897, %v2896
    %v2946 = vpack.c.b16 %v2899, %v2898
    %v2947 = vpack.c.b16 %v2901, %v2900
    %v2948 = vpack.c.b16 %v2903, %v2902
    %v2949 = vpack.c.b16 %v2905, %v2904
    %v2950 = vpack.c.b16 %v2907, %v2906
    %v2951 = vpack.c.b16 %v2909, %v2908
    %v2952 = vpack.c.b16 %v2911, %v2910
    %v2953 = vpack.c.b16 %v2913, %v2912
    %v2954 = vpack.c.b16 %v2915, %v2914
    %v2955 = vpack.c.b16 %v2917, %v2916
    %v2956 = vpack.c.b16 %v2919, %v2918
    %v2957 = vpack.c.b16 %v2921, %v2920
    %v2958 = vpack.c.b16 %v2923, %v2922
    %v2959 = vpack.c.b16 %v2925, %v2924
    %v2960 = vpack.c.b16 %v2927, %v2926
    %v2961 = vpack.c.b16 %v2929, %v2928
    %2994 = vst [vmem:[#allocation6] sm:$0xff] %v2930
    %2995 = vst [vmem:[#allocation6 + $0x8] sm:$0xff] %v2931
    %2996 = vst [vmem:[#allocation6 + $0x10] sm:$0xff] %v2932
    %2997 = vst [vmem:[#allocation6 + $0x18] sm:$0xff] %v2933
    %2998 = vst [vmem:[#allocation6 + $0x20] sm:$0xff] %v2934
    %2999 = vst [vmem:[#allocation6 + $0x28] sm:$0xff] %v2935
    %3000 = vst [vmem:[#allocation6 + $0x30] sm:$0xff] %v2936
    %3001 = vst [vmem:[#allocation6 + $0x38] sm:$0xff] %v2937
    %3002 = vst [vmem:[#allocation6 + $0x40] sm:$0xff] %v2938
    %3003 = vst [vmem:[#allocation6 + $0x48] sm:$0xff] %v2939
    %3004 = vst [vmem:[#allocation6 + $0x50] sm:$0xff] %v2940
    %3005 = vst [vmem:[#allocation6 + $0x58] sm:$0xff] %v2941
    %3006 = vst [vmem:[#allocation6 + $0x60] sm:$0xff] %v2942
    %3007 = vst [vmem:[#allocation6 + $0x68] sm:$0xff] %v2943
    %3008 = vst [vmem:[#allocation6 + $0x70] sm:$0xff] %v2944
    %3009 = vst [vmem:[#allocation6 + $0x78] sm:$0xff] %v2945
    %3010 = vst [vmem:[#allocation6 + $0x80] sm:$0xff] %v2946
    %3011 = vst [vmem:[#allocation6 + $0x88] sm:$0xff] %v2947
    %3012 = vst [vmem:[#allocation6 + $0x90] sm:$0xff] %v2948
    %3013 = vst [vmem:[#allocation6 + $0x98] sm:$0xff] %v2949
    %3014 = vst [vmem:[#allocation6 + $0xa0] sm:$0xff] %v2950
    %3015 = vst [vmem:[#allocation6 + $0xa8] sm:$0xff] %v2951
    %3016 = vst [vmem:[#allocation6 + $0xb0] sm:$0xff] %v2952
    %3017 = vst [vmem:[#allocation6 + $0xb8] sm:$0xff] %v2953
    %3018 = vst [vmem:[#allocation6 + $0xc0] sm:$0xff] %v2954
    %3019 = vst [vmem:[#allocation6 + $0xc8] sm:$0xff] %v2955
    %3020 = vst [vmem:[#allocation6 + $0xd0] sm:$0xff] %v2956
    %3021 = vst [vmem:[#allocation6 + $0xd8] sm:$0xff] %v2957
    %3022 = vst [vmem:[#allocation6 + $0xe0] sm:$0xff] %v2958
    %3023 = vst [vmem:[#allocation6 + $0xe8] sm:$0xff] %v2959
    %3024 = vst [vmem:[#allocation6 + $0xf0] sm:$0xff] %v2960
    %3025 = vst [vmem:[#allocation6 + $0xf8] sm:$0xff] %v2961
    %v3026 = vmax.f32 %v2546, -100.0
    %v3027 = vmax.f32 %v2547, -100.0
    %v3028 = vmax.f32 %v2548, -100.0
    %v3029 = vmax.f32 %v2549, -100.0
    %v3030 = vmax.f32 %v2550, -100.0
    %v3031 = vmax.f32 %v2551, -100.0
    %v3032 = vmax.f32 %v2552, -100.0
    %v3033 = vmax.f32 %v2553, -100.0
    %v3034 = vmax.f32 %v2554, -100.0
    %v3035 = vmax.f32 %v2555, -100.0
    %v3036 = vmax.f32 %v2556, -100.0
    %v3037 = vmax.f32 %v2557, -100.0
    %v3038 = vmax.f32 %v2558, -100.0
    %v3039 = vmax.f32 %v2559, -100.0
    %v3040 = vmax.f32 %v2560, -100.0
    %v3041 = vmax.f32 %v2561, -100.0
    %v3042 = vmax.f32 %v2562, -100.0
    %v3043 = vmax.f32 %v2563, -100.0
    %v3044 = vmax.f32 %v2564, -100.0
    %v3045 = vmax.f32 %v2565, -100.0
    %v3046 = vmax.f32 %v2566, -100.0
    %v3047 = vmax.f32 %v2567, -100.0
    %v3048 = vmax.f32 %v2568, -100.0
    %v3049 = vmax.f32 %v2569, -100.0
    %v3050 = vmax.f32 %v2570, -100.0
    %v3051 = vmax.f32 %v2571, -100.0
    %v3052 = vmax.f32 %v2572, -100.0
    %v3053 = vmax.f32 %v2573, -100.0
    %v3054 = vmax.f32 %v2574, -100.0
    %v3055 = vmax.f32 %v2575, -100.0
    %v3056 = vmax.f32 %v2576, -100.0
    %v3057 = vmax.f32 %v2577, -100.0
    %v3058 = vmax.f32 %v2578, -100.0
    %v3059 = vmax.f32 %v2579, -100.0
    %v3060 = vmax.f32 %v2580, -100.0
    %v3061 = vmax.f32 %v2581, -100.0
    %v3062 = vmax.f32 %v2582, -100.0
    %v3063 = vmax.f32 %v2583, -100.0
    %v3064 = vmax.f32 %v2584, -100.0
    %v3065 = vmax.f32 %v2585, -100.0
    %v3066 = vmax.f32 %v2586, -100.0
    %v3067 = vmax.f32 %v2587, -100.0
    %v3068 = vmax.f32 %v2588, -100.0
    %v3069 = vmax.f32 %v2589, -100.0
    %v3070 = vmax.f32 %v2590, -100.0
    %v3071 = vmax.f32 %v2591, -100.0
    %v3072 = vmax.f32 %v2592, -100.0
    %v3073 = vmax.f32 %v2593, -100.0
    %v3074 = vmax.f32 %v2594, -100.0
    %v3075 = vmax.f32 %v2595, -100.0
    %v3076 = vmax.f32 %v2596, -100.0
    %v3077 = vmax.f32 %v2597, -100.0
    %v3078 = vmax.f32 %v2598, -100.0
    %v3079 = vmax.f32 %v2599, -100.0
    %v3080 = vmax.f32 %v2600, -100.0
    %v3081 = vmax.f32 %v2601, -100.0
    %v3082 = vmax.f32 %v2602, -100.0
    %v3083 = vmax.f32 %v2603, -100.0
    %v3084 = vmax.f32 %v2604, -100.0
    %v3085 = vmax.f32 %v2605, -100.0
    %v3086 = vmax.f32 %v2606, -100.0
    %v3087 = vmax.f32 %v2607, -100.0
    %v3088 = vmax.f32 %v2608, -100.0
    %v3089 = vmax.f32 %v2609, -100.0
    %v3090 = vmul.f32 %v92, %v3026
    %v3091 = vmul.f32 %v93, %v3027
    %v3092 = vmul.f32 %v94, %v3028
    %v3093 = vmul.f32 %v95, %v3029
    %v3094 = vmul.f32 %v96, %v3030
    %v3095 = vmul.f32 %v97, %v3031
    %v3096 = vmul.f32 %v98, %v3032
    %v3097 = vmul.f32 %v99, %v3033
    %v3098 = vmul.f32 %v100, %v3034
    %v3099 = vmul.f32 %v101, %v3035
    %v3100 = vmul.f32 %v102, %v3036
    %v3101 = vmul.f32 %v103, %v3037
    %v3102 = vmul.f32 %v104, %v3038
    %v3103 = vmul.f32 %v105, %v3039
    %v3104 = vmul.f32 %v106, %v3040
    %v3105 = vmul.f32 %v107, %v3041
    %v3106 = vmul.f32 %v108, %v3042
    %v3107 = vmul.f32 %v109, %v3043
    %v3108 = vmul.f32 %v110, %v3044
    %v3109 = vmul.f32 %v111, %v3045
    %v3110 = vmul.f32 %v112, %v3046
    %v3111 = vmul.f32 %v113, %v3047
    %v3112 = vmul.f32 %v114, %v3048
    %v3113 = vmul.f32 %v115, %v3049
    %v3114 = vmul.f32 %v116, %v3050
    %v3115 = vmul.f32 %v117, %v3051
    %v3116 = vmul.f32 %v118, %v3052
    %v3117 = vmul.f32 %v119, %v3053
    %v3118 = vmul.f32 %v120, %v3054
    %v3119 = vmul.f32 %v121, %v3055
    %v3120 = vmul.f32 %v122, %v3056
    %v3121 = vmul.f32 %v123, %v3057
    %v3122 = vmul.f32 %v124, %v3058
    %v3123 = vmul.f32 %v125, %v3059
    %v3124 = vmul.f32 %v126, %v3060
    %v3125 = vmul.f32 %v127, %v3061
    %v3126 = vmul.f32 %v128, %v3062
    %v3127 = vmul.f32 %v129, %v3063
    %v3128 = vmul.f32 %v130, %v3064
    %v3129 = vmul.f32 %v131, %v3065
    %v3130 = vmul.f32 %v132, %v3066
    %v3131 = vmul.f32 %v133, %v3067
    %v3132 = vmul.f32 %v134, %v3068
    %v3133 = vmul.f32 %v135, %v3069
    %v3134 = vmul.f32 %v136, %v3070
    %v3135 = vmul.f32 %v137, %v3071
    %v3136 = vmul.f32 %v138, %v3072
    %v3137 = vmul.f32 %v139, %v3073
    %v3138 = vmul.f32 %v140, %v3074
    %v3139 = vmul.f32 %v141, %v3075
    %v3140 = vmul.f32 %v142, %v3076
    %v3141 = vmul.f32 %v143, %v3077
    %v3142 = vmul.f32 %v144, %v3078
    %v3143 = vmul.f32 %v145, %v3079
    %v3144 = vmul.f32 %v146, %v3080
    %v3145 = vmul.f32 %v147, %v3081
    %v3146 = vmul.f32 %v148, %v3082
    %v3147 = vmul.f32 %v149, %v3083
    %v3148 = vmul.f32 %v150, %v3084
    %v3149 = vmul.f32 %v151, %v3085
    %v3150 = vmul.f32 %v152, %v3086
    %v3151 = vmul.f32 %v153, %v3087
    %v3152 = vmul.f32 %v154, %v3088
    %v3153 = vmul.f32 %v155, %v3089
    %v3154 = vsub.f32 1.0, %v92
    %v3155 = vsub.f32 1.0, %v93
    %v3156 = vsub.f32 1.0, %v94
    %v3157 = vsub.f32 1.0, %v95
    %v3158 = vsub.f32 1.0, %v96
    %v3159 = vsub.f32 1.0, %v97
    %v3160 = vsub.f32 1.0, %v98
    %v3161 = vsub.f32 1.0, %v99
    %v3162 = vsub.f32 1.0, %v100
    %v3163 = vsub.f32 1.0, %v101
    %v3164 = vsub.f32 1.0, %v102
    %v3165 = vsub.f32 1.0, %v103
    %v3166 = vsub.f32 1.0, %v104
    %v3167 = vsub.f32 1.0, %v105
    %v3168 = vsub.f32 1.0, %v106
    %v3169 = vsub.f32 1.0, %v107
    %v3170 = vsub.f32 1.0, %v108
    %v3171 = vsub.f32 1.0, %v109
    %v3172 = vsub.f32 1.0, %v110
    %v3173 = vsub.f32 1.0, %v111
    %v3174 = vsub.f32 1.0, %v112
    %v3175 = vsub.f32 1.0, %v113
    %v3176 = vsub.f32 1.0, %v114
    %v3177 = vsub.f32 1.0, %v115
    %v3178 = vsub.f32 1.0, %v116
    %v3179 = vsub.f32 1.0, %v117
    %v3180 = vsub.f32 1.0, %v118
    %v3181 = vsub.f32 1.0, %v119
    %v3182 = vsub.f32 1.0, %v120
    %v3183 = vsub.f32 1.0, %v121
    %v3184 = vsub.f32 1.0, %v122
    %v3185 = vsub.f32 1.0, %v123
    %v3186 = vsub.f32 1.0, %v124
    %v3187 = vsub.f32 1.0, %v125
    %v3188 = vsub.f32 1.0, %v126
    %v3189 = vsub.f32 1.0, %v127
    %v3190 = vsub.f32 1.0, %v128
    %v3191 = vsub.f32 1.0, %v129
    %v3192 = vsub.f32 1.0, %v130
    %v3193 = vsub.f32 1.0, %v131
    %v3194 = vsub.f32 1.0, %v132
    %v3195 = vsub.f32 1.0, %v133
    %v3196 = vsub.f32 1.0, %v134
    %v3197 = vsub.f32 1.0, %v135
    %v3198 = vsub.f32 1.0, %v136
    %v3199 = vsub.f32 1.0, %v137
    %v3200 = vsub.f32 1.0, %v138
    %v3201 = vsub.f32 1.0, %v139
    %v3202 = vsub.f32 1.0, %v140
    %v3203 = vsub.f32 1.0, %v141
    %v3204 = vsub.f32 1.0, %v142
    %v3205 = vsub.f32 1.0, %v143
    %v3206 = vsub.f32 1.0, %v144
    %v3207 = vsub.f32 1.0, %v145
    %v3208 = vsub.f32 1.0, %v146
    %v3209 = vsub.f32 1.0, %v147
    %v3210 = vsub.f32 1.0, %v148
    %v3211 = vsub.f32 1.0, %v149
    %v3212 = vsub.f32 1.0, %v150
    %v3213 = vsub.f32 1.0, %v151
    %v3214 = vsub.f32 1.0, %v152
    %v3215 = vsub.f32 1.0, %v153
    %v3216 = vsub.f32 1.0, %v154
    %v3217 = vsub.f32 1.0, %v155
    %v3218 = vmax.f32 %v2610, -100.0
    %v3219 = vmax.f32 %v2611, -100.0
    %v3220 = vmax.f32 %v2612, -100.0
    %v3221 = vmax.f32 %v2613, -100.0
    %v3222 = vmax.f32 %v2614, -100.0
    %v3223 = vmax.f32 %v2615, -100.0
    %v3224 = vmax.f32 %v2616, -100.0
    %v3225 = vmax.f32 %v2617, -100.0
    %v3226 = vmax.f32 %v2618, -100.0
    %v3227 = vmax.f32 %v2619, -100.0
    %v3228 = vmax.f32 %v2620, -100.0
    %v3229 = vmax.f32 %v2621, -100.0
    %v3230 = vmax.f32 %v2622, -100.0
    %v3231 = vmax.f32 %v2623, -100.0
    %v3232 = vmax.f32 %v2624, -100.0
    %v3233 = vmax.f32 %v2625, -100.0
    %v3234 = vmax.f32 %v2626, -100.0
    %v3235 = vmax.f32 %v2627, -100.0
    %v3236 = vmax.f32 %v2628, -100.0
    %v3237 = vmax.f32 %v2629, -100.0
    %v3238 = vmax.f32 %v2630, -100.0
    %v3239 = vmax.f32 %v2631, -100.0
    %v3240 = vmax.f32 %v2632, -100.0
    %v3241 = vmax.f32 %v2633, -100.0
    %v3242 = vmax.f32 %v2634, -100.0
    %v3243 = vmax.f32 %v2635, -100.0
    %v3244 = vmax.f32 %v2636, -100.0
    %v3245 = vmax.f32 %v2637, -100.0
    %v3246 = vmax.f32 %v2638, -100.0
    %v3247 = vmax.f32 %v2639, -100.0
    %v3248 = vmax.f32 %v2640, -100.0
    %v3249 = vmax.f32 %v2641, -100.0
    %v3250 = vmax.f32 %v2642, -100.0
    %v3251 = vmax.f32 %v2643, -100.0
    %v3252 = vmax.f32 %v2644, -100.0
    %v3253 = vmax.f32 %v2645, -100.0
    %v3254 = vmax.f32 %v2646, -100.0
    %v3255 = vmax.f32 %v2647, -100.0
    %v3256 = vmax.f32 %v2648, -100.0
    %v3257 = vmax.f32 %v2649, -100.0
    %v3258 = vmax.f32 %v2650, -100.0
    %v3259 = vmax.f32 %v2651, -100.0
    %v3260 = vmax.f32 %v2652, -100.0
    %v3261 = vmax.f32 %v2653, -100.0
    %v3262 = vmax.f32 %v2654, -100.0
    %v3263 = vmax.f32 %v2655, -100.0
    %v3264 = vmax.f32 %v2656, -100.0
    %v3265 = vmax.f32 %v2657, -100.0
    %v3266 = vmax.f32 %v2658, -100.0
    %v3267 = vmax.f32 %v2659, -100.0
    %v3268 = vmax.f32 %v2660, -100.0
    %v3269 = vmax.f32 %v2661, -100.0
    %v3270 = vmax.f32 %v2662, -100.0
    %v3271 = vmax.f32 %v2663, -100.0
    %v3272 = vmax.f32 %v2664, -100.0
    %v3273 = vmax.f32 %v2665, -100.0
    %v3274 = vmax.f32 %v2666, -100.0
    %v3275 = vmax.f32 %v2667, -100.0
    %v3276 = vmax.f32 %v2668, -100.0
    %v3277 = vmax.f32 %v2669, -100.0
    %v3278 = vmax.f32 %v2670, -100.0
    %v3279 = vmax.f32 %v2671, -100.0
    %v3280 = vmax.f32 %v2672, -100.0
    %v3281 = vmax.f32 %v2673, -100.0
    %v3282 = vmul.f32 %v3154, %v3218
    %v3283 = vmul.f32 %v3155, %v3219
    %v3284 = vmul.f32 %v3156, %v3220
    %v3285 = vmul.f32 %v3157, %v3221
    %v3286 = vmul.f32 %v3158, %v3222
    %v3287 = vmul.f32 %v3159, %v3223
    %v3288 = vmul.f32 %v3160, %v3224
    %v3289 = vmul.f32 %v3161, %v3225
    %v3290 = vmul.f32 %v3162, %v3226
    %v3291 = vmul.f32 %v3163, %v3227
    %v3292 = vmul.f32 %v3164, %v3228
    %v3293 = vmul.f32 %v3165, %v3229
    %v3294 = vmul.f32 %v3166, %v3230
    %v3295 = vmul.f32 %v3167, %v3231
    %v3296 = vmul.f32 %v3168, %v3232
    %v3297 = vmul.f32 %v3169, %v3233
    %v3298 = vmul.f32 %v3170, %v3234
    %v3299 = vmul.f32 %v3171, %v3235
    %v3300 = vmul.f32 %v3172, %v3236
    %v3301 = vmul.f32 %v3173, %v3237
    %v3302 = vmul.f32 %v3174, %v3238
    %v3303 = vmul.f32 %v3175, %v3239
    %v3304 = vmul.f32 %v3176, %v3240
    %v3305 = vmul.f32 %v3177, %v3241
    %v3306 = vmul.f32 %v3178, %v3242
    %v3307 = vmul.f32 %v3179, %v3243
    %v3308 = vmul.f32 %v3180, %v3244
    %v3309 = vmul.f32 %v3181, %v3245
    %v3310 = vmul.f32 %v3182, %v3246
    %v3311 = vmul.f32 %v3183, %v3247
    %v3312 = vmul.f32 %v3184, %v3248
    %v3313 = vmul.f32 %v3185, %v3249
    %v3314 = vmul.f32 %v3186, %v3250
    %v3315 = vmul.f32 %v3187, %v3251
    %v3316 = vmul.f32 %v3188, %v3252
    %v3317 = vmul.f32 %v3189, %v3253
    %v3318 = vmul.f32 %v3190, %v3254
    %v3319 = vmul.f32 %v3191, %v3255
    %v3320 = vmul.f32 %v3192, %v3256
    %v3321 = vmul.f32 %v3193, %v3257
    %v3322 = vmul.f32 %v3194, %v3258
    %v3323 = vmul.f32 %v3195, %v3259
    %v3324 = vmul.f32 %v3196, %v3260
    %v3325 = vmul.f32 %v3197, %v3261
    %v3326 = vmul.f32 %v3198, %v3262
    %v3327 = vmul.f32 %v3199, %v3263
    %v3328 = vmul.f32 %v3200, %v3264
    %v3329 = vmul.f32 %v3201, %v3265
    %v3330 = vmul.f32 %v3202, %v3266
    %v3331 = vmul.f32 %v3203, %v3267
    %v3332 = vmul.f32 %v3204, %v3268
    %v3333 = vmul.f32 %v3205, %v3269
    %v3334 = vmul.f32 %v3206, %v3270
    %v3335 = vmul.f32 %v3207, %v3271
    %v3336 = vmul.f32 %v3208, %v3272
    %v3337 = vmul.f32 %v3209, %v3273
    %v3338 = vmul.f32 %v3210, %v3274
    %v3339 = vmul.f32 %v3211, %v3275
    %v3340 = vmul.f32 %v3212, %v3276
    %v3341 = vmul.f32 %v3213, %v3277
    %v3342 = vmul.f32 %v3214, %v3278
    %v3343 = vmul.f32 %v3215, %v3279
    %v3344 = vmul.f32 %v3216, %v3280
    %v3345 = vmul.f32 %v3217, %v3281
    %v3346 = vadd.f32 %v3090, %v3282
    %v3347 = vadd.f32 %v3091, %v3283
    %v3348 = vadd.f32 %v3092, %v3284
    %v3349 = vadd.f32 %v3093, %v3285
    %v3350 = vadd.f32 %v3094, %v3286
    %v3351 = vadd.f32 %v3095, %v3287
    %v3352 = vadd.f32 %v3096, %v3288
    %v3353 = vadd.f32 %v3097, %v3289
    %v3354 = vadd.f32 %v3098, %v3290
    %v3355 = vadd.f32 %v3099, %v3291
    %v3356 = vadd.f32 %v3100, %v3292
    %v3357 = vadd.f32 %v3101, %v3293
    %v3358 = vadd.f32 %v3102, %v3294
    %v3359 = vadd.f32 %v3103, %v3295
    %v3360 = vadd.f32 %v3104, %v3296
    %v3361 = vadd.f32 %v3105, %v3297
    %v3362 = vadd.f32 %v3106, %v3298
    %v3363 = vadd.f32 %v3107, %v3299
    %v3364 = vadd.f32 %v3108, %v3300
    %v3365 = vadd.f32 %v3109, %v3301
    %v3366 = vadd.f32 %v3110, %v3302
    %v3367 = vadd.f32 %v3111, %v3303
    %v3368 = vadd.f32 %v3112, %v3304
    %v3369 = vadd.f32 %v3113, %v3305
    %v3370 = vadd.f32 %v3114, %v3306
    %v3371 = vadd.f32 %v3115, %v3307
    %v3372 = vadd.f32 %v3116, %v3308
    %v3373 = vadd.f32 %v3117, %v3309
    %v3374 = vadd.f32 %v3118, %v3310
    %v3375 = vadd.f32 %v3119, %v3311
    %v3376 = vadd.f32 %v3120, %v3312
    %v3377 = vadd.f32 %v3121, %v3313
    %v3378 = vadd.f32 %v3122, %v3314
    %v3379 = vadd.f32 %v3123, %v3315
    %v3380 = vadd.f32 %v3124, %v3316
    %v3381 = vadd.f32 %v3125, %v3317
    %v3382 = vadd.f32 %v3126, %v3318
    %v3383 = vadd.f32 %v3127, %v3319
    %v3384 = vadd.f32 %v3128, %v3320
    %v3385 = vadd.f32 %v3129, %v3321
    %v3386 = vadd.f32 %v3130, %v3322
    %v3387 = vadd.f32 %v3131, %v3323
    %v3388 = vadd.f32 %v3132, %v3324
    %v3389 = vadd.f32 %v3133, %v3325
    %v3390 = vadd.f32 %v3134, %v3326
    %v3391 = vadd.f32 %v3135, %v3327
    %v3392 = vadd.f32 %v3136, %v3328
    %v3393 = vadd.f32 %v3137, %v3329
    %v3394 = vadd.f32 %v3138, %v3330
    %v3395 = vadd.f32 %v3139, %v3331
    %v3396 = vadd.f32 %v3140, %v3332
    %v3397 = vadd.f32 %v3141, %v3333
    %v3398 = vadd.f32 %v3142, %v3334
    %v3399 = vadd.f32 %v3143, %v3335
    %v3400 = vadd.f32 %v3144, %v3336
    %v3401 = vadd.f32 %v3145, %v3337
    %v3402 = vadd.f32 %v3146, %v3338
    %v3403 = vadd.f32 %v3147, %v3339
    %v3404 = vadd.f32 %v3148, %v3340
    %v3405 = vadd.f32 %v3149, %v3341
    %v3406 = vadd.f32 %v3150, %v3342
    %v3407 = vadd.f32 %v3151, %v3343
    %v3408 = vadd.f32 %v3152, %v3344
    %v3409 = vadd.f32 %v3153, %v3345
    %v3410 = vadd.f32 %v3346, %v3347
    %v3411 = vadd.f32 %v3410, %v3348
    %v3412 = vadd.f32 %v3411, %v3349
    %v3413 = vadd.f32 %v3412, %v3350
    %v3414 = vadd.f32 %v3413, %v3351
    %v3415 = vadd.f32 %v3414, %v3352
    %v3416 = vadd.f32 %v3415, %v3353
    %v3417 = vadd.f32 %v3416, %v3354
    %v3418 = vadd.f32 %v3417, %v3355
    %v3419 = vadd.f32 %v3418, %v3356
    %v3420 = vadd.f32 %v3419, %v3357
    %v3421 = vadd.f32 %v3420, %v3358
    %v3422 = vadd.f32 %v3421, %v3359
    %v3423 = vadd.f32 %v3422, %v3360
    %v3424 = vadd.f32 %v3423, %v3361
    %v3425 = vadd.f32 %v3424, %v3362
    %v3426 = vadd.f32 %v3425, %v3363
    %v3427 = vadd.f32 %v3426, %v3364
    %v3428 = vadd.f32 %v3427, %v3365
    %v3429 = vadd.f32 %v3428, %v3366
    %v3430 = vadd.f32 %v3429, %v3367
    %v3431 = vadd.f32 %v3430, %v3368
    %v3432 = vadd.f32 %v3431, %v3369
    %v3433 = vadd.f32 %v3432, %v3370
    %v3434 = vadd.f32 %v3433, %v3371
    %v3435 = vadd.f32 %v3434, %v3372
    %v3436 = vadd.f32 %v3435, %v3373
    %v3437 = vadd.f32 %v3436, %v3374
    %v3438 = vadd.f32 %v3437, %v3375
    %v3439 = vadd.f32 %v3438, %v3376
    %v3440 = vadd.f32 %v3439, %v3377
    %v3441 = vadd.f32 %v3440, %v3378
    %v3442 = vadd.f32 %v3441, %v3379
    %v3443 = vadd.f32 %v3442, %v3380
    %v3444 = vadd.f32 %v3443, %v3381
    %v3445 = vadd.f32 %v3444, %v3382
    %v3446 = vadd.f32 %v3445, %v3383
    %v3447 = vadd.f32 %v3446, %v3384
    %v3448 = vadd.f32 %v3447, %v3385
    %v3449 = vadd.f32 %v3448, %v3386
    %v3450 = vadd.f32 %v3449, %v3387
    %v3451 = vadd.f32 %v3450, %v3388
    %v3452 = vadd.f32 %v3451, %v3389
    %v3453 = vadd.f32 %v3452, %v3390
    %v3454 = vadd.f32 %v3453, %v3391
    %v3455 = vadd.f32 %v3454, %v3392
    %v3456 = vadd.f32 %v3455, %v3393
    %v3457 = vadd.f32 %v3456, %v3394
    %v3458 = vadd.f32 %v3457, %v3395
    %v3459 = vadd.f32 %v3458, %v3396
    %v3460 = vadd.f32 %v3459, %v3397
    %v3461 = vadd.f32 %v3460, %v3398
    %v3462 = vadd.f32 %v3461, %v3399
    %v3463 = vadd.f32 %v3462, %v3400
    %v3464 = vadd.f32 %v3463, %v3401
    %v3465 = vadd.f32 %v3464, %v3402
    %v3466 = vadd.f32 %v3465, %v3403
    %v3467 = vadd.f32 %v3466, %v3404
    %v3468 = vadd.f32 %v3467, %v3405
    %v3469 = vadd.f32 %v3468, %v3406
    %v3470 = vadd.f32 %v3469, %v3407
    %v3471 = vadd.f32 %v3470, %v3408
    %v3472 = vadd.f32 %v3471, %v3409
    %3473 = vadd.xlane.f32.xlu0 %v3472
    %v3474 = vpop.xlane.xlu0 %3473
    %v3475 = vrot.slane %v3474, 4
    %v3476 = vadd.f32 %v3474, %v3475
    %v3477 = vrot.slane %v3476, 2
    %v3478 = vadd.f32 %v3476, %v3477
    %v3479 = vrot.slane %v3478, 1
    %v3480 = vadd.f32 %v3478, %v3479
    %s3481 = vtos %v3480
    %s3482 = ssub.f32 0.0, %s3481
    %v3483 = vadd.f32 %v1062, 1.0
    %v3484 = vadd.f32 %v1065, 1.0
    %v3485 = vadd.f32 %v1070, 1.0
    %v3486 = vadd.f32 %v1073, 1.0
    %v3487 = vadd.f32 %v1078, 1.0
    %v3488 = vadd.f32 %v1081, 1.0
    %v3489 = vadd.f32 %v1086, 1.0
    %v3490 = vadd.f32 %v1089, 1.0
    %v3491 = vadd.f32 %v1094, 1.0
    %v3492 = vadd.f32 %v1097, 1.0
    %v3493 = vadd.f32 %v1102, 1.0
    %v3494 = vadd.f32 %v1105, 1.0
    %v3495 = vadd.f32 %v1110, 1.0
    %v3496 = vadd.f32 %v1113, 1.0
    %v3497 = vadd.f32 %v1118, 1.0
    %v3498 = vadd.f32 %v1121, 1.0
    %v3499 = vadd.f32 %v1126, 1.0
    %v3500 = vadd.f32 %v1129, 1.0
    %v3501 = vadd.f32 %v1134, 1.0
    %v3502 = vadd.f32 %v1137, 1.0
    %v3503 = vadd.f32 %v1142, 1.0
    %v3504 = vadd.f32 %v1145, 1.0
    %v3505 = vadd.f32 %v1150, 1.0
    %v3506 = vadd.f32 %v1153, 1.0
    %v3507 = vadd.f32 %v1158, 1.0
    %v3508 = vadd.f32 %v1161, 1.0
    %v3509 = vadd.f32 %v1166, 1.0
    %v3510 = vadd.f32 %v1169, 1.0
    %v3511 = vadd.f32 %v1174, 1.0
    %v3512 = vadd.f32 %v1177, 1.0
    %v3513 = vadd.f32 %v1182, 1.0
    %v3514 = vadd.f32 %v1185, 1.0
    %v3515 = vmul.f32 %v830, %v830
    %v3516 = vmul.f32 %v833, %v833
    %v3517 = vmul.f32 %v838, %v838
    %v3518 = vmul.f32 %v841, %v841
    %v3519 = vmul.f32 %v846, %v846
    %v3520 = vmul.f32 %v849, %v849
    %v3521 = vmul.f32 %v854, %v854
    %v3522 = vmul.f32 %v857, %v857
    %v3523 = vmul.f32 %v862, %v862
    %v3524 = vmul.f32 %v865, %v865
    %v3525 = vmul.f32 %v870, %v870
    %v3526 = vmul.f32 %v873, %v873
    %v3527 = vmul.f32 %v878, %v878
    %v3528 = vmul.f32 %v881, %v881
    %v3529 = vmul.f32 %v886, %v886
    %v3530 = vmul.f32 %v889, %v889
    %v3531 = vmul.f32 %v894, %v894
    %v3532 = vmul.f32 %v897, %v897
    %v3533 = vmul.f32 %v902, %v902
    %v3534 = vmul.f32 %v905, %v905
    %v3535 = vmul.f32 %v910, %v910
    %v3536 = vmul.f32 %v913, %v913
    %v3537 = vmul.f32 %v918, %v918
    %v3538 = vmul.f32 %v921, %v921
    %v3539 = vmul.f32 %v926, %v926
    %v3540 = vmul.f32 %v929, %v929
    %v3541 = vmul.f32 %v934, %v934
    %v3542 = vmul.f32 %v937, %v937
    %v3543 = vmul.f32 %v942, %v942
    %v3544 = vmul.f32 %v945, %v945
    %v3545 = vmul.f32 %v950, %v950
    %v3546 = vmul.f32 %v953, %v953
    %v3547 = vsub.f32 %v3483, %v3515
    %v3548 = vsub.f32 %v3484, %v3516
    %v3549 = vsub.f32 %v3485, %v3517
    %v3550 = vsub.f32 %v3486, %v3518
    %v3551 = vsub.f32 %v3487, %v3519
    %v3552 = vsub.f32 %v3488, %v3520
    %v3553 = vsub.f32 %v3489, %v3521
    %v3554 = vsub.f32 %v3490, %v3522
    %v3555 = vsub.f32 %v3491, %v3523
    %v3556 = vsub.f32 %v3492, %v3524
    %v3557 = vsub.f32 %v3493, %v3525
    %v3558 = vsub.f32 %v3494, %v3526
    %v3559 = vsub.f32 %v3495, %v3527
    %v3560 = vsub.f32 %v3496, %v3528
    %v3561 = vsub.f32 %v3497, %v3529
    %v3562 = vsub.f32 %v3498, %v3530
    %v3563 = vsub.f32 %v3499, %v3531
    %v3564 = vsub.f32 %v3500, %v3532
    %v3565 = vsub.f32 %v3501, %v3533
    %v3566 = vsub.f32 %v3502, %v3534
    %v3567 = vsub.f32 %v3503, %v3535
    %v3568 = vsub.f32 %v3504, %v3536
    %v3569 = vsub.f32 %v3505, %v3537
    %v3570 = vsub.f32 %v3506, %v3538
    %v3571 = vsub.f32 %v3507, %v3539
    %v3572 = vsub.f32 %v3508, %v3540
    %v3573 = vsub.f32 %v3509, %v3541
    %v3574 = vsub.f32 %v3510, %v3542
    %v3575 = vsub.f32 %v3511, %v3543
    %v3576 = vsub.f32 %v3512, %v3544
    %v3577 = vsub.f32 %v3513, %v3545
    %v3578 = vsub.f32 %v3514, %v3546
    %v3579 = vmul.f32 %v1221, %v1221
    %v3580 = vmul.f32 %v1223, %v1223
    %v3581 = vmul.f32 %v1225, %v1225
    %v3582 = vmul.f32 %v1227, %v1227
    %v3583 = vmul.f32 %v1229, %v1229
    %v3584 = vmul.f32 %v1231, %v1231
    %v3585 = vmul.f32 %v1233, %v1233
    %v3586 = vmul.f32 %v1235, %v1235
    %v3587 = vmul.f32 %v1237, %v1237
    %v3588 = vmul.f32 %v1239, %v1239
    %v3589 = vmul.f32 %v1241, %v1241
    %v3590 = vmul.f32 %v1243, %v1243
    %v3591 = vmul.f32 %v1245, %v1245
    %v3592 = vmul.f32 %v1247, %v1247
    %v3593 = vmul.f32 %v1249, %v1249
    %v3594 = vmul.f32 %v1251, %v1251
    %v3595 = vmul.f32 %v1253, %v1253
    %v3596 = vmul.f32 %v1255, %v1255
    %v3597 = vmul.f32 %v1257, %v1257
    %v3598 = vmul.f32 %v1259, %v1259
    %v3599 = vmul.f32 %v1261, %v1261
    %v3600 = vmul.f32 %v1263, %v1263
    %v3601 = vmul.f32 %v1265, %v1265
    %v3602 = vmul.f32 %v1267, %v1267
    %v3603 = vmul.f32 %v1269, %v1269
    %v3604 = vmul.f32 %v1271, %v1271
    %v3605 = vmul.f32 %v1273, %v1273
    %v3606 = vmul.f32 %v1275, %v1275
    %v3607 = vmul.f32 %v1277, %v1277
    %v3608 = vmul.f32 %v1279, %v1279
    %v3609 = vmul.f32 %v1281, %v1281
    %v3610 = vmul.f32 %v1283, %v1283
    %v3611 = vsub.f32 %v3547, %v3579
    %v3612 = vsub.f32 %v3548, %v3580
    %v3613 = vsub.f32 %v3549, %v3581
    %v3614 = vsub.f32 %v3550, %v3582
    %v3615 = vsub.f32 %v3551, %v3583
    %v3616 = vsub.f32 %v3552, %v3584
    %v3617 = vsub.f32 %v3553, %v3585
    %v3618 = vsub.f32 %v3554, %v3586
    %v3619 = vsub.f32 %v3555, %v3587
    %v3620 = vsub.f32 %v3556, %v3588
    %v3621 = vsub.f32 %v3557, %v3589
    %v3622 = vsub.f32 %v3558, %v3590
    %v3623 = vsub.f32 %v3559, %v3591
    %v3624 = vsub.f32 %v3560, %v3592
    %v3625 = vsub.f32 %v3561, %v3593
    %v3626 = vsub.f32 %v3562, %v3594
    %v3627 = vsub.f32 %v3563, %v3595
    %v3628 = vsub.f32 %v3564, %v3596
    %v3629 = vsub.f32 %v3565, %v3597
    %v3630 = vsub.f32 %v3566, %v3598
    %v3631 = vsub.f32 %v3567, %v3599
    %v3632 = vsub.f32 %v3568, %v3600
    %v3633 = vsub.f32 %v3569, %v3601
    %v3634 = vsub.f32 %v3570, %v3602
    %v3635 = vsub.f32 %v3571, %v3603
    %v3636 = vsub.f32 %v3572, %v3604
    %v3637 = vsub.f32 %v3573, %v3605
    %v3638 = vsub.f32 %v3574, %v3606
    %v3639 = vsub.f32 %v3575, %v3607
    %v3640 = vsub.f32 %v3576, %v3608
    %v3641 = vsub.f32 %v3577, %v3609
    %v3642 = vsub.f32 %v3578, %v3610
    %v3643 = vsel %vm1411, %v3611, 0.0
    %v3644 = vsel %vm1411, %v3612, 0.0
    %v3645 = vadd.f32 %v3643, %v3644
    %v3646 = vsel %vm1411, %v3613, 0.0
    %v3647 = vadd.f32 %v3645, %v3646
    %v3648 = vsel %vm1411, %v3614, 0.0
    %v3649 = vadd.f32 %v3647, %v3648
    %v3650 = vsel %vm1411, %v3615, 0.0
    %v3651 = vadd.f32 %v3649, %v3650
    %v3652 = vsel %vm1411, %v3616, 0.0
    %v3653 = vadd.f32 %v3651, %v3652
    %v3654 = vsel %vm1411, %v3617, 0.0
    %v3655 = vadd.f32 %v3653, %v3654
    %v3656 = vsel %vm1411, %v3618, 0.0
    %v3657 = vadd.f32 %v3655, %v3656
    %v3658 = vsel %vm1411, %v3619, 0.0
    %v3659 = vadd.f32 %v3657, %v3658
    %v3660 = vsel %vm1411, %v3620, 0.0
    %v3661 = vadd.f32 %v3659, %v3660
    %v3662 = vsel %vm1411, %v3621, 0.0
    %v3663 = vadd.f32 %v3661, %v3662
    %v3664 = vsel %vm1411, %v3622, 0.0
    %v3665 = vadd.f32 %v3663, %v3664
    %v3666 = vsel %vm1411, %v3623, 0.0
    %v3667 = vadd.f32 %v3665, %v3666
    %v3668 = vsel %vm1411, %v3624, 0.0
    %v3669 = vadd.f32 %v3667, %v3668
    %v3670 = vsel %vm1411, %v3625, 0.0
    %v3671 = vadd.f32 %v3669, %v3670
    %v3672 = vsel %vm1411, %v3626, 0.0
    %v3673 = vadd.f32 %v3671, %v3672
    %v3674 = vsel %vm1411, %v3627, 0.0
    %v3675 = vadd.f32 %v3673, %v3674
    %v3676 = vsel %vm1411, %v3628, 0.0
    %v3677 = vadd.f32 %v3675, %v3676
    %v3678 = vsel %vm1411, %v3629, 0.0
    %v3679 = vadd.f32 %v3677, %v3678
    %v3680 = vsel %vm1411, %v3630, 0.0
    %v3681 = vadd.f32 %v3679, %v3680
    %v3682 = vsel %vm1411, %v3631, 0.0
    %v3683 = vadd.f32 %v3681, %v3682
    %v3684 = vsel %vm1411, %v3632, 0.0
    %v3685 = vadd.f32 %v3683, %v3684
    %v3686 = vsel %vm1411, %v3633, 0.0
    %v3687 = vadd.f32 %v3685, %v3686
    %v3688 = vsel %vm1411, %v3634, 0.0
    %v3689 = vadd.f32 %v3687, %v3688
    %v3690 = vsel %vm1411, %v3635, 0.0
    %v3691 = vadd.f32 %v3689, %v3690
    %v3692 = vsel %vm1411, %v3636, 0.0
    %v3693 = vadd.f32 %v3691, %v3692
    %v3694 = vsel %vm1411, %v3637, 0.0
    %v3695 = vadd.f32 %v3693, %v3694
    %v3696 = vsel %vm1411, %v3638, 0.0
    %v3697 = vadd.f32 %v3695, %v3696
    %v3698 = vsel %vm1411, %v3639, 0.0
    %v3699 = vadd.f32 %v3697, %v3698
    %v3700 = vsel %vm1411, %v3640, 0.0
    %v3701 = vadd.f32 %v3699, %v3700
    %v3702 = vsel %vm1411, %v3641, 0.0
    %v3703 = vadd.f32 %v3701, %v3702
    %v3704 = vsel %vm1411, %v3642, 0.0
    %v3705 = vadd.f32 %v3703, %v3704
    %3706 = vadd.xlane.f32.xlu0 %v3705
    %v3707 = vpop.xlane.xlu0 %3706
    %v3708 = vrot.slane %v3707, 4
    %v3709 = vadd.f32 %v3707, %v3708
    %v3710 = vrot.slane %v3709, 2
    %v3711 = vadd.f32 %v3709, %v3710
    %v3712 = vrot.slane %v3711, 1
    %v3713 = vadd.f32 %v3711, %v3712
    %s3714 = vtos %v3713
    %s3715 = smul.f32 %s3714, -0.5
    %s3716 = smul.f32 %s3715, 0.001
    %s3717 = sadd.f32 %s3482, %s3716
    %s3718 = scalar_lea.smem [#allocation7], 0
    %3719 = sst [smem:[%s3718]] %s3717
    // Predicated region
    $region54: #{tpu_custom_call.1} parent=1 // pred_check
      _
    $region55: #{tpu_custom_call.1} parent=1 // pred_check_branch
      %3721 = sbr.rel (0) target = $region57
    $region56: #{tpu_custom_call.1} parent=1 // pred_region
      %s3723 = ssub.s32 4096, 4096
      %3724 = vsyncadd [#allocation4], %s3723
      %s3725 = sshll.u32 [#allocation6], 4
      %s3726 = int_to_ptr.vmem [resolvable:$true] %s3725
      %3731 = dma.vmem_to_hbm [thread:$0]  %s3726, 4096, %s12, [#allocation4], 128, 128, 8
    $region57: #{tpu_custom_call.1} parent=1 // pred_fallthru
      _
    // Predicated region
    $region58: #{tpu_custom_call.1} parent=1 // pred_check
      _
    $region59: #{tpu_custom_call.1} parent=1 // pred_check_branch
      %3733 = sbr.rel (0) target = $region61
    $region60: #{tpu_custom_call.1} parent=1 // pred_region
      %s3735 = ssub.s32 16, 16
      %3736 = vsyncadd [#allocation5], %s3735
      %3739 = dma.smem_to_hbm [#allocation7], 16, %s13, [#allocation5]
    $region61: #{tpu_custom_call.1} parent=1 // pred_fallthru
      _
    // Predicated region
    $region62: #{tpu_custom_call.1} parent=1 // pred_check
      _
    $region63: #{tpu_custom_call.1} parent=1 // pred_check_branch
      %3741 = sbr.rel (0) target = $region65
    $region64: #{tpu_custom_call.1} parent=1 // pred_region
      %3742 = dma.done [#allocation4], 4096
    $region65: #{tpu_custom_call.1} parent=1 // pred_fallthru
      _
    // Predicated region
    $region66: #{tpu_custom_call.1} parent=1 // pred_check
      _
    $region67: #{tpu_custom_call.1} parent=1 // pred_check_branch
      %3744 = sbr.rel (0) target = $region69
    $region68: #{tpu_custom_call.1} parent=1 // pred_region
      %3745 = dma.done [#allocation5], 16
    $region69: #{tpu_custom_call.1} parent=1 // pred_fallthru
      _
    %3746 = sfence
    %3747 = vsyncpa [#allocation3], 1
    %3748 = vsyncpa [#allocation4], 1
    %3749 = vsyncpa [#allocation5], 1

</llo_original>
